<compile_context>
chip_gen: v7x
topology: tpu7x:2x2x1
jax: 0.10.0
libtpu: 0.0.40
codegen_flags: <defaults>
</compile_context>

<pallas_src>
import jax
import jax.numpy as jnp
from jax.experimental import pallas as pl
from jax.experimental.pallas import tpu as pltpu


def _round_up(n, m):
    return ((n + m - 1) // m) * m


def _pick_batch_tile(B):
    """Largest tile <= 1024 that still gives >= 2 grid steps (megacore on v7x).

    Small batches that can't fill two 256-row tiles run as a single tile
    covering the whole (16-aligned) batch.
    """
    B = max(B, 1)
    for tile in (1024, 512, 256):
        if B >= 2 * tile:
            return tile
    return _round_up(B, 16)


# ----------------------------- Pallas kernel --------------------------------

def mlp_kernel(x_ref,
               w1_ref, b1_ref, w2_ref, b2_ref, w3_ref, b3_ref,
               w4_ref, b4_ref, w5_ref, b5_ref, w6_ref, b6_ref,
               o_ref):
    """Fused forward: (relu o linear) x5 -> sigmoid o linear.

    All weights (bf16, lane-padded) + the current batch tile live in VMEM; the
    whole layer chain runs on the MXU inside one grid step. Padded columns/rows
    are zero, so they contribute nothing and are sliced off in the wrapper.
    """
    # TODO(synk): dropout is a no-op (eval semantics); training-mode dropout
    # would use pltpu.prng_seed + pltpu.prng_random_bits per tile.

    def linear_relu(h_bf16, w_ref, b_ref):
        z = jnp.dot(h_bf16, w_ref[...], preferred_element_type=jnp.float32)
        z = z + b_ref[...]
        return jnp.maximum(z, 0.0).astype(jnp.bfloat16)

    h = x_ref[...]                               # bf16 (batch_tile, input_dim)
    h = linear_relu(h, w1_ref, b1_ref)
    h = linear_relu(h, w2_ref, b2_ref)
    h = linear_relu(h, w3_ref, b3_ref)
    h = linear_relu(h, w4_ref, b4_ref)
    h = linear_relu(h, w5_ref, b5_ref)

    z = jnp.dot(h, w6_ref[...], preferred_element_type=jnp.float32) + b6_ref[...]
    o_ref[...] = jax.nn.sigmoid(z).astype(o_ref.dtype)   # bf16, lane-dense 128


# ----------------------------- wrapper ---------------------------------------

def mlp_forward(x, prepared_params, output_dim, *, batch_tile=None):
    """x: (B, input_dim) float32.  prepared_params: list of (W_bf16 padded, b_f32 padded)."""
    B, d_in = x.shape
    in_dim = prepared_params[0][0].shape[0]      # == d_in (layer-1 K unpadded)
    out_pad = prepared_params[-1][0].shape[1]
    assert in_dim == d_in

    if batch_tile is None:
        batch_tile = _pick_batch_tile(B)
    assert batch_tile % 16 == 0, "bf16 sublane tile is 16"

    # Pad only the batch dimension; feature dim of x is left at input_dim.
    B_pad = _round_up(max(B, 1), batch_tile)
    x_p = jnp.zeros((B_pad, d_in), jnp.bfloat16)
    x_p = x_p.at[:B, :].set(x.astype(jnp.bfloat16))

    flat_params = []
    for w, b in prepared_params:
        flat_params.extend([w, b])

    # x / output tiled over the batch; weights & biases replicated (block = full array,
    # constant index_map -> fetched once, VMEM-resident across grid steps).
    x_spec = pl.BlockSpec((batch_tile, d_in), lambda i: (i, 0))
    out_spec = pl.BlockSpec((batch_tile, out_pad), lambda i: (i, 0))
    param_specs = []
    for w, b in prepared_params:
        param_specs.append(pl.BlockSpec(w.shape, lambda i: (0, 0)))
        param_specs.append(pl.BlockSpec(b.shape, lambda i: (0, 0)))

    # Advisory cost estimate for XLA scheduling.
    flops = 2 * B_pad * sum(w.shape[0] * w.shape[1] for w, _ in prepared_params)
    bytes_accessed = (B_pad * d_in * 2 + B_pad * out_pad * 2
                      + sum(w.size * 2 + b.size * 4 for w, b in prepared_params))
    cost = pl.CostEstimate(flops=flops,
                           transcendentals=B_pad * out_pad,
                           bytes_accessed=bytes_accessed)

    y_pad = pl.pallas_call(
        mlp_kernel,
        out_shape=jax.ShapeDtypeStruct((B_pad, out_pad), jnp.bfloat16),
        grid_spec=pltpu.PrefetchScalarGridSpec(
            num_scalar_prefetch=0,
            grid=(B_pad // batch_tile,),
            in_specs=[x_spec] + param_specs,
            out_specs=out_spec,
        ),
        compiler_params=pltpu.CompilerParams(
            dimension_semantics=("parallel",),
            vmem_limit_bytes=32 * 1024 * 1024),
        cost_estimate=cost,
    )(x_p, *flat_params)

    # Only the first B rows / output_dim columns are real data; padded output
    # columns hold sigmoid(0)=0.5 garbage and must not be consumed directly.
    return y_pad[:B, :output_dim].astype(jnp.float32)


# ----------------------------- parameter init / prep -------------------------

def init_params(key, input_dim, output_dim):
    """Init matching nn.Linear's U(-1/sqrt(fan_in), 1/sqrt(fan_in)).

    Logical fp32 weights stored as (in_features, out_features); biases (out,).
    """
    dims = [input_dim, 512, 256, 128, 64, 32, output_dim]
    params = []
    for i in range(6):
        fan_in, fan_out = dims[i], dims[i + 1]
        key, kw, kb = jax.random.split(key, 3)
        bound = 1.0 / (fan_in ** 0.5)
        w = jax.random.uniform(kw, (fan_in, fan_out), jnp.float32, -bound, bound)
        b = jax.random.uniform(kb, (fan_out,), jnp.float32, -bound, bound)
        params.append((w, b))
    return params


def prepare_params(params):
    """Pad weights for lane-dense MXU tiles and cast to bf16.

    fan_out is padded to a multiple of 128 for every layer (lane-dense stores /
    activations). fan_in is left UNPADDED for layer 1 (no redundant K work on
    the input matmul) and padded to 128-multiples for layers 2..6 so it matches
    the previous layer's padded output width. Padded rows/cols are zero and
    ReLU(0)=0, so padded activation lanes stay exactly zero through the net.
    Biases are f32 (1, fan_out_padded).
    """
    prepped = []
    for i, (w, b) in enumerate(params):
        fi, fo = w.shape
        fi_p = fi if i == 0 else _round_up(fi, 128)
        fo_p = _round_up(fo, 128)
        w_p = jnp.zeros((fi_p, fo_p), jnp.bfloat16).at[:fi, :fo].set(
            w.astype(jnp.bfloat16))
        b_p = jnp.zeros((1, fo_p), jnp.float32).at[0, :fo].set(b)
        prepped.append((w_p, b_p))
    return prepped


# Pure-JAX reference using the same padded bf16 weights / bf16 activation rounding.
def mlp_ref(x, prepared_params, output_dim):
    h = x.astype(jnp.bfloat16)
    out = None
    for i, (w, b) in enumerate(prepared_params):
        z = jnp.dot(h.astype(jnp.float32), w.astype(jnp.float32)) + b
        if i == len(prepared_params) - 1:
            out = jax.nn.sigmoid(z)
        else:
            h = jnp.maximum(z, 0.0).astype(jnp.bfloat16)
    return out[:, :output_dim]


if __name__ == "__main__":
    key = jax.random.PRNGKey(0)
    input_dim, output_dim, batch = 32, 16, 512   # tile=256 -> grid of 2 steps

    key, kx = jax.random.split(key)
    x = jax.random.normal(kx, (batch, input_dim), jnp.float32)

    params = init_params(key, input_dim, output_dim)
    prepared = prepare_params(params)

    out = mlp_forward(x, prepared, output_dim)
    out = jax.block_until_ready(out)

    ref = mlp_ref(x, prepared, output_dim)
    assert out.shape == (batch, output_dim)
    assert bool(jnp.all(jnp.isfinite(out)))
    assert jnp.allclose(out, ref, atol=1.5e-2, rtol=1.5e-2), "mismatch vs reference"

    print("KERNEL_OK")
</pallas_src>

<mosaic_0001>
module attributes {stable_mosaic.version = 11 : i64} {
  func.func @mlp_kernel(%arg0: i32, %arg1: memref<256x32xbf16, #tpu.memory_space<vmem>>, %arg2: memref<32x512xbf16, #tpu.memory_space<vmem>>, %arg3: memref<1x512xf32, #tpu.memory_space<vmem>>, %arg4: memref<512x256xbf16, #tpu.memory_space<vmem>>, %arg5: memref<1x256xf32, #tpu.memory_space<vmem>>, %arg6: memref<256x128xbf16, #tpu.memory_space<vmem>>, %arg7: memref<1x128xf32, #tpu.memory_space<vmem>>, %arg8: memref<128x128xbf16, #tpu.memory_space<vmem>>, %arg9: memref<1x128xf32, #tpu.memory_space<vmem>>, %arg10: memref<128x128xbf16, #tpu.memory_space<vmem>>, %arg11: memref<1x128xf32, #tpu.memory_space<vmem>>, %arg12: memref<128x128xbf16, #tpu.memory_space<vmem>>, %arg13: memref<1x128xf32, #tpu.memory_space<vmem>>, %arg14: memref<256x128xbf16, #tpu.memory_space<vmem>>) attributes {dimension_semantics = [#tpu.dimension_semantics<parallel>], iteration_bounds = array<i64: 2>, scalar_prefetch = 0 : i64, scratch_operands = 0 : i64, tpu.core_type = #tpu.core_type<tc>, window_params = [{transform_indices = @transform_0, window_bounds = array<i64: 256, 32>}, {pipeline_mode = #tpu.pipeline_mode<synchronous>, transform_indices = @transform_1, window_bounds = array<i64: 32, 512>}, {pipeline_mode = #tpu.pipeline_mode<synchronous>, transform_indices = @transform_2, window_bounds = array<i64: 1, 512>}, {pipeline_mode = #tpu.pipeline_mode<synchronous>, transform_indices = @transform_3, window_bounds = array<i64: 512, 256>}, {pipeline_mode = #tpu.pipeline_mode<synchronous>, transform_indices = @transform_4, window_bounds = array<i64: 1, 256>}, {pipeline_mode = #tpu.pipeline_mode<synchronous>, transform_indices = @transform_5, window_bounds = array<i64: 256, 128>}, {pipeline_mode = #tpu.pipeline_mode<synchronous>, transform_indices = @transform_6, window_bounds = array<i64: 1, 128>}, {pipeline_mode = #tpu.pipeline_mode<synchronous>, transform_indices = @transform_7, window_bounds = array<i64: 128, 128>}, {pipeline_mode = #tpu.pipeline_mode<synchronous>, transform_indices = @transform_8, window_bounds = array<i64: 1, 128>}, {pipeline_mode = #tpu.pipeline_mode<synchronous>, transform_indices = @transform_9, window_bounds = array<i64: 128, 128>}, {pipeline_mode = #tpu.pipeline_mode<synchronous>, transform_indices = @transform_10, window_bounds = array<i64: 1, 128>}, {pipeline_mode = #tpu.pipeline_mode<synchronous>, transform_indices = @transform_11, window_bounds = array<i64: 128, 128>}, {pipeline_mode = #tpu.pipeline_mode<synchronous>, transform_indices = @transform_12, window_bounds = array<i64: 1, 128>}, {transform_indices = @transform_13, window_bounds = array<i64: 256, 128>}]} {
    %c0 = arith.constant 0 : index
    %c0_0 = arith.constant 0 : index
    %0 = vector.load %arg1[%c0, %c0_0] : memref<256x32xbf16, #tpu.memory_space<vmem>>, vector<256x32xbf16>
    %c0_1 = arith.constant 0 : index
    %c0_2 = arith.constant 0 : index
    %1 = vector.load %arg2[%c0_1, %c0_2] : memref<32x512xbf16, #tpu.memory_space<vmem>>, vector<32x512xbf16>
    %cst = arith.constant dense<0.000000e+00> : vector<256x512xf32>
    %2 = tpu.matmul %0, %1, %cst {dimension_numbers = #tpu.dot_dimension_numbers<[1], [0], [0], [1], [0, 0, 1, 1], [], []>} : vector<256x32xbf16>, vector<32x512xbf16>, vector<256x512xf32> -> vector<256x512xf32>
    %c0_3 = arith.constant 0 : index
    %c0_4 = arith.constant 0 : index
    %3 = vector.load %arg3[%c0_3, %c0_4] : memref<1x512xf32, #tpu.memory_space<vmem>>, vector<1x512xf32>
    %4 = vector.broadcast %3 : vector<1x512xf32> to vector<256x512xf32>
    %5 = arith.addf %2, %4 : vector<256x512xf32>
    %cst_5 = arith.constant 0.000000e+00 : f32
    %6 = vector.broadcast %cst_5 : f32 to vector<256x512xf32>
    %7 = arith.maximumf %5, %6 : vector<256x512xf32>
    %8 = arith.truncf %7 : vector<256x512xf32> to vector<256x512xbf16>
    %c0_6 = arith.constant 0 : index
    %c0_7 = arith.constant 0 : index
    %9 = vector.load %arg4[%c0_6, %c0_7] : memref<512x256xbf16, #tpu.memory_space<vmem>>, vector<512x256xbf16>
    %cst_8 = arith.constant dense<0.000000e+00> : vector<256x256xf32>
    %10 = tpu.matmul %8, %9, %cst_8 {dimension_numbers = #tpu.dot_dimension_numbers<[1], [0], [0], [1], [0, 0, 1, 1], [], []>} : vector<256x512xbf16>, vector<512x256xbf16>, vector<256x256xf32> -> vector<256x256xf32>
    %c0_9 = arith.constant 0 : index
    %c0_10 = arith.constant 0 : index
    %11 = vector.load %arg5[%c0_9, %c0_10] : memref<1x256xf32, #tpu.memory_space<vmem>>, vector<1x256xf32>
    %12 = vector.broadcast %11 : vector<1x256xf32> to vector<256x256xf32>
    %13 = arith.addf %10, %12 : vector<256x256xf32>
    %cst_11 = arith.constant 0.000000e+00 : f32
    %14 = vector.broadcast %cst_11 : f32 to vector<256x256xf32>
    %15 = arith.maximumf %13, %14 : vector<256x256xf32>
    %16 = arith.truncf %15 : vector<256x256xf32> to vector<256x256xbf16>
    %c0_12 = arith.constant 0 : index
    %c0_13 = arith.constant 0 : index
    %17 = vector.load %arg6[%c0_12, %c0_13] : memref<256x128xbf16, #tpu.memory_space<vmem>>, vector<256x128xbf16>
    %cst_14 = arith.constant dense<0.000000e+00> : vector<256x128xf32>
    %18 = tpu.matmul %16, %17, %cst_14 {dimension_numbers = #tpu.dot_dimension_numbers<[1], [0], [0], [1], [0, 0, 1, 1], [], []>} : vector<256x256xbf16>, vector<256x128xbf16>, vector<256x128xf32> -> vector<256x128xf32>
    %c0_15 = arith.constant 0 : index
    %c0_16 = arith.constant 0 : index
    %19 = vector.load %arg7[%c0_15, %c0_16] : memref<1x128xf32, #tpu.memory_space<vmem>>, vector<1x128xf32>
    %20 = vector.broadcast %19 : vector<1x128xf32> to vector<256x128xf32>
    %21 = arith.addf %18, %20 : vector<256x128xf32>
    %cst_17 = arith.constant 0.000000e+00 : f32
    %22 = vector.broadcast %cst_17 : f32 to vector<256x128xf32>
    %23 = arith.maximumf %21, %22 : vector<256x128xf32>
    %24 = arith.truncf %23 : vector<256x128xf32> to vector<256x128xbf16>
    %c0_18 = arith.constant 0 : index
    %c0_19 = arith.constant 0 : index
    %25 = vector.load %arg8[%c0_18, %c0_19] : memref<128x128xbf16, #tpu.memory_space<vmem>>, vector<128x128xbf16>
    %cst_20 = arith.constant dense<0.000000e+00> : vector<256x128xf32>
    %26 = tpu.matmul %24, %25, %cst_20 {dimension_numbers = #tpu.dot_dimension_numbers<[1], [0], [0], [1], [0, 0, 1, 1], [], []>} : vector<256x128xbf16>, vector<128x128xbf16>, vector<256x128xf32> -> vector<256x128xf32>
    %c0_21 = arith.constant 0 : index
    %c0_22 = arith.constant 0 : index
    %27 = vector.load %arg9[%c0_21, %c0_22] : memref<1x128xf32, #tpu.memory_space<vmem>>, vector<1x128xf32>
    %28 = vector.broadcast %27 : vector<1x128xf32> to vector<256x128xf32>
    %29 = arith.addf %26, %28 : vector<256x128xf32>
    %cst_23 = arith.constant 0.000000e+00 : f32
    %30 = vector.broadcast %cst_23 : f32 to vector<256x128xf32>
    %31 = arith.maximumf %29, %30 : vector<256x128xf32>
    %32 = arith.truncf %31 : vector<256x128xf32> to vector<256x128xbf16>
    %c0_24 = arith.constant 0 : index
    %c0_25 = arith.constant 0 : index
    %33 = vector.load %arg10[%c0_24, %c0_25] : memref<128x128xbf16, #tpu.memory_space<vmem>>, vector<128x128xbf16>
    %cst_26 = arith.constant dense<0.000000e+00> : vector<256x128xf32>
    %34 = tpu.matmul %32, %33, %cst_26 {dimension_numbers = #tpu.dot_dimension_numbers<[1], [0], [0], [1], [0, 0, 1, 1], [], []>} : vector<256x128xbf16>, vector<128x128xbf16>, vector<256x128xf32> -> vector<256x128xf32>
    %c0_27 = arith.constant 0 : index
    %c0_28 = arith.constant 0 : index
    %35 = vector.load %arg11[%c0_27, %c0_28] : memref<1x128xf32, #tpu.memory_space<vmem>>, vector<1x128xf32>
    %36 = vector.broadcast %35 : vector<1x128xf32> to vector<256x128xf32>
    %37 = arith.addf %34, %36 : vector<256x128xf32>
    %cst_29 = arith.constant 0.000000e+00 : f32
    %38 = vector.broadcast %cst_29 : f32 to vector<256x128xf32>
    %39 = arith.maximumf %37, %38 : vector<256x128xf32>
    %40 = arith.truncf %39 : vector<256x128xf32> to vector<256x128xbf16>
    %c0_30 = arith.constant 0 : index
    %c0_31 = arith.constant 0 : index
    %41 = vector.load %arg12[%c0_30, %c0_31] : memref<128x128xbf16, #tpu.memory_space<vmem>>, vector<128x128xbf16>
    %cst_32 = arith.constant dense<0.000000e+00> : vector<256x128xf32>
    %42 = tpu.matmul %40, %41, %cst_32 {dimension_numbers = #tpu.dot_dimension_numbers<[1], [0], [0], [1], [0, 0, 1, 1], [], []>} : vector<256x128xbf16>, vector<128x128xbf16>, vector<256x128xf32> -> vector<256x128xf32>
    %c0_33 = arith.constant 0 : index
    %c0_34 = arith.constant 0 : index
    %43 = vector.load %arg13[%c0_33, %c0_34] : memref<1x128xf32, #tpu.memory_space<vmem>>, vector<1x128xf32>
    %44 = vector.broadcast %43 : vector<1x128xf32> to vector<256x128xf32>
    %45 = arith.addf %42, %44 : vector<256x128xf32>
    %46 = arith.negf %45 : vector<256x128xf32>
    %47 = math.exp %46 : vector<256x128xf32>
    %cst_35 = arith.constant 1.000000e+00 : f32
    %48 = vector.broadcast %cst_35 : f32 to vector<256x128xf32>
    %49 = arith.addf %48, %47 : vector<256x128xf32>
    %50 = arith.divf %48, %49 : vector<256x128xf32>
    %51 = arith.truncf %50 : vector<256x128xf32> to vector<256x128xbf16>
    %c0_36 = arith.constant 0 : index
    %c0_37 = arith.constant 0 : index
    %52 = vector.load %arg14[%c0_36, %c0_37] : memref<256x128xbf16, #tpu.memory_space<vmem>>, vector<256x128xbf16>
    tpu.vector_store %arg14[%c0_36, %c0_37], %51 {strides = array<i32>} : memref<256x128xbf16, #tpu.memory_space<vmem>>, vector<256x128xbf16>,
    return
  }
  func.func @transform_0(%arg0: i32) -> (i32, i32) {
    %c0_i32 = arith.constant 0 : i32
    %c0_i32_0 = arith.constant 0 : i32
    return %arg0, %c0_i32 : i32, i32
  }
  func.func @transform_1(%arg0: i32) -> (i32, i32) {
    %c0_i32 = arith.constant 0 : i32
    %c0_i32_0 = arith.constant 0 : i32
    %c0_i32_1 = arith.constant 0 : i32
    return %c0_i32, %c0_i32_0 : i32, i32
  }
  func.func @transform_2(%arg0: i32) -> (i32, i32) {
    %c0_i32 = arith.constant 0 : i32
    %c0_i32_0 = arith.constant 0 : i32
    %c0_i32_1 = arith.constant 0 : i32
    return %c0_i32, %c0_i32_0 : i32, i32
  }
  func.func @transform_3(%arg0: i32) -> (i32, i32) {
    %c0_i32 = arith.constant 0 : i32
    %c0_i32_0 = arith.constant 0 : i32
    %c0_i32_1 = arith.constant 0 : i32
    return %c0_i32, %c0_i32_0 : i32, i32
  }
  func.func @transform_4(%arg0: i32) -> (i32, i32) {
    %c0_i32 = arith.constant 0 : i32
    %c0_i32_0 = arith.constant 0 : i32
    %c0_i32_1 = arith.constant 0 : i32
    return %c0_i32, %c0_i32_0 : i32, i32
  }
  func.func @transform_5(%arg0: i32) -> (i32, i32) {
    %c0_i32 = arith.constant 0 : i32
    %c0_i32_0 = arith.constant 0 : i32
    %c0_i32_1 = arith.constant 0 : i32
    return %c0_i32, %c0_i32_0 : i32, i32
  }
  func.func @transform_6(%arg0: i32) -> (i32, i32) {
    %c0_i32 = arith.constant 0 : i32
    %c0_i32_0 = arith.constant 0 : i32
    %c0_i32_1 = arith.constant 0 : i32
    return %c0_i32, %c0_i32_0 : i32, i32
  }
  func.func @transform_7(%arg0: i32) -> (i32, i32) {
    %c0_i32 = arith.constant 0 : i32
    %c0_i32_0 = arith.constant 0 : i32
    %c0_i32_1 = arith.constant 0 : i32
    return %c0_i32, %c0_i32_0 : i32, i32
  }
  func.func @transform_8(%arg0: i32) -> (i32, i32) {
    %c0_i32 = arith.constant 0 : i32
    %c0_i32_0 = arith.constant 0 : i32
    %c0_i32_1 = arith.constant 0 : i32
    return %c0_i32, %c0_i32_0 : i32, i32
  }
  func.func @transform_9(%arg0: i32) -> (i32, i32) {
    %c0_i32 = arith.constant 0 : i32
    %c0_i32_0 = arith.constant 0 : i32
    %c0_i32_1 = arith.constant 0 : i32
    return %c0_i32, %c0_i32_0 : i32, i32
  }
  func.func @transform_10(%arg0: i32) -> (i32, i32) {
    %c0_i32 = arith.constant 0 : i32
    %c0_i32_0 = arith.constant 0 : i32
    %c0_i32_1 = arith.constant 0 : i32
    return %c0_i32, %c0_i32_0 : i32, i32
  }
  func.func @transform_11(%arg0: i32) -> (i32, i32) {
    %c0_i32 = arith.constant 0 : i32
    %c0_i32_0 = arith.constant 0 : i32
    %c0_i32_1 = arith.constant 0 : i32
    return %c0_i32, %c0_i32_0 : i32, i32
  }
  func.func @transform_12(%arg0: i32) -> (i32, i32) {
    %c0_i32 = arith.constant 0 : i32
    %c0_i32_0 = arith.constant 0 : i32
    %c0_i32_1 = arith.constant 0 : i32
    return %c0_i32, %c0_i32_0 : i32, i32
  }
  func.func @transform_13(%arg0: i32) -> (i32, i32) {
    %c0_i32 = arith.constant 0 : i32
    %c0_i32_0 = arith.constant 0 : i32
    return %arg0, %c0_i32 : i32, i32
  }
}

</mosaic_0001>

<llo_original>
// kernel: tpu_custom_call.1
$region0: #{tpu_custom_call.1}
  #allocation0 [shape = 'u32[]', space=smem, size = 0x4, offset = 0x4, fixed_abs, tag = 'smem constant byte address 0x4 - core index']
  #allocation1 [shape = 'u32[144,128]{1,0:T(1,128)}', space=vmem, size = 0x12000, scoped, tag = 'internal scratch']
  %s0 = inlined_call_operand.vmem [shape: bf16[512,32], index: 0, kind: input, shape index: {}]
  %s1 = inlined_call_operand.vmem [shape: bf16[32,512], index: 1, kind: input, shape index: {}]
  %s2 = inlined_call_operand.vmem [shape: f32[1,512], index: 2, kind: input, shape index: {}]
  %s3 = inlined_call_operand.hbm [shape: bf16[512,256], index: 3, kind: input, shape index: {}]
  %s4 = inlined_call_operand.vmem [shape: f32[1,256], index: 4, kind: input, shape index: {}]
  %s5 = inlined_call_operand.vmem [shape: bf16[256,128], index: 5, kind: input, shape index: {}]
  %s6 = inlined_call_operand.vmem [shape: f32[1,128], index: 6, kind: input, shape index: {}]
  %s7 = inlined_call_operand.vmem [shape: bf16[128,128], index: 7, kind: input, shape index: {}]
  %s8 = inlined_call_operand.vmem [shape: f32[1,128], index: 8, kind: input, shape index: {}]
  %s9 = inlined_call_operand.vmem [shape: bf16[128,128], index: 9, kind: input, shape index: {}]
  %s10 = inlined_call_operand.vmem [shape: f32[1,128], index: 10, kind: input, shape index: {}]
  %s11 = inlined_call_operand.hbm [shape: bf16[128,128], index: 11, kind: input, shape index: {}]
  %s12 = inlined_call_operand.vmem [shape: f32[1,128], index: 12, kind: input, shape index: {}]
  %s13 = inlined_call_operand.hbm [shape: bf16[512,128], index: 13, kind: output, shape index: {}]
  %s14 = sld [smem:[#allocation0]]
  $region93: #{tpu_custom_call.1} parent=0
    _
  %s16 = ssub.s32 1, %s14
  %s17 = scalar_select 0, %s16, %s14
  $region1: #{tpu_custom_call.1} parent=0
    #allocation2 [shape = 'u8[262144]{0}', space=vmem, size = 0x40000, scoped, tag = 'input window, operand 3, single buffered']
    #allocation3 [shape = 's32[2]{0}', space=sflag, size = 0x8, scoped, tag = 'scoped memory for tpu_custom_call.1']
    #allocation4 [shape = 's32[2]{0}', space=sflag, size = 0x8, scoped, tag = 'scoped memory for tpu_custom_call.1']
    #allocation5 [shape = 'u8[32768]{0}', space=vmem, size = 0x8000, scoped, tag = 'input window, operand 11, single buffered']
    #allocation6 [shape = 's32[1]{0}', space=sflag, size = 0x4, scoped, tag = 'scoped memory for tpu_custom_call.1']
    #allocation7 [shape = 'u8[131072]{0}', space=vmem, size = 0x20000, scoped, tag = 'output window, operand 0']
    %18 = vsyncpa [#allocation3], 0
    %19 = vsyncpa [#allocation6], 0
    %20 = vsyncpa [#allocation4], 0
    %s21 = scalar_lea.sflag [#allocation4], 1
    %22 = vsyncpa %s21, 0
    loop: start=0, step=1, limit=4
    $region2: #{tpu_custom_call.1} parent=1 // loop_pre_header
      _
    $region3: #{tpu_custom_call.1} parent=1 // loop_header
      %s24 = sphi 0, %s28
      %p25 = scmp.ge.s32.totalorder %s24, 4
      %s34 = sphi 0, %s36
      %s37 = sphi 0, %s34
      %s38 = sphi 0, %s37
      %s54 = sphi 0, %s38
      %s58 = sphi 0, %s58
      %s60 = sphi 0, %s58
      %s61 = sphi 0, %s60
      %s75 = sphi 0, %s61
      %s79 = sphi 0, %s79
      %s81 = sphi 0, %s79
      %s82 = sphi 0, %s81
      %s96 = sphi 0, %s82
      %s100 = sphi 0, %s100
      %s102 = sphi 0, %s100
      %s103 = sphi 0, %s102
      %s117 = sphi 0, %s103
      %s121 = sphi 0, %s121
      %s123 = sphi 0, %s121
      %s124 = sphi 0, %s123
      %s138 = sphi 0, %s124
      %s142 = sphi 0, %s142
      %s144 = sphi 0, %s142
      %s145 = sphi 0, %s144
      %s159 = sphi 0, %s145
      %s163 = sphi 0, %s163
      %s165 = sphi 0, %s163
      %s166 = sphi 0, %s165
      %s180 = sphi 0, %s166
      %s184 = sphi 0, %s184
      %s186 = sphi 0, %s184
      %s187 = sphi 0, %s186
      %s201 = sphi 0, %s187
      %s205 = sphi 0, %s205
      %s207 = sphi 0, %s205
      %s208 = sphi 0, %s207
      %s222 = sphi 0, %s208
      %s226 = sphi 0, %s226
      %s228 = sphi 0, %s226
      %s229 = sphi 0, %s228
      %s243 = sphi 0, %s229
      %s247 = sphi 0, %s247
      %s249 = sphi 0, %s247
      %s250 = sphi 0, %s249
      %s264 = sphi 0, %s250
      %s268 = sphi 0, %s268
      %s270 = sphi 0, %s268
      %s271 = sphi 0, %s270
      %s285 = sphi 0, %s271
      %s289 = sphi 0, %s289
      %s291 = sphi 0, %s289
      %s292 = sphi 0, %s291
      %s306 = sphi 0, %s292
      %s312 = sphi 0, %s314
      %s315 = sphi 0, %s312
      %s316 = sphi 0, %s315
      %s332 = sphi 0, %s316
    $region4: #{tpu_custom_call.1} parent=1 // loop_header_branch
      %27 = sbr.rel (%p25) target = $region8
    $region5: #{tpu_custom_call.1} parent=1 // loop_body
      %s29 = ssub.s32 %s24, 1
      %s30 = ssub.s32 %s24, 2
      %s31 = sadd.s32 %s24, 1
      %s32 = ssub.s32 %s24, %s31
      %p33 = scmp.eq.s32.totalorder %s32, 0
      %s35 = sadd.s32 %s34, 1
      %s36 = scalar_select %p33, %s34, %s35
      %p39 = pneg %p33
      %p40 = scmp.eq.s32.totalorder %s24, 1
      %p41 = por %p39, %p40
      %p42 = scmp.ne.s32.totalorder %s34, %s37
      %p43 = scmp.eq.s32.totalorder %s24, 0
      %p44 = por %p42, %p43
      %p45 = scmp.ne.s32.totalorder %s34, %s37
      %p46 = scmp.eq.s32.totalorder %s29, 1
      %p47 = por %p45, %p46
      %p48 = scmp.ne.s32.totalorder %s37, %s38
      %p49 = scmp.eq.s32.totalorder %s29, 0
      %p50 = por %p48, %p49
      %p51 = scmp.ne.s32.totalorder %s37, %s38
      %p52 = scmp.eq.s32.totalorder %s30, 1
      %p53 = por %p51, %p52
      %p55 = scmp.ne.s32.totalorder %s38, %s54
      %p56 = scmp.eq.s32.totalorder %s30, 0
      %p57 = por %p55, %p56
      %s59 = sadd.s32 %s58, 1
      %p62 = scmp.eq.s32.totalorder %s24, 1
      %p63 = scmp.ne.s32.totalorder %s58, %s60
      %p64 = scmp.eq.s32.totalorder %s24, 0
      %p65 = por %p63, %p64
      %p66 = scmp.ne.s32.totalorder %s58, %s60
      %p67 = scmp.eq.s32.totalorder %s29, 1
      %p68 = por %p66, %p67
      %p69 = scmp.ne.s32.totalorder %s60, %s61
      %p70 = scmp.eq.s32.totalorder %s29, 0
      %p71 = por %p69, %p70
      %p72 = scmp.ne.s32.totalorder %s60, %s61
      %p73 = scmp.eq.s32.totalorder %s30, 1
      %p74 = por %p72, %p73
      %p76 = scmp.ne.s32.totalorder %s61, %s75
      %p77 = scmp.eq.s32.totalorder %s30, 0
      %p78 = por %p76, %p77
      %s80 = sadd.s32 %s79, 1
      %p83 = scmp.eq.s32.totalorder %s24, 1
      %p84 = scmp.ne.s32.totalorder %s79, %s81
      %p85 = scmp.eq.s32.totalorder %s24, 0
      %p86 = por %p84, %p85
      %p87 = scmp.ne.s32.totalorder %s79, %s81
      %p88 = scmp.eq.s32.totalorder %s29, 1
      %p89 = por %p87, %p88
      %p90 = scmp.ne.s32.totalorder %s81, %s82
      %p91 = scmp.eq.s32.totalorder %s29, 0
      %p92 = por %p90, %p91
      %p93 = scmp.ne.s32.totalorder %s81, %s82
      %p94 = scmp.eq.s32.totalorder %s30, 1
      %p95 = por %p93, %p94
      %p97 = scmp.ne.s32.totalorder %s82, %s96
      %p98 = scmp.eq.s32.totalorder %s30, 0
      %p99 = por %p97, %p98
      %s101 = sadd.s32 %s100, 1
      %p104 = scmp.eq.s32.totalorder %s24, 1
      %p105 = scmp.ne.s32.totalorder %s100, %s102
      %p106 = scmp.eq.s32.totalorder %s24, 0
      %p107 = por %p105, %p106
      %p108 = scmp.ne.s32.totalorder %s100, %s102
      %p109 = scmp.eq.s32.totalorder %s29, 1
      %p110 = por %p108, %p109
      %p111 = scmp.ne.s32.totalorder %s102, %s103
      %p112 = scmp.eq.s32.totalorder %s29, 0
      %p113 = por %p111, %p112
      %p114 = scmp.ne.s32.totalorder %s102, %s103
      %p115 = scmp.eq.s32.totalorder %s30, 1
      %p116 = por %p114, %p115
      %p118 = scmp.ne.s32.totalorder %s103, %s117
      %p119 = scmp.eq.s32.totalorder %s30, 0
      %p120 = por %p118, %p119
      %s122 = sadd.s32 %s121, 1
      %p125 = scmp.eq.s32.totalorder %s24, 1
      %p126 = scmp.ne.s32.totalorder %s121, %s123
      %p127 = scmp.eq.s32.totalorder %s24, 0
      %p128 = por %p126, %p127
      %p129 = scmp.ne.s32.totalorder %s121, %s123
      %p130 = scmp.eq.s32.totalorder %s29, 1
      %p131 = por %p129, %p130
      %p132 = scmp.ne.s32.totalorder %s123, %s124
      %p133 = scmp.eq.s32.totalorder %s29, 0
      %p134 = por %p132, %p133
      %p135 = scmp.ne.s32.totalorder %s123, %s124
      %p136 = scmp.eq.s32.totalorder %s30, 1
      %p137 = por %p135, %p136
      %p139 = scmp.ne.s32.totalorder %s124, %s138
      %p140 = scmp.eq.s32.totalorder %s30, 0
      %p141 = por %p139, %p140
      %s143 = sadd.s32 %s142, 1
      %p146 = scmp.eq.s32.totalorder %s24, 1
      %p147 = scmp.ne.s32.totalorder %s142, %s144
      %p148 = scmp.eq.s32.totalorder %s24, 0
      %p149 = por %p147, %p148
      %p150 = scmp.ne.s32.totalorder %s142, %s144
      %p151 = scmp.eq.s32.totalorder %s29, 1
      %p152 = por %p150, %p151
      %p153 = scmp.ne.s32.totalorder %s144, %s145
      %p154 = scmp.eq.s32.totalorder %s29, 0
      %p155 = por %p153, %p154
      %p156 = scmp.ne.s32.totalorder %s144, %s145
      %p157 = scmp.eq.s32.totalorder %s30, 1
      %p158 = por %p156, %p157
      %p160 = scmp.ne.s32.totalorder %s145, %s159
      %p161 = scmp.eq.s32.totalorder %s30, 0
      %p162 = por %p160, %p161
      %s164 = sadd.s32 %s163, 1
      %p167 = scmp.eq.s32.totalorder %s24, 1
      %p168 = scmp.ne.s32.totalorder %s163, %s165
      %p169 = scmp.eq.s32.totalorder %s24, 0
      %p170 = por %p168, %p169
      %p171 = scmp.ne.s32.totalorder %s163, %s165
      %p172 = scmp.eq.s32.totalorder %s29, 1
      %p173 = por %p171, %p172
      %p174 = scmp.ne.s32.totalorder %s165, %s166
      %p175 = scmp.eq.s32.totalorder %s29, 0
      %p176 = por %p174, %p175
      %p177 = scmp.ne.s32.totalorder %s165, %s166
      %p178 = scmp.eq.s32.totalorder %s30, 1
      %p179 = por %p177, %p178
      %p181 = scmp.ne.s32.totalorder %s166, %s180
      %p182 = scmp.eq.s32.totalorder %s30, 0
      %p183 = por %p181, %p182
      %s185 = sadd.s32 %s184, 1
      %p188 = scmp.eq.s32.totalorder %s24, 1
      %p189 = scmp.ne.s32.totalorder %s184, %s186
      %p190 = scmp.eq.s32.totalorder %s24, 0
      %p191 = por %p189, %p190
      %p192 = scmp.ne.s32.totalorder %s184, %s186
      %p193 = scmp.eq.s32.totalorder %s29, 1
      %p194 = por %p192, %p193
      %p195 = scmp.ne.s32.totalorder %s186, %s187
      %p196 = scmp.eq.s32.totalorder %s29, 0
      %p197 = por %p195, %p196
      %p198 = scmp.ne.s32.totalorder %s186, %s187
      %p199 = scmp.eq.s32.totalorder %s30, 1
      %p200 = por %p198, %p199
      %p202 = scmp.ne.s32.totalorder %s187, %s201
      %p203 = scmp.eq.s32.totalorder %s30, 0
      %p204 = por %p202, %p203
      %s206 = sadd.s32 %s205, 1
      %p209 = scmp.eq.s32.totalorder %s24, 1
      %p210 = scmp.ne.s32.totalorder %s205, %s207
      %p211 = scmp.eq.s32.totalorder %s24, 0
      %p212 = por %p210, %p211
      %p213 = scmp.ne.s32.totalorder %s205, %s207
      %p214 = scmp.eq.s32.totalorder %s29, 1
      %p215 = por %p213, %p214
      %p216 = scmp.ne.s32.totalorder %s207, %s208
      %p217 = scmp.eq.s32.totalorder %s29, 0
      %p218 = por %p216, %p217
      %p219 = scmp.ne.s32.totalorder %s207, %s208
      %p220 = scmp.eq.s32.totalorder %s30, 1
      %p221 = por %p219, %p220
      %p223 = scmp.ne.s32.totalorder %s208, %s222
      %p224 = scmp.eq.s32.totalorder %s30, 0
      %p225 = por %p223, %p224
      %s227 = sadd.s32 %s226, 1
      %p230 = scmp.eq.s32.totalorder %s24, 1
      %p231 = scmp.ne.s32.totalorder %s226, %s228
      %p232 = scmp.eq.s32.totalorder %s24, 0
      %p233 = por %p231, %p232
      %p234 = scmp.ne.s32.totalorder %s226, %s228
      %p235 = scmp.eq.s32.totalorder %s29, 1
      %p236 = por %p234, %p235
      %p237 = scmp.ne.s32.totalorder %s228, %s229
      %p238 = scmp.eq.s32.totalorder %s29, 0
      %p239 = por %p237, %p238
      %p240 = scmp.ne.s32.totalorder %s228, %s229
      %p241 = scmp.eq.s32.totalorder %s30, 1
      %p242 = por %p240, %p241
      %p244 = scmp.ne.s32.totalorder %s229, %s243
      %p245 = scmp.eq.s32.totalorder %s30, 0
      %p246 = por %p244, %p245
      %s248 = sadd.s32 %s247, 1
      %p251 = scmp.eq.s32.totalorder %s24, 1
      %p252 = scmp.ne.s32.totalorder %s247, %s249
      %p253 = scmp.eq.s32.totalorder %s24, 0
      %p254 = por %p252, %p253
      %p255 = scmp.ne.s32.totalorder %s247, %s249
      %p256 = scmp.eq.s32.totalorder %s29, 1
      %p257 = por %p255, %p256
      %p258 = scmp.ne.s32.totalorder %s249, %s250
      %p259 = scmp.eq.s32.totalorder %s29, 0
      %p260 = por %p258, %p259
      %p261 = scmp.ne.s32.totalorder %s249, %s250
      %p262 = scmp.eq.s32.totalorder %s30, 1
      %p263 = por %p261, %p262
      %p265 = scmp.ne.s32.totalorder %s250, %s264
      %p266 = scmp.eq.s32.totalorder %s30, 0
      %p267 = por %p265, %p266
      %s269 = sadd.s32 %s268, 1
      %p272 = scmp.eq.s32.totalorder %s24, 1
      %p273 = scmp.ne.s32.totalorder %s268, %s270
      %p274 = scmp.eq.s32.totalorder %s24, 0
      %p275 = por %p273, %p274
      %p276 = scmp.ne.s32.totalorder %s268, %s270
      %p277 = scmp.eq.s32.totalorder %s29, 1
      %p278 = por %p276, %p277
      %p279 = scmp.ne.s32.totalorder %s270, %s271
      %p280 = scmp.eq.s32.totalorder %s29, 0
      %p281 = por %p279, %p280
      %p282 = scmp.ne.s32.totalorder %s270, %s271
      %p283 = scmp.eq.s32.totalorder %s30, 1
      %p284 = por %p282, %p283
      %p286 = scmp.ne.s32.totalorder %s271, %s285
      %p287 = scmp.eq.s32.totalorder %s30, 0
      %p288 = por %p286, %p287
      %s290 = sadd.s32 %s289, 1
      %p293 = scmp.eq.s32.totalorder %s24, 1
      %p294 = scmp.ne.s32.totalorder %s289, %s291
      %p295 = scmp.eq.s32.totalorder %s24, 0
      %p296 = por %p294, %p295
      %p297 = scmp.ne.s32.totalorder %s289, %s291
      %p298 = scmp.eq.s32.totalorder %s29, 1
      %p299 = por %p297, %p298
      %p300 = scmp.ne.s32.totalorder %s291, %s292
      %p301 = scmp.eq.s32.totalorder %s29, 0
      %p302 = por %p300, %p301
      %p303 = scmp.ne.s32.totalorder %s291, %s292
      %p304 = scmp.eq.s32.totalorder %s30, 1
      %p305 = por %p303, %p304
      %p307 = scmp.ne.s32.totalorder %s292, %s306
      %p308 = scmp.eq.s32.totalorder %s30, 0
      %p309 = por %p307, %p308
      %s310 = ssub.s32 %s24, %s31
      %p311 = scmp.eq.s32.totalorder %s310, 0
      %s313 = sadd.s32 %s312, 1
      %s314 = scalar_select %p311, %s312, %s313
      %p317 = pneg %p311
      %p318 = scmp.eq.s32.totalorder %s24, 1
      %p319 = por %p317, %p318
      %p320 = scmp.ne.s32.totalorder %s312, %s315
      %p321 = scmp.eq.s32.totalorder %s24, 0
      %p322 = por %p320, %p321
      %p323 = scmp.ne.s32.totalorder %s312, %s315
      %p324 = scmp.eq.s32.totalorder %s29, 1
      %p325 = por %p323, %p324
      %p326 = scmp.ne.s32.totalorder %s315, %s316
      %p327 = scmp.eq.s32.totalorder %s29, 0
      %p328 = por %p326, %p327
      %p329 = scmp.ne.s32.totalorder %s315, %s316
      %p330 = scmp.eq.s32.totalorder %s30, 1
      %p331 = por %p329, %p330
      %p333 = scmp.ne.s32.totalorder %s316, %s332
      %p334 = scmp.eq.s32.totalorder %s30, 0
      %p335 = por %p333, %p334
      %p336 = scmp.le.s32.totalorder 1, %s24
      %p337 = scmp.lt.s32.totalorder %s24, 3
      %p338 = pnand %p336, %p337
      %p339 = pneg %p338
      // Predicated region
      $region9: #{tpu_custom_call.1} parent=5 // pred_check
        _
      $region10: #{tpu_custom_call.1} parent=5 // pred_check_branch
        %341 = sbr.rel (%p338) target = $region12
      $region11: #{tpu_custom_call.1} parent=5 // pred_region
        %s342 = ssub.s32 %s24, 1
        // Predicated region
        $region13: #{tpu_custom_call.1} parent=11 // pred_check
          %p343 = pneg %p71
        $region14: #{tpu_custom_call.1} parent=11 // pred_check_branch
          %345 = sbr.rel (%p343) target = $region16
        $region15: #{tpu_custom_call.1} parent=11 // pred_region
          _
        $region16: #{tpu_custom_call.1} parent=11 // pred_fallthru
          _
        // Predicated region
        $region17: #{tpu_custom_call.1} parent=11 // pred_check
          %p346 = pneg %p92
        $region18: #{tpu_custom_call.1} parent=11 // pred_check_branch
          %348 = sbr.rel (%p346) target = $region20
        $region19: #{tpu_custom_call.1} parent=11 // pred_region
          _
        $region20: #{tpu_custom_call.1} parent=11 // pred_fallthru
          _
        // Predicated region
        $region21: #{tpu_custom_call.1} parent=11 // pred_check
          %p349 = pneg %p113
        $region22: #{tpu_custom_call.1} parent=11 // pred_check_branch
          %351 = sbr.rel (%p349) target = $region24
        $region23: #{tpu_custom_call.1} parent=11 // pred_region
          %s353 = ssub.s32 8192, 8192
          %354 = vsyncadd [#allocation3], %s353
          %s355 = sshll.u32 [#allocation2], 4
          %s356 = int_to_ptr.vmem [resolvable:$true] %s355
          %361 = dma.hbm_to_vmem [thread:$0]  %s3, 8192, %s356, [#allocation3], 128, 128, 8
        $region24: #{tpu_custom_call.1} parent=11 // pred_fallthru
          _
        // Predicated region
        $region25: #{tpu_custom_call.1} parent=11 // pred_check
          %p362 = pneg %p134
        $region26: #{tpu_custom_call.1} parent=11 // pred_check_branch
          %364 = sbr.rel (%p362) target = $region28
        $region27: #{tpu_custom_call.1} parent=11 // pred_region
          _
        $region28: #{tpu_custom_call.1} parent=11 // pred_fallthru
          _
        // Predicated region
        $region29: #{tpu_custom_call.1} parent=11 // pred_check
          %p365 = pneg %p155
        $region30: #{tpu_custom_call.1} parent=11 // pred_check_branch
          %367 = sbr.rel (%p365) target = $region32
        $region31: #{tpu_custom_call.1} parent=11 // pred_region
          _
        $region32: #{tpu_custom_call.1} parent=11 // pred_fallthru
          _
        // Predicated region
        $region33: #{tpu_custom_call.1} parent=11 // pred_check
          %p368 = pneg %p176
        $region34: #{tpu_custom_call.1} parent=11 // pred_check_branch
          %370 = sbr.rel (%p368) target = $region36
        $region35: #{tpu_custom_call.1} parent=11 // pred_region
          _
        $region36: #{tpu_custom_call.1} parent=11 // pred_fallthru
          _
        // Predicated region
        $region37: #{tpu_custom_call.1} parent=11 // pred_check
          %p371 = pneg %p197
        $region38: #{tpu_custom_call.1} parent=11 // pred_check_branch
          %373 = sbr.rel (%p371) target = $region40
        $region39: #{tpu_custom_call.1} parent=11 // pred_region
          _
        $region40: #{tpu_custom_call.1} parent=11 // pred_fallthru
          _
        // Predicated region
        $region41: #{tpu_custom_call.1} parent=11 // pred_check
          %p374 = pneg %p218
        $region42: #{tpu_custom_call.1} parent=11 // pred_check_branch
          %376 = sbr.rel (%p374) target = $region44
        $region43: #{tpu_custom_call.1} parent=11 // pred_region
          _
        $region44: #{tpu_custom_call.1} parent=11 // pred_fallthru
          _
        // Predicated region
        $region45: #{tpu_custom_call.1} parent=11 // pred_check
          %p377 = pneg %p239
        $region46: #{tpu_custom_call.1} parent=11 // pred_check_branch
          %379 = sbr.rel (%p377) target = $region48
        $region47: #{tpu_custom_call.1} parent=11 // pred_region
          _
        $region48: #{tpu_custom_call.1} parent=11 // pred_fallthru
          _
        // Predicated region
        $region49: #{tpu_custom_call.1} parent=11 // pred_check
          %p380 = pneg %p260
        $region50: #{tpu_custom_call.1} parent=11 // pred_check_branch
          %382 = sbr.rel (%p380) target = $region52
        $region51: #{tpu_custom_call.1} parent=11 // pred_region
          _
        $region52: #{tpu_custom_call.1} parent=11 // pred_fallthru
          _
        // Predicated region
        $region53: #{tpu_custom_call.1} parent=11 // pred_check
          %p383 = pneg %p281
        $region54: #{tpu_custom_call.1} parent=11 // pred_check_branch
          %385 = sbr.rel (%p383) target = $region56
        $region55: #{tpu_custom_call.1} parent=11 // pred_region
          %s387 = ssub.s32 1024, 1024
          %388 = vsyncadd [#allocation6], %s387
          %s389 = sshll.u32 [#allocation5], 4
          %s390 = int_to_ptr.vmem [resolvable:$true] %s389
          %395 = dma.hbm_to_vmem [thread:$0]  %s11, 1024, %s390, [#allocation6], 64, 64, 4
        $region56: #{tpu_custom_call.1} parent=11 // pred_fallthru
          _
        // Predicated region
        $region57: #{tpu_custom_call.1} parent=11 // pred_check
          %p396 = pneg %p302
        $region58: #{tpu_custom_call.1} parent=11 // pred_check_branch
          %398 = sbr.rel (%p396) target = $region60
        $region59: #{tpu_custom_call.1} parent=11 // pred_region
          _
        $region60: #{tpu_custom_call.1} parent=11 // pred_fallthru
          _
      $region12: #{tpu_custom_call.1} parent=5 // pred_fallthru
        _
      %p399 = scmp.lt.s32.totalorder %s24, 2
      // Predicated region
      $region61: #{tpu_custom_call.1} parent=5 // pred_check
        %p400 = pneg %p399
      $region62: #{tpu_custom_call.1} parent=5 // pred_check_branch
        %402 = sbr.rel (%p400) target = $region64
      $region63: #{tpu_custom_call.1} parent=5 // pred_region
        // Predicated region
        $region65: #{tpu_custom_call.1} parent=63 // pred_check
          %p403 = pneg %p44
        $region66: #{tpu_custom_call.1} parent=63 // pred_check_branch
          %405 = sbr.rel (%p403) target = $region68
        $region67: #{tpu_custom_call.1} parent=63 // pred_region
          %s406 = smul.u32 32, %s24
          %p407 = scmp.lt.s32.totalorder %s406, 63
          %s408 = scalar_select %p407, %s406, 63
          %s409 = smul.addr %s408, 4
          %s410 = scalar_lea.vmem %s0, %s409
          %s411 = smul.u32 32, %s24
        $region68: #{tpu_custom_call.1} parent=63 // pred_fallthru
          _
      $region64: #{tpu_custom_call.1} parent=5 // pred_fallthru
        _
      %p412 = scmp.le.s32.totalorder 1, %s24
      %p413 = scmp.lt.s32.totalorder %s24, 3
      %p414 = pnand %p412, %p413
      %p415 = pneg %p414
      // Predicated region
      $region69: #{tpu_custom_call.1} parent=5 // pred_check
        _
      $region70: #{tpu_custom_call.1} parent=5 // pred_check_branch
        %417 = sbr.rel (%p414) target = $region72
      $region71: #{tpu_custom_call.1} parent=5 // pred_region
        %s418 = ssub.s32 %s24, 1
        // Predicated region
        $region73: #{tpu_custom_call.1} parent=71 // pred_check
          %p419 = pneg %p113
        $region74: #{tpu_custom_call.1} parent=71 // pred_check_branch
          %421 = sbr.rel (%p419) target = $region76
        $region75: #{tpu_custom_call.1} parent=71 // pred_region
          %422 = dma.done [#allocation3], 8192
        $region76: #{tpu_custom_call.1} parent=71 // pred_fallthru
          _
        // Predicated region
        $region77: #{tpu_custom_call.1} parent=71 // pred_check
          %p423 = pneg %p281
        $region78: #{tpu_custom_call.1} parent=71 // pred_check_branch
          %425 = sbr.rel (%p423) target = $region80
        $region79: #{tpu_custom_call.1} parent=71 // pred_region
          %426 = dma.done [#allocation6], 1024
        $region80: #{tpu_custom_call.1} parent=71 // pred_fallthru
          _
        %s427 = smul.u32 32, %s29
        %p428 = scmp.lt.s32.totalorder %s427, 63
        %s429 = scalar_select %p428, %s427, 63
        %s430 = smul.addr %s429, 4
        %s431 = scalar_lea.vmem %s0, %s430
        %p432 = pneg %p50
        %p433 = pneg %p47
        %p434 = pneg %p71
        %p435 = pneg %p68
        %p436 = pneg %p92
        %p437 = pneg %p89
        %p438 = pneg %p113
        %p439 = pneg %p110
        %p440 = pneg %p134
        %p441 = pneg %p131
        %p442 = pneg %p155
        %p443 = pneg %p152
        %p444 = pneg %p176
        %p445 = pneg %p173
        %p446 = pneg %p197
        %p447 = pneg %p194
        %p448 = pneg %p218
        %p449 = pneg %p215
        %p450 = pneg %p239
        %p451 = pneg %p236
        %p452 = pneg %p260
        %p453 = pneg %p257
        %p454 = pneg %p281
        %p455 = pneg %p278
        %p456 = pneg %p302
        %p457 = pneg %p299
        %p458 = pneg %p328
        %p459 = pneg %p325
        %s460 = sand.u32 %s315, 1
        %s461 = scalar_lea.sflag [#allocation4], %s460
        %s462 = sand.u32 %s315, 1
        %s463 = smul.addr %s462, 128
        %s464 = scalar_lea.vmem [#allocation7], %s463
        %s465 = smul.u32 32, %s29
        %p466 = scmp.lt.s32.totalorder %s465, 63
        %s467 = scalar_select %p466, %s465, 63
        %s468 = smul.addr %s467, 4
        %s469 = scalar_lea.vmem %s0, %s468
        %s470 = smul.u32 32, %s29
        %s471 = smul.u32 32, %s29
        %v473 = vld [vmem:[%s469] sm:$0xf]
        %v474 = vld [vmem:[%s469 + $0x4] sm:$0xf]
        %v475 = vld [vmem:[%s469 + $0x8] sm:$0xf]
        %v476 = vld [vmem:[%s469 + $0xc] sm:$0xf]
        %v477 = vld [vmem:[%s469 + $0x10] sm:$0xf]
        %v478 = vld [vmem:[%s469 + $0x14] sm:$0xf]
        %v479 = vld [vmem:[%s469 + $0x18] sm:$0xf]
        %v480 = vld [vmem:[%s469 + $0x1c] sm:$0xf]
        %v481 = vld [vmem:[%s469 + $0x20] sm:$0xf]
        %v482 = vld [vmem:[%s469 + $0x24] sm:$0xf]
        %v483 = vld [vmem:[%s469 + $0x28] sm:$0xf]
        %v484 = vld [vmem:[%s469 + $0x2c] sm:$0xf]
        %v485 = vld [vmem:[%s469 + $0x30] sm:$0xf]
        %v486 = vld [vmem:[%s469 + $0x34] sm:$0xf]
        %v487 = vld [vmem:[%s469 + $0x38] sm:$0xf]
        %v488 = vld [vmem:[%s469 + $0x3c] sm:$0xf]
        %v489 = vld [vmem:[%s469 + $0x40] sm:$0xf]
        %v490 = vld [vmem:[%s469 + $0x44] sm:$0xf]
        %v491 = vld [vmem:[%s469 + $0x48] sm:$0xf]
        %v492 = vld [vmem:[%s469 + $0x4c] sm:$0xf]
        %v493 = vld [vmem:[%s469 + $0x50] sm:$0xf]
        %v494 = vld [vmem:[%s469 + $0x54] sm:$0xf]
        %v495 = vld [vmem:[%s469 + $0x58] sm:$0xf]
        %v496 = vld [vmem:[%s469 + $0x5c] sm:$0xf]
        %v497 = vld [vmem:[%s469 + $0x60] sm:$0xf]
        %v498 = vld [vmem:[%s469 + $0x64] sm:$0xf]
        %v499 = vld [vmem:[%s469 + $0x68] sm:$0xf]
        %v500 = vld [vmem:[%s469 + $0x6c] sm:$0xf]
        %v501 = vld [vmem:[%s469 + $0x70] sm:$0xf]
        %v502 = vld [vmem:[%s469 + $0x74] sm:$0xf]
        %v503 = vld [vmem:[%s469 + $0x78] sm:$0xf]
        %v504 = vld [vmem:[%s469 + $0x7c] sm:$0xf]
        %v505 = vld [vmem:[%s1] sm:$0xff]
        %v506 = vld [vmem:[%s1 + $0x8] sm:$0xff]
        %v507 = vld [vmem:[%s1 + $0x10] sm:$0xff]
        %v508 = vld [vmem:[%s1 + $0x18] sm:$0xff]
        %v509 = vld [vmem:[%s1 + $0x20] sm:$0xff]
        %v510 = vld [vmem:[%s1 + $0x28] sm:$0xff]
        %v511 = vld [vmem:[%s1 + $0x30] sm:$0xff]
        %v512 = vld [vmem:[%s1 + $0x38] sm:$0xff]
        %v513 = vld [vmem:[%s2] sm:$0xf]
        %v515 = vlaneseq
        %v516 = vshrl.u32 %v515, 7
        %v517 = vsub.s32 0, %v516
        %v518 = vrot.slane %v513, %v517
        %v519 = vlaneseq
        %v520 = vshrl.u32 %v519, 7
        %v521 = vsub.s32 1, %v520
        %v522 = vrot.slane %v513, %v521
        %v523 = vlaneseq
        %v524 = vshrl.u32 %v523, 7
        %v525 = vsub.s32 2, %v524
        %v526 = vrot.slane %v513, %v525
        %v527 = vlaneseq
        %v528 = vshrl.u32 %v527, 7
        %v529 = vsub.s32 3, %v528
        %v530 = vrot.slane %v513, %v529
        %v567 = vunpack.c.l.b16 %v473
        %v568 = vunpack.c.l.b16 %v474
        %v569 = vunpack.c.l.b16 %v475
        %v570 = vunpack.c.l.b16 %v476
        %v571 = vunpack.c.l.b16 %v477
        %v572 = vunpack.c.l.b16 %v478
        %v573 = vunpack.c.l.b16 %v479
        %v574 = vunpack.c.l.b16 %v480
        %v575 = vunpack.c.l.b16 %v481
        %v576 = vunpack.c.l.b16 %v482
        %v577 = vunpack.c.l.b16 %v483
        %v578 = vunpack.c.l.b16 %v484
        %v579 = vunpack.c.l.b16 %v485
        %v580 = vunpack.c.l.b16 %v486
        %v581 = vunpack.c.l.b16 %v487
        %v582 = vunpack.c.l.b16 %v488
        %v583 = vunpack.c.l.b16 %v489
        %v584 = vunpack.c.l.b16 %v490
        %v585 = vunpack.c.l.b16 %v491
        %v586 = vunpack.c.l.b16 %v492
        %v587 = vunpack.c.l.b16 %v493
        %v588 = vunpack.c.l.b16 %v494
        %v589 = vunpack.c.l.b16 %v495
        %v590 = vunpack.c.l.b16 %v496
        %v591 = vunpack.c.l.b16 %v497
        %v592 = vunpack.c.l.b16 %v498
        %v593 = vunpack.c.l.b16 %v499
        %v594 = vunpack.c.l.b16 %v500
        %v595 = vunpack.c.l.b16 %v501
        %v596 = vunpack.c.l.b16 %v502
        %v597 = vunpack.c.l.b16 %v503
        %v598 = vunpack.c.l.b16 %v504
        %v599 = vpack.c.b16 %v568, %v567
        %v600 = vpack.c.b16 %v570, %v569
        %v601 = vpack.c.b16 %v572, %v571
        %v602 = vpack.c.b16 %v574, %v573
        %v603 = vpack.c.b16 %v576, %v575
        %v604 = vpack.c.b16 %v578, %v577
        %v605 = vpack.c.b16 %v580, %v579
        %v606 = vpack.c.b16 %v582, %v581
        %v607 = vpack.c.b16 %v584, %v583
        %v608 = vpack.c.b16 %v586, %v585
        %v609 = vpack.c.b16 %v588, %v587
        %v610 = vpack.c.b16 %v590, %v589
        %v611 = vpack.c.b16 %v592, %v591
        %v612 = vpack.c.b16 %v594, %v593
        %v613 = vpack.c.b16 %v596, %v595
        %v614 = vpack.c.b16 %v598, %v597
        %v623 = vunpack.c.l.b16 %v505
        %v624 = vunpack.c.h.b16 %v505
        %v625 = vunpack.c.l.b16 %v506
        %v626 = vunpack.c.h.b16 %v506
        %v627 = vunpack.c.l.b16 %v507
        %v628 = vunpack.c.h.b16 %v507
        %v629 = vunpack.c.l.b16 %v508
        %v630 = vunpack.c.h.b16 %v508
        %v631 = vunpack.c.l.b16 %v509
        %v632 = vunpack.c.h.b16 %v509
        %v633 = vunpack.c.l.b16 %v510
        %v634 = vunpack.c.h.b16 %v510
        %v635 = vunpack.c.l.b16 %v511
        %v636 = vunpack.c.h.b16 %v511
        %v637 = vunpack.c.l.b16 %v512
        %v638 = vunpack.c.h.b16 %v512
        %v639 = vpack.c.b16 %v627, %v623
        %v640 = vpack.c.b16 %v628, %v624
        %v641 = vpack.c.b16 %v629, %v625
        %v642 = vpack.c.b16 %v630, %v626
        %v643 = vpack.c.b16 %v635, %v631
        %v644 = vpack.c.b16 %v636, %v632
        %v645 = vpack.c.b16 %v637, %v633
        %v646 = vpack.c.b16 %v638, %v634
        %vm655 = vcmask 261120
        %v657 = vsel %vm655, %v599, 0
        %v660 = vsel %vm655, %v600, 0
        %v663 = vsel %vm655, %v601, 0
        %v666 = vsel %vm655, %v602, 0
        %v669 = vsel %vm655, %v603, 0
        %v672 = vsel %vm655, %v604, 0
        %v675 = vsel %vm655, %v605, 0
        %v678 = vsel %vm655, %v606, 0
        %v681 = vsel %vm655, %v607, 0
        %v684 = vsel %vm655, %v608, 0
        %v687 = vsel %vm655, %v609, 0
        %v690 = vsel %vm655, %v610, 0
        %v693 = vsel %vm655, %v611, 0
        %v696 = vsel %vm655, %v612, 0
        %v699 = vsel %vm655, %v613, 0
        %v702 = vsel %vm655, %v614, 0
        %704 = vmatprep.subr.bf16.mxu0 %v640
        %705 = vmatpush1.bf16.msra.mxu0 %v639
        %706 = vmatprep.subr.bf16.mxu0 %v644
        %707 = vmatpush1.bf16.msra.mxu0 %v643
        %708 = vmatprep.subr.bf16.mxu0 0
        %709 = vmatpush1.bf16.msra.mxu0 0
        %710 = vmatprep.subr.bf16.mxu0 0
        %711 = vmatpush1.bf16.msra.mxu0 0
        %712 = vmatprep.subr.bf16.mxu0 0
        %713 = vmatpush1.bf16.msra.mxu0 0
        %714 = vmatprep.subr.bf16.mxu0 0
        %715 = vmatpush1.bf16.msra.mxu0 0
        %716 = vmatprep.subr.bf16.mxu0 0
        %717 = vmatpush1.bf16.msra.mxu0 0
        %718 = vmatprep.subr.bf16.mxu0 0
        %719 = vmatpush1.bf16.msra.mxu0 0
        %720 = vmatprep.subr.bf16.mxu0 0
        %721 = vmatpush1.bf16.msra.mxu0 0
        %722 = vmatprep.subr.bf16.mxu0 0
        %723 = vmatpush1.bf16.msra.mxu0 0
        %724 = vmatprep.subr.bf16.mxu0 0
        %725 = vmatpush1.bf16.msra.mxu0 0
        %726 = vmatprep.subr.bf16.mxu0 0
        %727 = vmatpush1.bf16.msra.mxu0 0
        %728 = vmatprep.subr.bf16.mxu0 0
        %729 = vmatpush1.bf16.msra.mxu0 0
        %730 = vmatprep.subr.bf16.mxu0 0
        %731 = vmatpush1.bf16.msra.mxu0 0
        %732 = vmatprep.subr.bf16.mxu0 0
        %733 = vmatpush1.bf16.msra.mxu0 0
        %734 = vmatprep.subr.bf16.mxu0 0
        %735 = vmatpush1.bf16.msra.mxu0 0
        %736 = vmatprep.mubr.bf16.mxu0 0
        %737 = vmatmul.mubr.bf16.gmra.mrb[0].mxu0 %v657
        %v738 = vpop.f32.mrb[0].mxu0
        %v739 = vadd.f32 %v518, %v738
        %v740 = vpop.f32.mrb[0].mxu0
        %v741 = vadd.f32 %v522, %v740
        %v742 = vpop.f32.mrb[0].mxu0
        %v743 = vadd.f32 %v518, %v742
        %v744 = vpop.f32.mrb[0].mxu0
        %v745 = vadd.f32 %v522, %v744
        %746 = vmatprep.mubr.bf16.mxu0 0
        %747 = vmatmul.mubr.bf16.gmra.mrb[0].mxu0 %v660
        %v748 = vpop.f32.mrb[0].mxu0
        %v749 = vadd.f32 %v518, %v748
        %v750 = vpop.f32.mrb[0].mxu0
        %v751 = vadd.f32 %v522, %v750
        %v752 = vpop.f32.mrb[0].mxu0
        %v753 = vadd.f32 %v518, %v752
        %v754 = vpop.f32.mrb[0].mxu0
        %v755 = vadd.f32 %v522, %v754
        %756 = vmatprep.mubr.bf16.mxu0 0
        %757 = vmatmul.mubr.bf16.gmra.mrb[0].mxu0 %v663
        %v758 = vpop.f32.mrb[0].mxu0
        %v759 = vadd.f32 %v518, %v758
        %v760 = vpop.f32.mrb[0].mxu0
        %v761 = vadd.f32 %v522, %v760
        %v762 = vpop.f32.mrb[0].mxu0
        %v763 = vadd.f32 %v518, %v762
        %v764 = vpop.f32.mrb[0].mxu0
        %v765 = vadd.f32 %v522, %v764
        %766 = vmatprep.mubr.bf16.mxu0 0
        %767 = vmatmul.mubr.bf16.gmra.mrb[0].mxu0 %v666
        %v768 = vpop.f32.mrb[0].mxu0
        %v769 = vadd.f32 %v518, %v768
        %v770 = vpop.f32.mrb[0].mxu0
        %v771 = vadd.f32 %v522, %v770
        %v772 = vpop.f32.mrb[0].mxu0
        %v773 = vadd.f32 %v518, %v772
        %v774 = vpop.f32.mrb[0].mxu0
        %v775 = vadd.f32 %v522, %v774
        %776 = vmatprep.mubr.bf16.mxu0 0
        %777 = vmatmul.mubr.bf16.gmra.mrb[0].mxu0 %v669
        %v778 = vpop.f32.mrb[0].mxu0
        %v779 = vadd.f32 %v518, %v778
        %v780 = vpop.f32.mrb[0].mxu0
        %v781 = vadd.f32 %v522, %v780
        %v782 = vpop.f32.mrb[0].mxu0
        %v783 = vadd.f32 %v518, %v782
        %v784 = vpop.f32.mrb[0].mxu0
        %v785 = vadd.f32 %v522, %v784
        %786 = vmatprep.mubr.bf16.mxu0 0
        %787 = vmatmul.mubr.bf16.gmra.mrb[0].mxu0 %v672
        %v788 = vpop.f32.mrb[0].mxu0
        %v789 = vadd.f32 %v518, %v788
        %v790 = vpop.f32.mrb[0].mxu0
        %v791 = vadd.f32 %v522, %v790
        %v792 = vpop.f32.mrb[0].mxu0
        %v793 = vadd.f32 %v518, %v792
        %v794 = vpop.f32.mrb[0].mxu0
        %v795 = vadd.f32 %v522, %v794
        %796 = vmatprep.mubr.bf16.mxu0 0
        %797 = vmatmul.mubr.bf16.gmra.mrb[0].mxu0 %v675
        %v798 = vpop.f32.mrb[0].mxu0
        %v799 = vadd.f32 %v518, %v798
        %v800 = vpop.f32.mrb[0].mxu0
        %v801 = vadd.f32 %v522, %v800
        %v802 = vpop.f32.mrb[0].mxu0
        %v803 = vadd.f32 %v518, %v802
        %v804 = vpop.f32.mrb[0].mxu0
        %v805 = vadd.f32 %v522, %v804
        %806 = vmatprep.mubr.bf16.mxu0 0
        %807 = vmatmul.mubr.bf16.gmra.mrb[0].mxu0 %v678
        %v808 = vpop.f32.mrb[0].mxu0
        %v809 = vadd.f32 %v518, %v808
        %v810 = vpop.f32.mrb[0].mxu0
        %v811 = vadd.f32 %v522, %v810
        %v812 = vpop.f32.mrb[0].mxu0
        %v813 = vadd.f32 %v518, %v812
        %v814 = vpop.f32.mrb[0].mxu0
        %v815 = vadd.f32 %v522, %v814
        %816 = vmatprep.mubr.bf16.mxu0 0
        %817 = vmatmul.mubr.bf16.gmra.mrb[0].mxu0 %v681
        %v818 = vpop.f32.mrb[0].mxu0
        %v819 = vadd.f32 %v518, %v818
        %v820 = vpop.f32.mrb[0].mxu0
        %v821 = vadd.f32 %v522, %v820
        %v822 = vpop.f32.mrb[0].mxu0
        %v823 = vadd.f32 %v518, %v822
        %v824 = vpop.f32.mrb[0].mxu0
        %v825 = vadd.f32 %v522, %v824
        %826 = vmatprep.mubr.bf16.mxu0 0
        %827 = vmatmul.mubr.bf16.gmra.mrb[0].mxu0 %v684
        %v828 = vpop.f32.mrb[0].mxu0
        %v829 = vadd.f32 %v518, %v828
        %v830 = vpop.f32.mrb[0].mxu0
        %v831 = vadd.f32 %v522, %v830
        %v832 = vpop.f32.mrb[0].mxu0
        %v833 = vadd.f32 %v518, %v832
        %v834 = vpop.f32.mrb[0].mxu0
        %v835 = vadd.f32 %v522, %v834
        %836 = vmatprep.mubr.bf16.mxu0 0
        %837 = vmatmul.mubr.bf16.gmra.mrb[0].mxu0 %v687
        %v838 = vpop.f32.mrb[0].mxu0
        %v839 = vadd.f32 %v518, %v838
        %v840 = vpop.f32.mrb[0].mxu0
        %v841 = vadd.f32 %v522, %v840
        %v842 = vpop.f32.mrb[0].mxu0
        %v843 = vadd.f32 %v518, %v842
        %v844 = vpop.f32.mrb[0].mxu0
        %v845 = vadd.f32 %v522, %v844
        %846 = vmatprep.mubr.bf16.mxu0 0
        %847 = vmatmul.mubr.bf16.gmra.mrb[0].mxu0 %v690
        %v848 = vpop.f32.mrb[0].mxu0
        %v849 = vadd.f32 %v518, %v848
        %v850 = vpop.f32.mrb[0].mxu0
        %v851 = vadd.f32 %v522, %v850
        %v852 = vpop.f32.mrb[0].mxu0
        %v853 = vadd.f32 %v518, %v852
        %v854 = vpop.f32.mrb[0].mxu0
        %v855 = vadd.f32 %v522, %v854
        %856 = vmatprep.mubr.bf16.mxu0 0
        %857 = vmatmul.mubr.bf16.gmra.mrb[0].mxu0 %v693
        %v858 = vpop.f32.mrb[0].mxu0
        %v859 = vadd.f32 %v518, %v858
        %v860 = vpop.f32.mrb[0].mxu0
        %v861 = vadd.f32 %v522, %v860
        %v862 = vpop.f32.mrb[0].mxu0
        %v863 = vadd.f32 %v518, %v862
        %v864 = vpop.f32.mrb[0].mxu0
        %v865 = vadd.f32 %v522, %v864
        %866 = vmatprep.mubr.bf16.mxu0 0
        %867 = vmatmul.mubr.bf16.gmra.mrb[0].mxu0 %v696
        %v868 = vpop.f32.mrb[0].mxu0
        %v869 = vadd.f32 %v518, %v868
        %v870 = vpop.f32.mrb[0].mxu0
        %v871 = vadd.f32 %v522, %v870
        %v872 = vpop.f32.mrb[0].mxu0
        %v873 = vadd.f32 %v518, %v872
        %v874 = vpop.f32.mrb[0].mxu0
        %v875 = vadd.f32 %v522, %v874
        %876 = vmatprep.mubr.bf16.mxu0 0
        %877 = vmatmul.mubr.bf16.gmra.mrb[0].mxu0 %v699
        %v878 = vpop.f32.mrb[0].mxu0
        %v879 = vadd.f32 %v518, %v878
        %v880 = vpop.f32.mrb[0].mxu0
        %v881 = vadd.f32 %v522, %v880
        %v882 = vpop.f32.mrb[0].mxu0
        %v883 = vadd.f32 %v518, %v882
        %v884 = vpop.f32.mrb[0].mxu0
        %v885 = vadd.f32 %v522, %v884
        %886 = vmatprep.mubr.bf16.mxu0 0
        %887 = vmatmul.mubr.bf16.gmra.mrb[0].mxu0 %v702
        %v888 = vpop.f32.mrb[0].mxu0
        %v889 = vadd.f32 %v518, %v888
        %v890 = vpop.f32.mrb[0].mxu0
        %v891 = vadd.f32 %v522, %v890
        %v892 = vpop.f32.mrb[0].mxu0
        %v893 = vadd.f32 %v518, %v892
        %v894 = vpop.f32.mrb[0].mxu0
        %v895 = vadd.f32 %v522, %v894
        %896 = vdwg.mxu0
        %897 = vmatprep.subr.bf16.mxu0 %v642
        %898 = vmatpush1.bf16.msra.mxu0 %v641
        %899 = vmatprep.subr.bf16.mxu0 %v646
        %900 = vmatpush1.bf16.msra.mxu0 %v645
        %901 = vmatprep.subr.bf16.mxu0 0
        %902 = vmatpush1.bf16.msra.mxu0 0
        %903 = vmatprep.subr.bf16.mxu0 0
        %904 = vmatpush1.bf16.msra.mxu0 0
        %905 = vmatprep.subr.bf16.mxu0 0
        %906 = vmatpush1.bf16.msra.mxu0 0
        %907 = vmatprep.subr.bf16.mxu0 0
        %908 = vmatpush1.bf16.msra.mxu0 0
        %909 = vmatprep.subr.bf16.mxu0 0
        %910 = vmatpush1.bf16.msra.mxu0 0
        %911 = vmatprep.subr.bf16.mxu0 0
        %912 = vmatpush1.bf16.msra.mxu0 0
        %913 = vmatprep.subr.bf16.mxu0 0
        %914 = vmatpush1.bf16.msra.mxu0 0
        %915 = vmatprep.subr.bf16.mxu0 0
        %916 = vmatpush1.bf16.msra.mxu0 0
        %917 = vmatprep.subr.bf16.mxu0 0
        %918 = vmatpush1.bf16.msra.mxu0 0
        %919 = vmatprep.subr.bf16.mxu0 0
        %920 = vmatpush1.bf16.msra.mxu0 0
        %921 = vmatprep.subr.bf16.mxu0 0
        %922 = vmatpush1.bf16.msra.mxu0 0
        %923 = vmatprep.subr.bf16.mxu0 0
        %924 = vmatpush1.bf16.msra.mxu0 0
        %925 = vmatprep.subr.bf16.mxu0 0
        %926 = vmatpush1.bf16.msra.mxu0 0
        %927 = vmatprep.subr.bf16.mxu0 0
        %928 = vmatpush1.bf16.msra.mxu0 0
        %929 = vmatprep.mubr.bf16.mxu0 0
        %930 = vmatmul.mubr.bf16.gmra.mrb[0].mxu0 %v657
        %v931 = vpop.f32.mrb[0].mxu0
        %v932 = vadd.f32 %v526, %v931
        %v933 = vpop.f32.mrb[0].mxu0
        %v934 = vadd.f32 %v530, %v933
        %v935 = vpop.f32.mrb[0].mxu0
        %v936 = vadd.f32 %v526, %v935
        %v937 = vpop.f32.mrb[0].mxu0
        %v938 = vadd.f32 %v530, %v937
        %939 = vmatprep.mubr.bf16.mxu0 0
        %940 = vmatmul.mubr.bf16.gmra.mrb[0].mxu0 %v660
        %v941 = vpop.f32.mrb[0].mxu0
        %v942 = vadd.f32 %v526, %v941
        %v943 = vpop.f32.mrb[0].mxu0
        %v944 = vadd.f32 %v530, %v943
        %v945 = vpop.f32.mrb[0].mxu0
        %v946 = vadd.f32 %v526, %v945
        %v947 = vpop.f32.mrb[0].mxu0
        %v948 = vadd.f32 %v530, %v947
        %949 = vmatprep.mubr.bf16.mxu0 0
        %950 = vmatmul.mubr.bf16.gmra.mrb[0].mxu0 %v663
        %v951 = vpop.f32.mrb[0].mxu0
        %v952 = vadd.f32 %v526, %v951
        %v953 = vpop.f32.mrb[0].mxu0
        %v954 = vadd.f32 %v530, %v953
        %v955 = vpop.f32.mrb[0].mxu0
        %v956 = vadd.f32 %v526, %v955
        %v957 = vpop.f32.mrb[0].mxu0
        %v958 = vadd.f32 %v530, %v957
        %959 = vmatprep.mubr.bf16.mxu0 0
        %960 = vmatmul.mubr.bf16.gmra.mrb[0].mxu0 %v666
        %v961 = vpop.f32.mrb[0].mxu0
        %v962 = vadd.f32 %v526, %v961
        %v963 = vpop.f32.mrb[0].mxu0
        %v964 = vadd.f32 %v530, %v963
        %v965 = vpop.f32.mrb[0].mxu0
        %v966 = vadd.f32 %v526, %v965
        %v967 = vpop.f32.mrb[0].mxu0
        %v968 = vadd.f32 %v530, %v967
        %969 = vmatprep.mubr.bf16.mxu0 0
        %970 = vmatmul.mubr.bf16.gmra.mrb[0].mxu0 %v669
        %v971 = vpop.f32.mrb[0].mxu0
        %v972 = vadd.f32 %v526, %v971
        %v973 = vpop.f32.mrb[0].mxu0
        %v974 = vadd.f32 %v530, %v973
        %v975 = vpop.f32.mrb[0].mxu0
        %v976 = vadd.f32 %v526, %v975
        %v977 = vpop.f32.mrb[0].mxu0
        %v978 = vadd.f32 %v530, %v977
        %979 = vmatprep.mubr.bf16.mxu0 0
        %980 = vmatmul.mubr.bf16.gmra.mrb[0].mxu0 %v672
        %v981 = vpop.f32.mrb[0].mxu0
        %v982 = vadd.f32 %v526, %v981
        %v983 = vpop.f32.mrb[0].mxu0
        %v984 = vadd.f32 %v530, %v983
        %v985 = vpop.f32.mrb[0].mxu0
        %v986 = vadd.f32 %v526, %v985
        %v987 = vpop.f32.mrb[0].mxu0
        %v988 = vadd.f32 %v530, %v987
        %989 = vmatprep.mubr.bf16.mxu0 0
        %990 = vmatmul.mubr.bf16.gmra.mrb[0].mxu0 %v675
        %v991 = vpop.f32.mrb[0].mxu0
        %v992 = vadd.f32 %v526, %v991
        %v993 = vpop.f32.mrb[0].mxu0
        %v994 = vadd.f32 %v530, %v993
        %v995 = vpop.f32.mrb[0].mxu0
        %v996 = vadd.f32 %v526, %v995
        %v997 = vpop.f32.mrb[0].mxu0
        %v998 = vadd.f32 %v530, %v997
        %999 = vmatprep.mubr.bf16.mxu0 0
        %1000 = vmatmul.mubr.bf16.gmra.mrb[0].mxu0 %v678
        %v1001 = vpop.f32.mrb[0].mxu0
        %v1002 = vadd.f32 %v526, %v1001
        %v1003 = vpop.f32.mrb[0].mxu0
        %v1004 = vadd.f32 %v530, %v1003
        %v1005 = vpop.f32.mrb[0].mxu0
        %v1006 = vadd.f32 %v526, %v1005
        %v1007 = vpop.f32.mrb[0].mxu0
        %v1008 = vadd.f32 %v530, %v1007
        %1009 = vmatprep.mubr.bf16.mxu0 0
        %1010 = vmatmul.mubr.bf16.gmra.mrb[0].mxu0 %v681
        %v1011 = vpop.f32.mrb[0].mxu0
        %v1012 = vadd.f32 %v526, %v1011
        %v1013 = vpop.f32.mrb[0].mxu0
        %v1014 = vadd.f32 %v530, %v1013
        %v1015 = vpop.f32.mrb[0].mxu0
        %v1016 = vadd.f32 %v526, %v1015
        %v1017 = vpop.f32.mrb[0].mxu0
        %v1018 = vadd.f32 %v530, %v1017
        %1019 = vmatprep.mubr.bf16.mxu0 0
        %1020 = vmatmul.mubr.bf16.gmra.mrb[0].mxu0 %v684
        %v1021 = vpop.f32.mrb[0].mxu0
        %v1022 = vadd.f32 %v526, %v1021
        %v1023 = vpop.f32.mrb[0].mxu0
        %v1024 = vadd.f32 %v530, %v1023
        %v1025 = vpop.f32.mrb[0].mxu0
        %v1026 = vadd.f32 %v526, %v1025
        %v1027 = vpop.f32.mrb[0].mxu0
        %v1028 = vadd.f32 %v530, %v1027
        %1029 = vmatprep.mubr.bf16.mxu0 0
        %1030 = vmatmul.mubr.bf16.gmra.mrb[0].mxu0 %v687
        %v1031 = vpop.f32.mrb[0].mxu0
        %v1032 = vadd.f32 %v526, %v1031
        %v1033 = vpop.f32.mrb[0].mxu0
        %v1034 = vadd.f32 %v530, %v1033
        %v1035 = vpop.f32.mrb[0].mxu0
        %v1036 = vadd.f32 %v526, %v1035
        %v1037 = vpop.f32.mrb[0].mxu0
        %v1038 = vadd.f32 %v530, %v1037
        %1039 = vmatprep.mubr.bf16.mxu0 0
        %1040 = vmatmul.mubr.bf16.gmra.mrb[0].mxu0 %v690
        %v1041 = vpop.f32.mrb[0].mxu0
        %v1042 = vadd.f32 %v526, %v1041
        %v1043 = vpop.f32.mrb[0].mxu0
        %v1044 = vadd.f32 %v530, %v1043
        %v1045 = vpop.f32.mrb[0].mxu0
        %v1046 = vadd.f32 %v526, %v1045
        %v1047 = vpop.f32.mrb[0].mxu0
        %v1048 = vadd.f32 %v530, %v1047
        %1049 = vmatprep.mubr.bf16.mxu0 0
        %1050 = vmatmul.mubr.bf16.gmra.mrb[0].mxu0 %v693
        %v1051 = vpop.f32.mrb[0].mxu0
        %v1052 = vadd.f32 %v526, %v1051
        %v1053 = vpop.f32.mrb[0].mxu0
        %v1054 = vadd.f32 %v530, %v1053
        %v1055 = vpop.f32.mrb[0].mxu0
        %v1056 = vadd.f32 %v526, %v1055
        %v1057 = vpop.f32.mrb[0].mxu0
        %v1058 = vadd.f32 %v530, %v1057
        %1059 = vmatprep.mubr.bf16.mxu0 0
        %1060 = vmatmul.mubr.bf16.gmra.mrb[0].mxu0 %v696
        %v1061 = vpop.f32.mrb[0].mxu0
        %v1062 = vadd.f32 %v526, %v1061
        %v1063 = vpop.f32.mrb[0].mxu0
        %v1064 = vadd.f32 %v530, %v1063
        %v1065 = vpop.f32.mrb[0].mxu0
        %v1066 = vadd.f32 %v526, %v1065
        %v1067 = vpop.f32.mrb[0].mxu0
        %v1068 = vadd.f32 %v530, %v1067
        %1069 = vmatprep.mubr.bf16.mxu0 0
        %1070 = vmatmul.mubr.bf16.gmra.mrb[0].mxu0 %v699
        %v1071 = vpop.f32.mrb[0].mxu0
        %v1072 = vadd.f32 %v526, %v1071
        %v1073 = vpop.f32.mrb[0].mxu0
        %v1074 = vadd.f32 %v530, %v1073
        %v1075 = vpop.f32.mrb[0].mxu0
        %v1076 = vadd.f32 %v526, %v1075
        %v1077 = vpop.f32.mrb[0].mxu0
        %v1078 = vadd.f32 %v530, %v1077
        %1079 = vmatprep.mubr.bf16.mxu0 0
        %1080 = vmatmul.mubr.bf16.gmra.mrb[0].mxu0 %v702
        %v1081 = vpop.f32.mrb[0].mxu0
        %v1082 = vadd.f32 %v526, %v1081
        %v1083 = vpop.f32.mrb[0].mxu0
        %v1084 = vadd.f32 %v530, %v1083
        %v1085 = vpop.f32.mrb[0].mxu0
        %v1086 = vadd.f32 %v526, %v1085
        %v1087 = vpop.f32.mrb[0].mxu0
        %v1088 = vadd.f32 %v530, %v1087
        %1089 = vdwg.mxu0
        %v1090 = vmax.f32 %v739, 0.0
        %v1091 = vmax.f32 %v741, 0.0
        %v1092 = vmax.f32 %v932, 0.0
        %v1093 = vmax.f32 %v934, 0.0
        %v1094 = vmax.f32 %v743, 0.0
        %v1095 = vmax.f32 %v745, 0.0
        %v1096 = vmax.f32 %v936, 0.0
        %v1097 = vmax.f32 %v938, 0.0
        %v1098 = vmax.f32 %v749, 0.0
        %v1099 = vmax.f32 %v751, 0.0
        %v1100 = vmax.f32 %v942, 0.0
        %v1101 = vmax.f32 %v944, 0.0
        %v1102 = vmax.f32 %v753, 0.0
        %v1103 = vmax.f32 %v755, 0.0
        %v1104 = vmax.f32 %v946, 0.0
        %v1105 = vmax.f32 %v948, 0.0
        %v1106 = vmax.f32 %v759, 0.0
        %v1107 = vmax.f32 %v761, 0.0
        %v1108 = vmax.f32 %v952, 0.0
        %v1109 = vmax.f32 %v954, 0.0
        %v1110 = vmax.f32 %v763, 0.0
        %v1111 = vmax.f32 %v765, 0.0
        %v1112 = vmax.f32 %v956, 0.0
        %v1113 = vmax.f32 %v958, 0.0
        %v1114 = vmax.f32 %v769, 0.0
        %v1115 = vmax.f32 %v771, 0.0
        %v1116 = vmax.f32 %v962, 0.0
        %v1117 = vmax.f32 %v964, 0.0
        %v1118 = vmax.f32 %v773, 0.0
        %v1119 = vmax.f32 %v775, 0.0
        %v1120 = vmax.f32 %v966, 0.0
        %v1121 = vmax.f32 %v968, 0.0
        %v1122 = vmax.f32 %v779, 0.0
        %v1123 = vmax.f32 %v781, 0.0
        %v1124 = vmax.f32 %v972, 0.0
        %v1125 = vmax.f32 %v974, 0.0
        %v1126 = vmax.f32 %v783, 0.0
        %v1127 = vmax.f32 %v785, 0.0
        %v1128 = vmax.f32 %v976, 0.0
        %v1129 = vmax.f32 %v978, 0.0
        %v1130 = vmax.f32 %v789, 0.0
        %v1131 = vmax.f32 %v791, 0.0
        %v1132 = vmax.f32 %v982, 0.0
        %v1133 = vmax.f32 %v984, 0.0
        %v1134 = vmax.f32 %v793, 0.0
        %v1135 = vmax.f32 %v795, 0.0
        %v1136 = vmax.f32 %v986, 0.0
        %v1137 = vmax.f32 %v988, 0.0
        %v1138 = vmax.f32 %v799, 0.0
        %v1139 = vmax.f32 %v801, 0.0
        %v1140 = vmax.f32 %v992, 0.0
        %v1141 = vmax.f32 %v994, 0.0
        %v1142 = vmax.f32 %v803, 0.0
        %v1143 = vmax.f32 %v805, 0.0
        %v1144 = vmax.f32 %v996, 0.0
        %v1145 = vmax.f32 %v998, 0.0
        %v1146 = vmax.f32 %v809, 0.0
        %v1147 = vmax.f32 %v811, 0.0
        %v1148 = vmax.f32 %v1002, 0.0
        %v1149 = vmax.f32 %v1004, 0.0
        %v1150 = vmax.f32 %v813, 0.0
        %v1151 = vmax.f32 %v815, 0.0
        %v1152 = vmax.f32 %v1006, 0.0
        %v1153 = vmax.f32 %v1008, 0.0
        %v1154 = vmax.f32 %v819, 0.0
        %v1155 = vmax.f32 %v821, 0.0
        %v1156 = vmax.f32 %v1012, 0.0
        %v1157 = vmax.f32 %v1014, 0.0
        %v1158 = vmax.f32 %v823, 0.0
        %v1159 = vmax.f32 %v825, 0.0
        %v1160 = vmax.f32 %v1016, 0.0
        %v1161 = vmax.f32 %v1018, 0.0
        %v1162 = vmax.f32 %v829, 0.0
        %v1163 = vmax.f32 %v831, 0.0
        %v1164 = vmax.f32 %v1022, 0.0
        %v1165 = vmax.f32 %v1024, 0.0
        %v1166 = vmax.f32 %v833, 0.0
        %v1167 = vmax.f32 %v835, 0.0
        %v1168 = vmax.f32 %v1026, 0.0
        %v1169 = vmax.f32 %v1028, 0.0
        %v1170 = vmax.f32 %v839, 0.0
        %v1171 = vmax.f32 %v841, 0.0
        %v1172 = vmax.f32 %v1032, 0.0
        %v1173 = vmax.f32 %v1034, 0.0
        %v1174 = vmax.f32 %v843, 0.0
        %v1175 = vmax.f32 %v845, 0.0
        %v1176 = vmax.f32 %v1036, 0.0
        %v1177 = vmax.f32 %v1038, 0.0
        %v1178 = vmax.f32 %v849, 0.0
        %v1179 = vmax.f32 %v851, 0.0
        %v1180 = vmax.f32 %v1042, 0.0
        %v1181 = vmax.f32 %v1044, 0.0
        %v1182 = vmax.f32 %v853, 0.0
        %v1183 = vmax.f32 %v855, 0.0
        %v1184 = vmax.f32 %v1046, 0.0
        %v1185 = vmax.f32 %v1048, 0.0
        %v1186 = vmax.f32 %v859, 0.0
        %v1187 = vmax.f32 %v861, 0.0
        %v1188 = vmax.f32 %v1052, 0.0
        %v1189 = vmax.f32 %v1054, 0.0
        %v1190 = vmax.f32 %v863, 0.0
        %v1191 = vmax.f32 %v865, 0.0
        %v1192 = vmax.f32 %v1056, 0.0
        %v1193 = vmax.f32 %v1058, 0.0
        %v1194 = vmax.f32 %v869, 0.0
        %v1195 = vmax.f32 %v871, 0.0
        %v1196 = vmax.f32 %v1062, 0.0
        %v1197 = vmax.f32 %v1064, 0.0
        %v1198 = vmax.f32 %v873, 0.0
        %v1199 = vmax.f32 %v875, 0.0
        %v1200 = vmax.f32 %v1066, 0.0
        %v1201 = vmax.f32 %v1068, 0.0
        %v1202 = vmax.f32 %v879, 0.0
        %v1203 = vmax.f32 %v881, 0.0
        %v1204 = vmax.f32 %v1072, 0.0
        %v1205 = vmax.f32 %v1074, 0.0
        %v1206 = vmax.f32 %v883, 0.0
        %v1207 = vmax.f32 %v885, 0.0
        %v1208 = vmax.f32 %v1076, 0.0
        %v1209 = vmax.f32 %v1078, 0.0
        %v1210 = vmax.f32 %v889, 0.0
        %v1211 = vmax.f32 %v891, 0.0
        %v1212 = vmax.f32 %v1082, 0.0
        %v1213 = vmax.f32 %v1084, 0.0
        %v1214 = vmax.f32 %v893, 0.0
        %v1215 = vmax.f32 %v895, 0.0
        %v1216 = vmax.f32 %v1086, 0.0
        %v1217 = vmax.f32 %v1088, 0.0
        %v1218 = vpack.c.bf16 %v1094, %v1090
        %v1219 = vpack.c.bf16 %v1095, %v1091
        %v1220 = vpack.c.bf16 %v1096, %v1092
        %v1221 = vpack.c.bf16 %v1097, %v1093
        %v1222 = vpack.c.bf16 %v1102, %v1098
        %v1223 = vpack.c.bf16 %v1103, %v1099
        %v1224 = vpack.c.bf16 %v1104, %v1100
        %v1225 = vpack.c.bf16 %v1105, %v1101
        %v1226 = vpack.c.bf16 %v1110, %v1106
        %v1227 = vpack.c.bf16 %v1111, %v1107
        %v1228 = vpack.c.bf16 %v1112, %v1108
        %v1229 = vpack.c.bf16 %v1113, %v1109
        %v1230 = vpack.c.bf16 %v1118, %v1114
        %v1231 = vpack.c.bf16 %v1119, %v1115
        %v1232 = vpack.c.bf16 %v1120, %v1116
        %v1233 = vpack.c.bf16 %v1121, %v1117
        %v1234 = vpack.c.bf16 %v1126, %v1122
        %v1235 = vpack.c.bf16 %v1127, %v1123
        %v1236 = vpack.c.bf16 %v1128, %v1124
        %v1237 = vpack.c.bf16 %v1129, %v1125
        %v1238 = vpack.c.bf16 %v1134, %v1130
        %v1239 = vpack.c.bf16 %v1135, %v1131
        %v1240 = vpack.c.bf16 %v1136, %v1132
        %v1241 = vpack.c.bf16 %v1137, %v1133
        %v1242 = vpack.c.bf16 %v1142, %v1138
        %v1243 = vpack.c.bf16 %v1143, %v1139
        %v1244 = vpack.c.bf16 %v1144, %v1140
        %v1245 = vpack.c.bf16 %v1145, %v1141
        %v1246 = vpack.c.bf16 %v1150, %v1146
        %v1247 = vpack.c.bf16 %v1151, %v1147
        %v1248 = vpack.c.bf16 %v1152, %v1148
        %v1249 = vpack.c.bf16 %v1153, %v1149
        %v1250 = vpack.c.bf16 %v1158, %v1154
        %v1251 = vpack.c.bf16 %v1159, %v1155
        %v1252 = vpack.c.bf16 %v1160, %v1156
        %v1253 = vpack.c.bf16 %v1161, %v1157
        %v1254 = vpack.c.bf16 %v1166, %v1162
        %v1255 = vpack.c.bf16 %v1167, %v1163
        %v1256 = vpack.c.bf16 %v1168, %v1164
        %v1257 = vpack.c.bf16 %v1169, %v1165
        %v1258 = vpack.c.bf16 %v1174, %v1170
        %v1259 = vpack.c.bf16 %v1175, %v1171
        %v1260 = vpack.c.bf16 %v1176, %v1172
        %v1261 = vpack.c.bf16 %v1177, %v1173
        %v1262 = vpack.c.bf16 %v1182, %v1178
        %v1263 = vpack.c.bf16 %v1183, %v1179
        %v1264 = vpack.c.bf16 %v1184, %v1180
        %v1265 = vpack.c.bf16 %v1185, %v1181
        %v1266 = vpack.c.bf16 %v1190, %v1186
        %v1267 = vpack.c.bf16 %v1191, %v1187
        %v1268 = vpack.c.bf16 %v1192, %v1188
        %v1269 = vpack.c.bf16 %v1193, %v1189
        %v1270 = vpack.c.bf16 %v1198, %v1194
        %v1271 = vpack.c.bf16 %v1199, %v1195
        %v1272 = vpack.c.bf16 %v1200, %v1196
        %v1273 = vpack.c.bf16 %v1201, %v1197
        %v1274 = vpack.c.bf16 %v1206, %v1202
        %v1275 = vpack.c.bf16 %v1207, %v1203
        %v1276 = vpack.c.bf16 %v1208, %v1204
        %v1277 = vpack.c.bf16 %v1209, %v1205
        %v1278 = vpack.c.bf16 %v1214, %v1210
        %v1279 = vpack.c.bf16 %v1215, %v1211
        %v1280 = vpack.c.bf16 %v1216, %v1212
        %v1281 = vpack.c.bf16 %v1217, %v1213
        %v1282 = vld [vmem:[#allocation2] sm:$0xff]
        %v1283 = vld [vmem:[#allocation2 + $0x8] sm:$0xff]
        %v1284 = vld [vmem:[#allocation2 + $0x10] sm:$0xff]
        %v1285 = vld [vmem:[#allocation2 + $0x18] sm:$0xff]
        %v1286 = vld [vmem:[#allocation2 + $0x20] sm:$0xff]
        %v1287 = vld [vmem:[#allocation2 + $0x28] sm:$0xff]
        %v1288 = vld [vmem:[#allocation2 + $0x30] sm:$0xff]
        %v1289 = vld [vmem:[#allocation2 + $0x38] sm:$0xff]
        %v1290 = vld [vmem:[#allocation2 + $0x40] sm:$0xff]
        %v1291 = vld [vmem:[#allocation2 + $0x48] sm:$0xff]
        %v1292 = vld [vmem:[#allocation2 + $0x50] sm:$0xff]
        %v1293 = vld [vmem:[#allocation2 + $0x58] sm:$0xff]
        %v1294 = vld [vmem:[#allocation2 + $0x60] sm:$0xff]
        %v1295 = vld [vmem:[#allocation2 + $0x68] sm:$0xff]
        %v1296 = vld [vmem:[#allocation2 + $0x70] sm:$0xff]
        %v1297 = vld [vmem:[#allocation2 + $0x78] sm:$0xff]
        %v1298 = vld [vmem:[#allocation2 + $0x80] sm:$0xff]
        %v1299 = vld [vmem:[#allocation2 + $0x88] sm:$0xff]
        %v1300 = vld [vmem:[#allocation2 + $0x90] sm:$0xff]
        %v1301 = vld [vmem:[#allocation2 + $0x98] sm:$0xff]
        %v1302 = vld [vmem:[#allocation2 + $0xa0] sm:$0xff]
        %v1303 = vld [vmem:[#allocation2 + $0xa8] sm:$0xff]
        %v1304 = vld [vmem:[#allocation2 + $0xb0] sm:$0xff]
        %v1305 = vld [vmem:[#allocation2 + $0xb8] sm:$0xff]
        %v1306 = vld [vmem:[#allocation2 + $0xc0] sm:$0xff]
        %v1307 = vld [vmem:[#allocation2 + $0xc8] sm:$0xff]
        %v1308 = vld [vmem:[#allocation2 + $0xd0] sm:$0xff]
        %v1309 = vld [vmem:[#allocation2 + $0xd8] sm:$0xff]
        %v1310 = vld [vmem:[#allocation2 + $0xe0] sm:$0xff]
        %v1311 = vld [vmem:[#allocation2 + $0xe8] sm:$0xff]
        %v1312 = vld [vmem:[#allocation2 + $0xf0] sm:$0xff]
        %v1313 = vld [vmem:[#allocation2 + $0xf8] sm:$0xff]
        %v1314 = vld [vmem:[#allocation2 + $0x100] sm:$0xff]
        %v1315 = vld [vmem:[#allocation2 + $0x108] sm:$0xff]
        %v1316 = vld [vmem:[#allocation2 + $0x110] sm:$0xff]
        %v1317 = vld [vmem:[#allocation2 + $0x118] sm:$0xff]
        %v1318 = vld [vmem:[#allocation2 + $0x120] sm:$0xff]
        %v1319 = vld [vmem:[#allocation2 + $0x128] sm:$0xff]
        %v1320 = vld [vmem:[#allocation2 + $0x130] sm:$0xff]
        %v1321 = vld [vmem:[#allocation2 + $0x138] sm:$0xff]
        %v1322 = vld [vmem:[#allocation2 + $0x140] sm:$0xff]
        %v1323 = vld [vmem:[#allocation2 + $0x148] sm:$0xff]
        %v1324 = vld [vmem:[#allocation2 + $0x150] sm:$0xff]
        %v1325 = vld [vmem:[#allocation2 + $0x158] sm:$0xff]
        %v1326 = vld [vmem:[#allocation2 + $0x160] sm:$0xff]
        %v1327 = vld [vmem:[#allocation2 + $0x168] sm:$0xff]
        %v1328 = vld [vmem:[#allocation2 + $0x170] sm:$0xff]
        %v1329 = vld [vmem:[#allocation2 + $0x178] sm:$0xff]
        %v1330 = vld [vmem:[#allocation2 + $0x180] sm:$0xff]
        %v1331 = vld [vmem:[#allocation2 + $0x188] sm:$0xff]
        %v1332 = vld [vmem:[#allocation2 + $0x190] sm:$0xff]
        %v1333 = vld [vmem:[#allocation2 + $0x198] sm:$0xff]
        %v1334 = vld [vmem:[#allocation2 + $0x1a0] sm:$0xff]
        %v1335 = vld [vmem:[#allocation2 + $0x1a8] sm:$0xff]
        %v1336 = vld [vmem:[#allocation2 + $0x1b0] sm:$0xff]
        %v1337 = vld [vmem:[#allocation2 + $0x1b8] sm:$0xff]
        %v1338 = vld [vmem:[#allocation2 + $0x1c0] sm:$0xff]
        %v1339 = vld [vmem:[#allocation2 + $0x1c8] sm:$0xff]
        %v1340 = vld [vmem:[#allocation2 + $0x1d0] sm:$0xff]
        %v1341 = vld [vmem:[#allocation2 + $0x1d8] sm:$0xff]
        %v1342 = vld [vmem:[#allocation2 + $0x1e0] sm:$0xff]
        %v1343 = vld [vmem:[#allocation2 + $0x1e8] sm:$0xff]
        %v1344 = vld [vmem:[#allocation2 + $0x1f0] sm:$0xff]
        %v1345 = vld [vmem:[#allocation2 + $0x1f8] sm:$0xff]
        %v1346 = vld [vmem:[%s4] sm:$0x3]
        %v1348 = vlaneseq
        %v1349 = vshrl.u32 %v1348, 7
        %v1350 = vsub.s32 0, %v1349
        %v1351 = vrot.slane %v1346, %v1350
        %v1352 = vlaneseq
        %v1353 = vshrl.u32 %v1352, 7
        %v1354 = vsub.s32 1, %v1353
        %v1355 = vrot.slane %v1346, %v1354
        %v1422 = vunpack.c.l.b16 %v1282
        %v1423 = vunpack.c.h.b16 %v1282
        %v1424 = vunpack.c.l.b16 %v1283
        %v1425 = vunpack.c.h.b16 %v1283
        %v1426 = vunpack.c.l.b16 %v1284
        %v1427 = vunpack.c.h.b16 %v1284
        %v1428 = vunpack.c.l.b16 %v1285
        %v1429 = vunpack.c.h.b16 %v1285
        %v1430 = vunpack.c.l.b16 %v1286
        %v1431 = vunpack.c.h.b16 %v1286
        %v1432 = vunpack.c.l.b16 %v1287
        %v1433 = vunpack.c.h.b16 %v1287
        %v1434 = vunpack.c.l.b16 %v1288
        %v1435 = vunpack.c.h.b16 %v1288
        %v1436 = vunpack.c.l.b16 %v1289
        %v1437 = vunpack.c.h.b16 %v1289
        %v1438 = vunpack.c.l.b16 %v1290
        %v1439 = vunpack.c.h.b16 %v1290
        %v1440 = vunpack.c.l.b16 %v1291
        %v1441 = vunpack.c.h.b16 %v1291
        %v1442 = vunpack.c.l.b16 %v1292
        %v1443 = vunpack.c.h.b16 %v1292
        %v1444 = vunpack.c.l.b16 %v1293
        %v1445 = vunpack.c.h.b16 %v1293
        %v1446 = vunpack.c.l.b16 %v1294
        %v1447 = vunpack.c.h.b16 %v1294
        %v1448 = vunpack.c.l.b16 %v1295
        %v1449 = vunpack.c.h.b16 %v1295
        %v1450 = vunpack.c.l.b16 %v1296
        %v1451 = vunpack.c.h.b16 %v1296
        %v1452 = vunpack.c.l.b16 %v1297
        %v1453 = vunpack.c.h.b16 %v1297
        %v1454 = vunpack.c.l.b16 %v1298
        %v1455 = vunpack.c.h.b16 %v1298
        %v1456 = vunpack.c.l.b16 %v1299
        %v1457 = vunpack.c.h.b16 %v1299
        %v1458 = vunpack.c.l.b16 %v1300
        %v1459 = vunpack.c.h.b16 %v1300
        %v1460 = vunpack.c.l.b16 %v1301
        %v1461 = vunpack.c.h.b16 %v1301
        %v1462 = vunpack.c.l.b16 %v1302
        %v1463 = vunpack.c.h.b16 %v1302
        %v1464 = vunpack.c.l.b16 %v1303
        %v1465 = vunpack.c.h.b16 %v1303
        %v1466 = vunpack.c.l.b16 %v1304
        %v1467 = vunpack.c.h.b16 %v1304
        %v1468 = vunpack.c.l.b16 %v1305
        %v1469 = vunpack.c.h.b16 %v1305
        %v1470 = vunpack.c.l.b16 %v1306
        %v1471 = vunpack.c.h.b16 %v1306
        %v1472 = vunpack.c.l.b16 %v1307
        %v1473 = vunpack.c.h.b16 %v1307
        %v1474 = vunpack.c.l.b16 %v1308
        %v1475 = vunpack.c.h.b16 %v1308
        %v1476 = vunpack.c.l.b16 %v1309
        %v1477 = vunpack.c.h.b16 %v1309
        %v1478 = vunpack.c.l.b16 %v1310
        %v1479 = vunpack.c.h.b16 %v1310
        %v1480 = vunpack.c.l.b16 %v1311
        %v1481 = vunpack.c.h.b16 %v1311
        %v1482 = vunpack.c.l.b16 %v1312
        %v1483 = vunpack.c.h.b16 %v1312
        %v1484 = vunpack.c.l.b16 %v1313
        %v1485 = vunpack.c.h.b16 %v1313
        %v1486 = vunpack.c.l.b16 %v1314
        %v1487 = vunpack.c.h.b16 %v1314
        %v1488 = vunpack.c.l.b16 %v1315
        %v1489 = vunpack.c.h.b16 %v1315
        %v1490 = vunpack.c.l.b16 %v1316
        %v1491 = vunpack.c.h.b16 %v1316
        %v1492 = vunpack.c.l.b16 %v1317
        %v1493 = vunpack.c.h.b16 %v1317
        %v1494 = vunpack.c.l.b16 %v1318
        %v1495 = vunpack.c.h.b16 %v1318
        %v1496 = vunpack.c.l.b16 %v1319
        %v1497 = vunpack.c.h.b16 %v1319
        %v1498 = vunpack.c.l.b16 %v1320
        %v1499 = vunpack.c.h.b16 %v1320
        %v1500 = vunpack.c.l.b16 %v1321
        %v1501 = vunpack.c.h.b16 %v1321
        %v1502 = vunpack.c.l.b16 %v1322
        %v1503 = vunpack.c.h.b16 %v1322
        %v1504 = vunpack.c.l.b16 %v1323
        %v1505 = vunpack.c.h.b16 %v1323
        %v1506 = vunpack.c.l.b16 %v1324
        %v1507 = vunpack.c.h.b16 %v1324
        %v1508 = vunpack.c.l.b16 %v1325
        %v1509 = vunpack.c.h.b16 %v1325
        %v1510 = vunpack.c.l.b16 %v1326
        %v1511 = vunpack.c.h.b16 %v1326
        %v1512 = vunpack.c.l.b16 %v1327
        %v1513 = vunpack.c.h.b16 %v1327
        %v1514 = vunpack.c.l.b16 %v1328
        %v1515 = vunpack.c.h.b16 %v1328
        %v1516 = vunpack.c.l.b16 %v1329
        %v1517 = vunpack.c.h.b16 %v1329
        %v1518 = vunpack.c.l.b16 %v1330
        %v1519 = vunpack.c.h.b16 %v1330
        %v1520 = vunpack.c.l.b16 %v1331
        %v1521 = vunpack.c.h.b16 %v1331
        %v1522 = vunpack.c.l.b16 %v1332
        %v1523 = vunpack.c.h.b16 %v1332
        %v1524 = vunpack.c.l.b16 %v1333
        %v1525 = vunpack.c.h.b16 %v1333
        %v1526 = vunpack.c.l.b16 %v1334
        %v1527 = vunpack.c.h.b16 %v1334
        %v1528 = vunpack.c.l.b16 %v1335
        %v1529 = vunpack.c.h.b16 %v1335
        %v1530 = vunpack.c.l.b16 %v1336
        %v1531 = vunpack.c.h.b16 %v1336
        %v1532 = vunpack.c.l.b16 %v1337
        %v1533 = vunpack.c.h.b16 %v1337
        %v1534 = vunpack.c.l.b16 %v1338
        %v1535 = vunpack.c.h.b16 %v1338
        %v1536 = vunpack.c.l.b16 %v1339
        %v1537 = vunpack.c.h.b16 %v1339
        %v1538 = vunpack.c.l.b16 %v1340
        %v1539 = vunpack.c.h.b16 %v1340
        %v1540 = vunpack.c.l.b16 %v1341
        %v1541 = vunpack.c.h.b16 %v1341
        %v1542 = vunpack.c.l.b16 %v1342
        %v1543 = vunpack.c.h.b16 %v1342
        %v1544 = vunpack.c.l.b16 %v1343
        %v1545 = vunpack.c.h.b16 %v1343
        %v1546 = vunpack.c.l.b16 %v1344
        %v1547 = vunpack.c.h.b16 %v1344
        %v1548 = vunpack.c.l.b16 %v1345
        %v1549 = vunpack.c.h.b16 %v1345
        %v1550 = vpack.c.b16 %v1424, %v1422
        %v1551 = vpack.c.b16 %v1425, %v1423
        %v1552 = vpack.c.b16 %v1428, %v1426
        %v1553 = vpack.c.b16 %v1429, %v1427
        %v1554 = vpack.c.b16 %v1432, %v1430
        %v1555 = vpack.c.b16 %v1433, %v1431
        %v1556 = vpack.c.b16 %v1436, %v1434
        %v1557 = vpack.c.b16 %v1437, %v1435
        %v1558 = vpack.c.b16 %v1440, %v1438
        %v1559 = vpack.c.b16 %v1441, %v1439
        %v1560 = vpack.c.b16 %v1444, %v1442
        %v1561 = vpack.c.b16 %v1445, %v1443
        %v1562 = vpack.c.b16 %v1448, %v1446
        %v1563 = vpack.c.b16 %v1449, %v1447
        %v1564 = vpack.c.b16 %v1452, %v1450
        %v1565 = vpack.c.b16 %v1453, %v1451
        %v1566 = vpack.c.b16 %v1456, %v1454
        %v1567 = vpack.c.b16 %v1457, %v1455
        %v1568 = vpack.c.b16 %v1460, %v1458
        %v1569 = vpack.c.b16 %v1461, %v1459
        %v1570 = vpack.c.b16 %v1464, %v1462
        %v1571 = vpack.c.b16 %v1465, %v1463
        %v1572 = vpack.c.b16 %v1468, %v1466
        %v1573 = vpack.c.b16 %v1469, %v1467
        %v1574 = vpack.c.b16 %v1472, %v1470
        %v1575 = vpack.c.b16 %v1473, %v1471
        %v1576 = vpack.c.b16 %v1476, %v1474
        %v1577 = vpack.c.b16 %v1477, %v1475
        %v1578 = vpack.c.b16 %v1480, %v1478
        %v1579 = vpack.c.b16 %v1481, %v1479
        %v1580 = vpack.c.b16 %v1484, %v1482
        %v1581 = vpack.c.b16 %v1485, %v1483
        %v1582 = vpack.c.b16 %v1488, %v1486
        %v1583 = vpack.c.b16 %v1489, %v1487
        %v1584 = vpack.c.b16 %v1492, %v1490
        %v1585 = vpack.c.b16 %v1493, %v1491
        %v1586 = vpack.c.b16 %v1496, %v1494
        %v1587 = vpack.c.b16 %v1497, %v1495
        %v1588 = vpack.c.b16 %v1500, %v1498
        %v1589 = vpack.c.b16 %v1501, %v1499
        %v1590 = vpack.c.b16 %v1504, %v1502
        %v1591 = vpack.c.b16 %v1505, %v1503
        %v1592 = vpack.c.b16 %v1508, %v1506
        %v1593 = vpack.c.b16 %v1509, %v1507
        %v1594 = vpack.c.b16 %v1512, %v1510
        %v1595 = vpack.c.b16 %v1513, %v1511
        %v1596 = vpack.c.b16 %v1516, %v1514
        %v1597 = vpack.c.b16 %v1517, %v1515
        %v1598 = vpack.c.b16 %v1520, %v1518
        %v1599 = vpack.c.b16 %v1521, %v1519
        %v1600 = vpack.c.b16 %v1524, %v1522
        %v1601 = vpack.c.b16 %v1525, %v1523
        %v1602 = vpack.c.b16 %v1528, %v1526
        %v1603 = vpack.c.b16 %v1529, %v1527
        %v1604 = vpack.c.b16 %v1532, %v1530
        %v1605 = vpack.c.b16 %v1533, %v1531
        %v1606 = vpack.c.b16 %v1536, %v1534
        %v1607 = vpack.c.b16 %v1537, %v1535
        %v1608 = vpack.c.b16 %v1540, %v1538
        %v1609 = vpack.c.b16 %v1541, %v1539
        %v1610 = vpack.c.b16 %v1544, %v1542
        %v1611 = vpack.c.b16 %v1545, %v1543
        %v1612 = vpack.c.b16 %v1548, %v1546
        %v1613 = vpack.c.b16 %v1549, %v1547
        %1678 = vmatprep.subr.bf16.mxu0 %v1551
        %1679 = vmatpush1.bf16.msra.mxu0 %v1550
        %1680 = vmatprep.subr.bf16.mxu0 %v1553
        %1681 = vmatpush1.bf16.msra.mxu0 %v1552
        %1682 = vmatprep.subr.bf16.mxu0 %v1555
        %1683 = vmatpush1.bf16.msra.mxu0 %v1554
        %1684 = vmatprep.subr.bf16.mxu0 %v1557
        %1685 = vmatpush1.bf16.msra.mxu0 %v1556
        %1686 = vmatprep.subr.bf16.mxu0 %v1559
        %1687 = vmatpush1.bf16.msra.mxu0 %v1558
        %1688 = vmatprep.subr.bf16.mxu0 %v1561
        %1689 = vmatpush1.bf16.msra.mxu0 %v1560
        %1690 = vmatprep.subr.bf16.mxu0 %v1563
        %1691 = vmatpush1.bf16.msra.mxu0 %v1562
        %1692 = vmatprep.subr.bf16.mxu0 %v1565
        %1693 = vmatpush1.bf16.msra.mxu0 %v1564
        %1694 = vmatprep.subr.bf16.mxu0 %v1567
        %1695 = vmatpush1.bf16.msra.mxu0 %v1566
        %1696 = vmatprep.subr.bf16.mxu0 %v1569
        %1697 = vmatpush1.bf16.msra.mxu0 %v1568
        %1698 = vmatprep.subr.bf16.mxu0 %v1571
        %1699 = vmatpush1.bf16.msra.mxu0 %v1570
        %1700 = vmatprep.subr.bf16.mxu0 %v1573
        %1701 = vmatpush1.bf16.msra.mxu0 %v1572
        %1702 = vmatprep.subr.bf16.mxu0 %v1575
        %1703 = vmatpush1.bf16.msra.mxu0 %v1574
        %1704 = vmatprep.subr.bf16.mxu0 %v1577
        %1705 = vmatpush1.bf16.msra.mxu0 %v1576
        %1706 = vmatprep.subr.bf16.mxu0 %v1579
        %1707 = vmatpush1.bf16.msra.mxu0 %v1578
        %1708 = vmatprep.subr.bf16.mxu0 %v1581
        %1709 = vmatpush1.bf16.msra.mxu0 %v1580
        %1710 = vmatprep.mubr.bf16.mxu0 %v1219
        %1711 = vmatmul.mubr.bf16.gmra.mrb[0].mxu0 %v1218
        %v1712 = vpop.f32.mrb[0].mxu0
        %v1713 = vadd.f32 %v1351, %v1712
        %v1714 = vpop.f32.mrb[0].mxu0
        %v1715 = vadd.f32 %v1355, %v1714
        %v1716 = vpop.f32.mrb[0].mxu0
        %v1717 = vadd.f32 %v1351, %v1716
        %v1718 = vpop.f32.mrb[0].mxu0
        %v1719 = vadd.f32 %v1355, %v1718
        %1720 = vmatprep.mubr.bf16.mxu0 %v1223
        %1721 = vmatmul.mubr.bf16.gmra.mrb[0].mxu0 %v1222
        %v1722 = vpop.f32.mrb[0].mxu0
        %v1723 = vadd.f32 %v1351, %v1722
        %v1724 = vpop.f32.mrb[0].mxu0
        %v1725 = vadd.f32 %v1355, %v1724
        %v1726 = vpop.f32.mrb[0].mxu0
        %v1727 = vadd.f32 %v1351, %v1726
        %v1728 = vpop.f32.mrb[0].mxu0
        %v1729 = vadd.f32 %v1355, %v1728
        %1730 = vmatprep.mubr.bf16.mxu0 %v1227
        %1731 = vmatmul.mubr.bf16.gmra.mrb[0].mxu0 %v1226
        %v1732 = vpop.f32.mrb[0].mxu0
        %v1733 = vadd.f32 %v1351, %v1732
        %v1734 = vpop.f32.mrb[0].mxu0
        %v1735 = vadd.f32 %v1355, %v1734
        %v1736 = vpop.f32.mrb[0].mxu0
        %v1737 = vadd.f32 %v1351, %v1736
        %v1738 = vpop.f32.mrb[0].mxu0
        %v1739 = vadd.f32 %v1355, %v1738
        %1740 = vmatprep.mubr.bf16.mxu0 %v1231
        %1741 = vmatmul.mubr.bf16.gmra.mrb[0].mxu0 %v1230
        %v1742 = vpop.f32.mrb[0].mxu0
        %v1743 = vadd.f32 %v1351, %v1742
        %v1744 = vpop.f32.mrb[0].mxu0
        %v1745 = vadd.f32 %v1355, %v1744
        %v1746 = vpop.f32.mrb[0].mxu0
        %v1747 = vadd.f32 %v1351, %v1746
        %v1748 = vpop.f32.mrb[0].mxu0
        %v1749 = vadd.f32 %v1355, %v1748
        %1750 = vmatprep.mubr.bf16.mxu0 %v1235
        %1751 = vmatmul.mubr.bf16.gmra.mrb[0].mxu0 %v1234
        %v1752 = vpop.f32.mrb[0].mxu0
        %v1753 = vadd.f32 %v1351, %v1752
        %v1754 = vpop.f32.mrb[0].mxu0
        %v1755 = vadd.f32 %v1355, %v1754
        %v1756 = vpop.f32.mrb[0].mxu0
        %v1757 = vadd.f32 %v1351, %v1756
        %v1758 = vpop.f32.mrb[0].mxu0
        %v1759 = vadd.f32 %v1355, %v1758
        %1760 = vmatprep.mubr.bf16.mxu0 %v1239
        %1761 = vmatmul.mubr.bf16.gmra.mrb[0].mxu0 %v1238
        %v1762 = vpop.f32.mrb[0].mxu0
        %v1763 = vadd.f32 %v1351, %v1762
        %v1764 = vpop.f32.mrb[0].mxu0
        %v1765 = vadd.f32 %v1355, %v1764
        %v1766 = vpop.f32.mrb[0].mxu0
        %v1767 = vadd.f32 %v1351, %v1766
        %v1768 = vpop.f32.mrb[0].mxu0
        %v1769 = vadd.f32 %v1355, %v1768
        %1770 = vmatprep.mubr.bf16.mxu0 %v1243
        %1771 = vmatmul.mubr.bf16.gmra.mrb[0].mxu0 %v1242
        %v1772 = vpop.f32.mrb[0].mxu0
        %v1773 = vadd.f32 %v1351, %v1772
        %v1774 = vpop.f32.mrb[0].mxu0
        %v1775 = vadd.f32 %v1355, %v1774
        %v1776 = vpop.f32.mrb[0].mxu0
        %v1777 = vadd.f32 %v1351, %v1776
        %v1778 = vpop.f32.mrb[0].mxu0
        %v1779 = vadd.f32 %v1355, %v1778
        %1780 = vmatprep.mubr.bf16.mxu0 %v1247
        %1781 = vmatmul.mubr.bf16.gmra.mrb[0].mxu0 %v1246
        %v1782 = vpop.f32.mrb[0].mxu0
        %v1783 = vadd.f32 %v1351, %v1782
        %v1784 = vpop.f32.mrb[0].mxu0
        %v1785 = vadd.f32 %v1355, %v1784
        %v1786 = vpop.f32.mrb[0].mxu0
        %v1787 = vadd.f32 %v1351, %v1786
        %v1788 = vpop.f32.mrb[0].mxu0
        %v1789 = vadd.f32 %v1355, %v1788
        %1790 = vmatprep.mubr.bf16.mxu0 %v1251
        %1791 = vmatmul.mubr.bf16.gmra.mrb[0].mxu0 %v1250
        %v1792 = vpop.f32.mrb[0].mxu0
        %v1793 = vadd.f32 %v1351, %v1792
        %v1794 = vpop.f32.mrb[0].mxu0
        %v1795 = vadd.f32 %v1355, %v1794
        %v1796 = vpop.f32.mrb[0].mxu0
        %v1797 = vadd.f32 %v1351, %v1796
        %v1798 = vpop.f32.mrb[0].mxu0
        %v1799 = vadd.f32 %v1355, %v1798
        %1800 = vmatprep.mubr.bf16.mxu0 %v1255
        %1801 = vmatmul.mubr.bf16.gmra.mrb[0].mxu0 %v1254
        %v1802 = vpop.f32.mrb[0].mxu0
        %v1803 = vadd.f32 %v1351, %v1802
        %v1804 = vpop.f32.mrb[0].mxu0
        %v1805 = vadd.f32 %v1355, %v1804
        %v1806 = vpop.f32.mrb[0].mxu0
        %v1807 = vadd.f32 %v1351, %v1806
        %v1808 = vpop.f32.mrb[0].mxu0
        %v1809 = vadd.f32 %v1355, %v1808
        %1810 = vmatprep.mubr.bf16.mxu0 %v1259
        %1811 = vmatmul.mubr.bf16.gmra.mrb[0].mxu0 %v1258
        %v1812 = vpop.f32.mrb[0].mxu0
        %v1813 = vadd.f32 %v1351, %v1812
        %v1814 = vpop.f32.mrb[0].mxu0
        %v1815 = vadd.f32 %v1355, %v1814
        %v1816 = vpop.f32.mrb[0].mxu0
        %v1817 = vadd.f32 %v1351, %v1816
        %v1818 = vpop.f32.mrb[0].mxu0
        %v1819 = vadd.f32 %v1355, %v1818
        %1820 = vmatprep.mubr.bf16.mxu0 %v1263
        %1821 = vmatmul.mubr.bf16.gmra.mrb[0].mxu0 %v1262
        %v1822 = vpop.f32.mrb[0].mxu0
        %v1823 = vadd.f32 %v1351, %v1822
        %v1824 = vpop.f32.mrb[0].mxu0
        %v1825 = vadd.f32 %v1355, %v1824
        %v1826 = vpop.f32.mrb[0].mxu0
        %v1827 = vadd.f32 %v1351, %v1826
        %v1828 = vpop.f32.mrb[0].mxu0
        %v1829 = vadd.f32 %v1355, %v1828
        %1830 = vmatprep.mubr.bf16.mxu0 %v1267
        %1831 = vmatmul.mubr.bf16.gmra.mrb[0].mxu0 %v1266
        %v1832 = vpop.f32.mrb[0].mxu0
        %v1833 = vadd.f32 %v1351, %v1832
        %v1834 = vpop.f32.mrb[0].mxu0
        %v1835 = vadd.f32 %v1355, %v1834
        %v1836 = vpop.f32.mrb[0].mxu0
        %v1837 = vadd.f32 %v1351, %v1836
        %v1838 = vpop.f32.mrb[0].mxu0
        %v1839 = vadd.f32 %v1355, %v1838
        %1840 = vmatprep.mubr.bf16.mxu0 %v1271
        %1841 = vmatmul.mubr.bf16.gmra.mrb[0].mxu0 %v1270
        %v1842 = vpop.f32.mrb[0].mxu0
        %v1843 = vadd.f32 %v1351, %v1842
        %v1844 = vpop.f32.mrb[0].mxu0
        %v1845 = vadd.f32 %v1355, %v1844
        %v1846 = vpop.f32.mrb[0].mxu0
        %v1847 = vadd.f32 %v1351, %v1846
        %v1848 = vpop.f32.mrb[0].mxu0
        %v1849 = vadd.f32 %v1355, %v1848
        %1850 = vmatprep.mubr.bf16.mxu0 %v1275
        %1851 = vmatmul.mubr.bf16.gmra.mrb[0].mxu0 %v1274
        %v1852 = vpop.f32.mrb[0].mxu0
        %v1853 = vadd.f32 %v1351, %v1852
        %v1854 = vpop.f32.mrb[0].mxu0
        %v1855 = vadd.f32 %v1355, %v1854
        %v1856 = vpop.f32.mrb[0].mxu0
        %v1857 = vadd.f32 %v1351, %v1856
        %v1858 = vpop.f32.mrb[0].mxu0
        %v1859 = vadd.f32 %v1355, %v1858
        %1860 = vmatprep.mubr.bf16.mxu0 %v1279
        %1861 = vmatmul.mubr.bf16.gmra.mrb[0].mxu0 %v1278
        %v1862 = vpop.f32.mrb[0].mxu0
        %v1863 = vadd.f32 %v1351, %v1862
        %v1864 = vpop.f32.mrb[0].mxu0
        %v1865 = vadd.f32 %v1355, %v1864
        %v1866 = vpop.f32.mrb[0].mxu0
        %v1867 = vadd.f32 %v1351, %v1866
        %v1868 = vpop.f32.mrb[0].mxu0
        %v1869 = vadd.f32 %v1355, %v1868
        %1870 = vdwg.mxu0
        %1871 = vmatprep.subr.bf16.mxu0 %v1583
        %1872 = vmatpush1.bf16.msra.mxu0 %v1582
        %1873 = vmatprep.subr.bf16.mxu0 %v1585
        %1874 = vmatpush1.bf16.msra.mxu0 %v1584
        %1875 = vmatprep.subr.bf16.mxu0 %v1587
        %1876 = vmatpush1.bf16.msra.mxu0 %v1586
        %1877 = vmatprep.subr.bf16.mxu0 %v1589
        %1878 = vmatpush1.bf16.msra.mxu0 %v1588
        %1879 = vmatprep.subr.bf16.mxu0 %v1591
        %1880 = vmatpush1.bf16.msra.mxu0 %v1590
        %1881 = vmatprep.subr.bf16.mxu0 %v1593
        %1882 = vmatpush1.bf16.msra.mxu0 %v1592
        %1883 = vmatprep.subr.bf16.mxu0 %v1595
        %1884 = vmatpush1.bf16.msra.mxu0 %v1594
        %1885 = vmatprep.subr.bf16.mxu0 %v1597
        %1886 = vmatpush1.bf16.msra.mxu0 %v1596
        %1887 = vmatprep.subr.bf16.mxu0 %v1599
        %1888 = vmatpush1.bf16.msra.mxu0 %v1598
        %1889 = vmatprep.subr.bf16.mxu0 %v1601
        %1890 = vmatpush1.bf16.msra.mxu0 %v1600
        %1891 = vmatprep.subr.bf16.mxu0 %v1603
        %1892 = vmatpush1.bf16.msra.mxu0 %v1602
        %1893 = vmatprep.subr.bf16.mxu0 %v1605
        %1894 = vmatpush1.bf16.msra.mxu0 %v1604
        %1895 = vmatprep.subr.bf16.mxu0 %v1607
        %1896 = vmatpush1.bf16.msra.mxu0 %v1606
        %1897 = vmatprep.subr.bf16.mxu0 %v1609
        %1898 = vmatpush1.bf16.msra.mxu0 %v1608
        %1899 = vmatprep.subr.bf16.mxu0 %v1611
        %1900 = vmatpush1.bf16.msra.mxu0 %v1610
        %1901 = vmatprep.subr.bf16.mxu0 %v1613
        %1902 = vmatpush1.bf16.msra.mxu0 %v1612
        %1903 = vmatprep.mubr.bf16.mxu0 %v1221
        %1904 = vmatmul.mubr.bf16.gmra.mrb[0].mxu0 %v1220
        %v1905 = vpop.f32.mrb[0].mxu0
        %v1906 = vadd.f32 %v1713, %v1905
        %v1907 = vpop.f32.mrb[0].mxu0
        %v1908 = vadd.f32 %v1715, %v1907
        %v1909 = vpop.f32.mrb[0].mxu0
        %v1910 = vadd.f32 %v1717, %v1909
        %v1911 = vpop.f32.mrb[0].mxu0
        %v1912 = vadd.f32 %v1719, %v1911
        %1913 = vmatprep.mubr.bf16.mxu0 %v1225
        %1914 = vmatmul.mubr.bf16.gmra.mrb[0].mxu0 %v1224
        %v1915 = vpop.f32.mrb[0].mxu0
        %v1916 = vadd.f32 %v1723, %v1915
        %v1917 = vpop.f32.mrb[0].mxu0
        %v1918 = vadd.f32 %v1725, %v1917
        %v1919 = vpop.f32.mrb[0].mxu0
        %v1920 = vadd.f32 %v1727, %v1919
        %v1921 = vpop.f32.mrb[0].mxu0
        %v1922 = vadd.f32 %v1729, %v1921
        %1923 = vmatprep.mubr.bf16.mxu0 %v1229
        %1924 = vmatmul.mubr.bf16.gmra.mrb[0].mxu0 %v1228
        %v1925 = vpop.f32.mrb[0].mxu0
        %v1926 = vadd.f32 %v1733, %v1925
        %v1927 = vpop.f32.mrb[0].mxu0
        %v1928 = vadd.f32 %v1735, %v1927
        %v1929 = vpop.f32.mrb[0].mxu0
        %v1930 = vadd.f32 %v1737, %v1929
        %v1931 = vpop.f32.mrb[0].mxu0
        %v1932 = vadd.f32 %v1739, %v1931
        %1933 = vmatprep.mubr.bf16.mxu0 %v1233
        %1934 = vmatmul.mubr.bf16.gmra.mrb[0].mxu0 %v1232
        %v1935 = vpop.f32.mrb[0].mxu0
        %v1936 = vadd.f32 %v1743, %v1935
        %v1937 = vpop.f32.mrb[0].mxu0
        %v1938 = vadd.f32 %v1745, %v1937
        %v1939 = vpop.f32.mrb[0].mxu0
        %v1940 = vadd.f32 %v1747, %v1939
        %v1941 = vpop.f32.mrb[0].mxu0
        %v1942 = vadd.f32 %v1749, %v1941
        %1943 = vmatprep.mubr.bf16.mxu0 %v1237
        %1944 = vmatmul.mubr.bf16.gmra.mrb[0].mxu0 %v1236
        %v1945 = vpop.f32.mrb[0].mxu0
        %v1946 = vadd.f32 %v1753, %v1945
        %v1947 = vpop.f32.mrb[0].mxu0
        %v1948 = vadd.f32 %v1755, %v1947
        %v1949 = vpop.f32.mrb[0].mxu0
        %v1950 = vadd.f32 %v1757, %v1949
        %v1951 = vpop.f32.mrb[0].mxu0
        %v1952 = vadd.f32 %v1759, %v1951
        %1953 = vmatprep.mubr.bf16.mxu0 %v1241
        %1954 = vmatmul.mubr.bf16.gmra.mrb[0].mxu0 %v1240
        %v1955 = vpop.f32.mrb[0].mxu0
        %v1956 = vadd.f32 %v1763, %v1955
        %v1957 = vpop.f32.mrb[0].mxu0
        %v1958 = vadd.f32 %v1765, %v1957
        %v1959 = vpop.f32.mrb[0].mxu0
        %v1960 = vadd.f32 %v1767, %v1959
        %v1961 = vpop.f32.mrb[0].mxu0
        %v1962 = vadd.f32 %v1769, %v1961
        %1963 = vmatprep.mubr.bf16.mxu0 %v1245
        %1964 = vmatmul.mubr.bf16.gmra.mrb[0].mxu0 %v1244
        %v1965 = vpop.f32.mrb[0].mxu0
        %v1966 = vadd.f32 %v1773, %v1965
        %v1967 = vpop.f32.mrb[0].mxu0
        %v1968 = vadd.f32 %v1775, %v1967
        %v1969 = vpop.f32.mrb[0].mxu0
        %v1970 = vadd.f32 %v1777, %v1969
        %v1971 = vpop.f32.mrb[0].mxu0
        %v1972 = vadd.f32 %v1779, %v1971
        %1973 = vmatprep.mubr.bf16.mxu0 %v1249
        %1974 = vmatmul.mubr.bf16.gmra.mrb[0].mxu0 %v1248
        %v1975 = vpop.f32.mrb[0].mxu0
        %v1976 = vadd.f32 %v1783, %v1975
        %v1977 = vpop.f32.mrb[0].mxu0
        %v1978 = vadd.f32 %v1785, %v1977
        %v1979 = vpop.f32.mrb[0].mxu0
        %v1980 = vadd.f32 %v1787, %v1979
        %v1981 = vpop.f32.mrb[0].mxu0
        %v1982 = vadd.f32 %v1789, %v1981
        %1983 = vmatprep.mubr.bf16.mxu0 %v1253
        %1984 = vmatmul.mubr.bf16.gmra.mrb[0].mxu0 %v1252
        %v1985 = vpop.f32.mrb[0].mxu0
        %v1986 = vadd.f32 %v1793, %v1985
        %v1987 = vpop.f32.mrb[0].mxu0
        %v1988 = vadd.f32 %v1795, %v1987
        %v1989 = vpop.f32.mrb[0].mxu0
        %v1990 = vadd.f32 %v1797, %v1989
        %v1991 = vpop.f32.mrb[0].mxu0
        %v1992 = vadd.f32 %v1799, %v1991
        %1993 = vmatprep.mubr.bf16.mxu0 %v1257
        %1994 = vmatmul.mubr.bf16.gmra.mrb[0].mxu0 %v1256
        %v1995 = vpop.f32.mrb[0].mxu0
        %v1996 = vadd.f32 %v1803, %v1995
        %v1997 = vpop.f32.mrb[0].mxu0
        %v1998 = vadd.f32 %v1805, %v1997
        %v1999 = vpop.f32.mrb[0].mxu0
        %v2000 = vadd.f32 %v1807, %v1999
        %v2001 = vpop.f32.mrb[0].mxu0
        %v2002 = vadd.f32 %v1809, %v2001
        %2003 = vmatprep.mubr.bf16.mxu0 %v1261
        %2004 = vmatmul.mubr.bf16.gmra.mrb[0].mxu0 %v1260
        %v2005 = vpop.f32.mrb[0].mxu0
        %v2006 = vadd.f32 %v1813, %v2005
        %v2007 = vpop.f32.mrb[0].mxu0
        %v2008 = vadd.f32 %v1815, %v2007
        %v2009 = vpop.f32.mrb[0].mxu0
        %v2010 = vadd.f32 %v1817, %v2009
        %v2011 = vpop.f32.mrb[0].mxu0
        %v2012 = vadd.f32 %v1819, %v2011
        %2013 = vmatprep.mubr.bf16.mxu0 %v1265
        %2014 = vmatmul.mubr.bf16.gmra.mrb[0].mxu0 %v1264
        %v2015 = vpop.f32.mrb[0].mxu0
        %v2016 = vadd.f32 %v1823, %v2015
        %v2017 = vpop.f32.mrb[0].mxu0
        %v2018 = vadd.f32 %v1825, %v2017
        %v2019 = vpop.f32.mrb[0].mxu0
        %v2020 = vadd.f32 %v1827, %v2019
        %v2021 = vpop.f32.mrb[0].mxu0
        %v2022 = vadd.f32 %v1829, %v2021
        %2023 = vmatprep.mubr.bf16.mxu0 %v1269
        %2024 = vmatmul.mubr.bf16.gmra.mrb[0].mxu0 %v1268
        %v2025 = vpop.f32.mrb[0].mxu0
        %v2026 = vadd.f32 %v1833, %v2025
        %v2027 = vpop.f32.mrb[0].mxu0
        %v2028 = vadd.f32 %v1835, %v2027
        %v2029 = vpop.f32.mrb[0].mxu0
        %v2030 = vadd.f32 %v1837, %v2029
        %v2031 = vpop.f32.mrb[0].mxu0
        %v2032 = vadd.f32 %v1839, %v2031
        %2033 = vmatprep.mubr.bf16.mxu0 %v1273
        %2034 = vmatmul.mubr.bf16.gmra.mrb[0].mxu0 %v1272
        %v2035 = vpop.f32.mrb[0].mxu0
        %v2036 = vadd.f32 %v1843, %v2035
        %v2037 = vpop.f32.mrb[0].mxu0
        %v2038 = vadd.f32 %v1845, %v2037
        %v2039 = vpop.f32.mrb[0].mxu0
        %v2040 = vadd.f32 %v1847, %v2039
        %v2041 = vpop.f32.mrb[0].mxu0
        %v2042 = vadd.f32 %v1849, %v2041
        %2043 = vmatprep.mubr.bf16.mxu0 %v1277
        %2044 = vmatmul.mubr.bf16.gmra.mrb[0].mxu0 %v1276
        %v2045 = vpop.f32.mrb[0].mxu0
        %v2046 = vadd.f32 %v1853, %v2045
        %v2047 = vpop.f32.mrb[0].mxu0
        %v2048 = vadd.f32 %v1855, %v2047
        %v2049 = vpop.f32.mrb[0].mxu0
        %v2050 = vadd.f32 %v1857, %v2049
        %v2051 = vpop.f32.mrb[0].mxu0
        %v2052 = vadd.f32 %v1859, %v2051
        %2053 = vmatprep.mubr.bf16.mxu0 %v1281
        %2054 = vmatmul.mubr.bf16.gmra.mrb[0].mxu0 %v1280
        %v2055 = vpop.f32.mrb[0].mxu0
        %v2056 = vadd.f32 %v1863, %v2055
        %v2057 = vpop.f32.mrb[0].mxu0
        %v2058 = vadd.f32 %v1865, %v2057
        %v2059 = vpop.f32.mrb[0].mxu0
        %v2060 = vadd.f32 %v1867, %v2059
        %v2061 = vpop.f32.mrb[0].mxu0
        %v2062 = vadd.f32 %v1869, %v2061
        %2063 = vdwg.mxu0
        %v2064 = vmax.f32 %v1906, 0.0
        %v2065 = vmax.f32 %v1908, 0.0
        %v2066 = vmax.f32 %v1910, 0.0
        %v2067 = vmax.f32 %v1912, 0.0
        %v2068 = vmax.f32 %v1916, 0.0
        %v2069 = vmax.f32 %v1918, 0.0
        %v2070 = vmax.f32 %v1920, 0.0
        %v2071 = vmax.f32 %v1922, 0.0
        %v2072 = vmax.f32 %v1926, 0.0
        %v2073 = vmax.f32 %v1928, 0.0
        %v2074 = vmax.f32 %v1930, 0.0
        %v2075 = vmax.f32 %v1932, 0.0
        %v2076 = vmax.f32 %v1936, 0.0
        %v2077 = vmax.f32 %v1938, 0.0
        %v2078 = vmax.f32 %v1940, 0.0
        %v2079 = vmax.f32 %v1942, 0.0
        %v2080 = vmax.f32 %v1946, 0.0
        %v2081 = vmax.f32 %v1948, 0.0
        %v2082 = vmax.f32 %v1950, 0.0
        %v2083 = vmax.f32 %v1952, 0.0
        %v2084 = vmax.f32 %v1956, 0.0
        %v2085 = vmax.f32 %v1958, 0.0
        %v2086 = vmax.f32 %v1960, 0.0
        %v2087 = vmax.f32 %v1962, 0.0
        %v2088 = vmax.f32 %v1966, 0.0
        %v2089 = vmax.f32 %v1968, 0.0
        %v2090 = vmax.f32 %v1970, 0.0
        %v2091 = vmax.f32 %v1972, 0.0
        %v2092 = vmax.f32 %v1976, 0.0
        %v2093 = vmax.f32 %v1978, 0.0
        %v2094 = vmax.f32 %v1980, 0.0
        %v2095 = vmax.f32 %v1982, 0.0
        %v2096 = vmax.f32 %v1986, 0.0
        %v2097 = vmax.f32 %v1988, 0.0
        %v2098 = vmax.f32 %v1990, 0.0
        %v2099 = vmax.f32 %v1992, 0.0
        %v2100 = vmax.f32 %v1996, 0.0
        %v2101 = vmax.f32 %v1998, 0.0
        %v2102 = vmax.f32 %v2000, 0.0
        %v2103 = vmax.f32 %v2002, 0.0
        %v2104 = vmax.f32 %v2006, 0.0
        %v2105 = vmax.f32 %v2008, 0.0
        %v2106 = vmax.f32 %v2010, 0.0
        %v2107 = vmax.f32 %v2012, 0.0
        %v2108 = vmax.f32 %v2016, 0.0
        %v2109 = vmax.f32 %v2018, 0.0
        %v2110 = vmax.f32 %v2020, 0.0
        %v2111 = vmax.f32 %v2022, 0.0
        %v2112 = vmax.f32 %v2026, 0.0
        %v2113 = vmax.f32 %v2028, 0.0
        %v2114 = vmax.f32 %v2030, 0.0
        %v2115 = vmax.f32 %v2032, 0.0
        %v2116 = vmax.f32 %v2036, 0.0
        %v2117 = vmax.f32 %v2038, 0.0
        %v2118 = vmax.f32 %v2040, 0.0
        %v2119 = vmax.f32 %v2042, 0.0
        %v2120 = vmax.f32 %v2046, 0.0
        %v2121 = vmax.f32 %v2048, 0.0
        %v2122 = vmax.f32 %v2050, 0.0
        %v2123 = vmax.f32 %v2052, 0.0
        %v2124 = vmax.f32 %v2056, 0.0
        %v2125 = vmax.f32 %v2058, 0.0
        %v2126 = vmax.f32 %v2060, 0.0
        %v2127 = vmax.f32 %v2062, 0.0
        %v2128 = vpack.c.bf16 %v2066, %v2064
        %v2129 = vpack.c.bf16 %v2067, %v2065
        %v2130 = vpack.c.bf16 %v2070, %v2068
        %v2131 = vpack.c.bf16 %v2071, %v2069
        %v2132 = vpack.c.bf16 %v2074, %v2072
        %v2133 = vpack.c.bf16 %v2075, %v2073
        %v2134 = vpack.c.bf16 %v2078, %v2076
        %v2135 = vpack.c.bf16 %v2079, %v2077
        %v2136 = vpack.c.bf16 %v2082, %v2080
        %v2137 = vpack.c.bf16 %v2083, %v2081
        %v2138 = vpack.c.bf16 %v2086, %v2084
        %v2139 = vpack.c.bf16 %v2087, %v2085
        %v2140 = vpack.c.bf16 %v2090, %v2088
        %v2141 = vpack.c.bf16 %v2091, %v2089
        %v2142 = vpack.c.bf16 %v2094, %v2092
        %v2143 = vpack.c.bf16 %v2095, %v2093
        %v2144 = vpack.c.bf16 %v2098, %v2096
        %v2145 = vpack.c.bf16 %v2099, %v2097
        %v2146 = vpack.c.bf16 %v2102, %v2100
        %v2147 = vpack.c.bf16 %v2103, %v2101
        %v2148 = vpack.c.bf16 %v2106, %v2104
        %v2149 = vpack.c.bf16 %v2107, %v2105
        %v2150 = vpack.c.bf16 %v2110, %v2108
        %v2151 = vpack.c.bf16 %v2111, %v2109
        %v2152 = vpack.c.bf16 %v2114, %v2112
        %v2153 = vpack.c.bf16 %v2115, %v2113
        %v2154 = vpack.c.bf16 %v2118, %v2116
        %v2155 = vpack.c.bf16 %v2119, %v2117
        %v2156 = vpack.c.bf16 %v2122, %v2120
        %v2157 = vpack.c.bf16 %v2123, %v2121
        %v2158 = vpack.c.bf16 %v2126, %v2124
        %v2159 = vpack.c.bf16 %v2127, %v2125
        %v2160 = vld [vmem:[%s5] sm:$0xf]
        %v2161 = vld [vmem:[%s5 + $0x4] sm:$0xf]
        %v2162 = vld [vmem:[%s5 + $0x8] sm:$0xf]
        %v2163 = vld [vmem:[%s5 + $0xc] sm:$0xf]
        %v2164 = vld [vmem:[%s5 + $0x10] sm:$0xf]
        %v2165 = vld [vmem:[%s5 + $0x14] sm:$0xf]
        %v2166 = vld [vmem:[%s5 + $0x18] sm:$0xf]
        %v2167 = vld [vmem:[%s5 + $0x1c] sm:$0xf]
        %v2168 = vld [vmem:[%s5 + $0x20] sm:$0xf]
        %v2169 = vld [vmem:[%s5 + $0x24] sm:$0xf]
        %v2170 = vld [vmem:[%s5 + $0x28] sm:$0xf]
        %v2171 = vld [vmem:[%s5 + $0x2c] sm:$0xf]
        %v2172 = vld [vmem:[%s5 + $0x30] sm:$0xf]
        %v2173 = vld [vmem:[%s5 + $0x34] sm:$0xf]
        %v2174 = vld [vmem:[%s5 + $0x38] sm:$0xf]
        %v2175 = vld [vmem:[%s5 + $0x3c] sm:$0xf]
        %v2176 = vld [vmem:[%s5 + $0x40] sm:$0xf]
        %v2177 = vld [vmem:[%s5 + $0x44] sm:$0xf]
        %v2178 = vld [vmem:[%s5 + $0x48] sm:$0xf]
        %v2179 = vld [vmem:[%s5 + $0x4c] sm:$0xf]
        %v2180 = vld [vmem:[%s5 + $0x50] sm:$0xf]
        %v2181 = vld [vmem:[%s5 + $0x54] sm:$0xf]
        %v2182 = vld [vmem:[%s5 + $0x58] sm:$0xf]
        %v2183 = vld [vmem:[%s5 + $0x5c] sm:$0xf]
        %v2184 = vld [vmem:[%s5 + $0x60] sm:$0xf]
        %v2185 = vld [vmem:[%s5 + $0x64] sm:$0xf]
        %v2186 = vld [vmem:[%s5 + $0x68] sm:$0xf]
        %v2187 = vld [vmem:[%s5 + $0x6c] sm:$0xf]
        %v2188 = vld [vmem:[%s5 + $0x70] sm:$0xf]
        %v2189 = vld [vmem:[%s5 + $0x74] sm:$0xf]
        %v2190 = vld [vmem:[%s5 + $0x78] sm:$0xf]
        %v2191 = vld [vmem:[%s5 + $0x7c] sm:$0xf]
        %v2192 = vld [vmem:[%s6] sm:$0x1]
        %v2194 = vlaneseq
        %v2195 = vshrl.u32 %v2194, 7
        %v2196 = vsub.s32 0, %v2195
        %v2197 = vrot.slane %v2192, %v2196
        %v2231 = vunpack.c.l.b16 %v2160
        %v2232 = vunpack.c.l.b16 %v2161
        %v2233 = vunpack.c.l.b16 %v2162
        %v2234 = vunpack.c.l.b16 %v2163
        %v2235 = vunpack.c.l.b16 %v2164
        %v2236 = vunpack.c.l.b16 %v2165
        %v2237 = vunpack.c.l.b16 %v2166
        %v2238 = vunpack.c.l.b16 %v2167
        %v2239 = vunpack.c.l.b16 %v2168
        %v2240 = vunpack.c.l.b16 %v2169
        %v2241 = vunpack.c.l.b16 %v2170
        %v2242 = vunpack.c.l.b16 %v2171
        %v2243 = vunpack.c.l.b16 %v2172
        %v2244 = vunpack.c.l.b16 %v2173
        %v2245 = vunpack.c.l.b16 %v2174
        %v2246 = vunpack.c.l.b16 %v2175
        %v2247 = vunpack.c.l.b16 %v2176
        %v2248 = vunpack.c.l.b16 %v2177
        %v2249 = vunpack.c.l.b16 %v2178
        %v2250 = vunpack.c.l.b16 %v2179
        %v2251 = vunpack.c.l.b16 %v2180
        %v2252 = vunpack.c.l.b16 %v2181
        %v2253 = vunpack.c.l.b16 %v2182
        %v2254 = vunpack.c.l.b16 %v2183
        %v2255 = vunpack.c.l.b16 %v2184
        %v2256 = vunpack.c.l.b16 %v2185
        %v2257 = vunpack.c.l.b16 %v2186
        %v2258 = vunpack.c.l.b16 %v2187
        %v2259 = vunpack.c.l.b16 %v2188
        %v2260 = vunpack.c.l.b16 %v2189
        %v2261 = vunpack.c.l.b16 %v2190
        %v2262 = vunpack.c.l.b16 %v2191
        %v2263 = vpack.c.b16 %v2232, %v2231
        %v2264 = vpack.c.b16 %v2234, %v2233
        %v2265 = vpack.c.b16 %v2236, %v2235
        %v2266 = vpack.c.b16 %v2238, %v2237
        %v2267 = vpack.c.b16 %v2240, %v2239
        %v2268 = vpack.c.b16 %v2242, %v2241
        %v2269 = vpack.c.b16 %v2244, %v2243
        %v2270 = vpack.c.b16 %v2246, %v2245
        %v2271 = vpack.c.b16 %v2248, %v2247
        %v2272 = vpack.c.b16 %v2250, %v2249
        %v2273 = vpack.c.b16 %v2252, %v2251
        %v2274 = vpack.c.b16 %v2254, %v2253
        %v2275 = vpack.c.b16 %v2256, %v2255
        %v2276 = vpack.c.b16 %v2258, %v2257
        %v2277 = vpack.c.b16 %v2260, %v2259
        %v2278 = vpack.c.b16 %v2262, %v2261
        %2295 = vmatprep.subr.bf16.mxu0 0
        %2296 = vmatpush1.bf16.msra.mxu0 %v2263
        %2297 = vmatprep.subr.bf16.mxu0 0
        %2298 = vmatpush1.bf16.msra.mxu0 %v2264
        %2299 = vmatprep.subr.bf16.mxu0 0
        %2300 = vmatpush1.bf16.msra.mxu0 %v2265
        %2301 = vmatprep.subr.bf16.mxu0 0
        %2302 = vmatpush1.bf16.msra.mxu0 %v2266
        %2303 = vmatprep.subr.bf16.mxu0 0
        %2304 = vmatpush1.bf16.msra.mxu0 %v2267
        %2305 = vmatprep.subr.bf16.mxu0 0
        %2306 = vmatpush1.bf16.msra.mxu0 %v2268
        %2307 = vmatprep.subr.bf16.mxu0 0
        %2308 = vmatpush1.bf16.msra.mxu0 %v2269
        %2309 = vmatprep.subr.bf16.mxu0 0
        %2310 = vmatpush1.bf16.msra.mxu0 %v2270
        %2311 = vmatprep.subr.bf16.mxu0 0
        %2312 = vmatpush1.bf16.msra.mxu0 %v2271
        %2313 = vmatprep.subr.bf16.mxu0 0
        %2314 = vmatpush1.bf16.msra.mxu0 %v2272
        %2315 = vmatprep.subr.bf16.mxu0 0
        %2316 = vmatpush1.bf16.msra.mxu0 %v2273
        %2317 = vmatprep.subr.bf16.mxu0 0
        %2318 = vmatpush1.bf16.msra.mxu0 %v2274
        %2319 = vmatprep.subr.bf16.mxu0 0
        %2320 = vmatpush1.bf16.msra.mxu0 %v2275
        %2321 = vmatprep.subr.bf16.mxu0 0
        %2322 = vmatpush1.bf16.msra.mxu0 %v2276
        %2323 = vmatprep.subr.bf16.mxu0 0
        %2324 = vmatpush1.bf16.msra.mxu0 %v2277
        %2325 = vmatprep.subr.bf16.mxu0 0
        %2326 = vmatpush1.bf16.msra.mxu0 %v2278
        %2327 = vmatprep.mubr.bf16.mxu0 %v2129
        %2328 = vmatmul.mubr.bf16.gmra.mrb[0].mxu0 %v2128
        %v2329 = vpop.f32.mrb[0].mxu0
        %v2330 = vadd.f32 %v2197, %v2329
        %v2331 = vpop.f32.mrb[0].mxu0
        %v2332 = vpop.f32.mrb[0].mxu0
        %v2333 = vadd.f32 %v2197, %v2332
        %v2334 = vpop.f32.mrb[0].mxu0
        %2335 = vmatprep.mubr.bf16.mxu0 %v2131
        %2336 = vmatmul.mubr.bf16.gmra.mrb[0].mxu0 %v2130
        %v2337 = vpop.f32.mrb[0].mxu0
        %v2338 = vadd.f32 %v2197, %v2337
        %v2339 = vpop.f32.mrb[0].mxu0
        %v2340 = vpop.f32.mrb[0].mxu0
        %v2341 = vadd.f32 %v2197, %v2340
        %v2342 = vpop.f32.mrb[0].mxu0
        %2343 = vmatprep.mubr.bf16.mxu0 %v2133
        %2344 = vmatmul.mubr.bf16.gmra.mrb[0].mxu0 %v2132
        %v2345 = vpop.f32.mrb[0].mxu0
        %v2346 = vadd.f32 %v2197, %v2345
        %v2347 = vpop.f32.mrb[0].mxu0
        %v2348 = vpop.f32.mrb[0].mxu0
        %v2349 = vadd.f32 %v2197, %v2348
        %v2350 = vpop.f32.mrb[0].mxu0
        %2351 = vmatprep.mubr.bf16.mxu0 %v2135
        %2352 = vmatmul.mubr.bf16.gmra.mrb[0].mxu0 %v2134
        %v2353 = vpop.f32.mrb[0].mxu0
        %v2354 = vadd.f32 %v2197, %v2353
        %v2355 = vpop.f32.mrb[0].mxu0
        %v2356 = vpop.f32.mrb[0].mxu0
        %v2357 = vadd.f32 %v2197, %v2356
        %v2358 = vpop.f32.mrb[0].mxu0
        %2359 = vmatprep.mubr.bf16.mxu0 %v2137
        %2360 = vmatmul.mubr.bf16.gmra.mrb[0].mxu0 %v2136
        %v2361 = vpop.f32.mrb[0].mxu0
        %v2362 = vadd.f32 %v2197, %v2361
        %v2363 = vpop.f32.mrb[0].mxu0
        %v2364 = vpop.f32.mrb[0].mxu0
        %v2365 = vadd.f32 %v2197, %v2364
        %v2366 = vpop.f32.mrb[0].mxu0
        %2367 = vmatprep.mubr.bf16.mxu0 %v2139
        %2368 = vmatmul.mubr.bf16.gmra.mrb[0].mxu0 %v2138
        %v2369 = vpop.f32.mrb[0].mxu0
        %v2370 = vadd.f32 %v2197, %v2369
        %v2371 = vpop.f32.mrb[0].mxu0
        %v2372 = vpop.f32.mrb[0].mxu0
        %v2373 = vadd.f32 %v2197, %v2372
        %v2374 = vpop.f32.mrb[0].mxu0
        %2375 = vmatprep.mubr.bf16.mxu0 %v2141
        %2376 = vmatmul.mubr.bf16.gmra.mrb[0].mxu0 %v2140
        %v2377 = vpop.f32.mrb[0].mxu0
        %v2378 = vadd.f32 %v2197, %v2377
        %v2379 = vpop.f32.mrb[0].mxu0
        %v2380 = vpop.f32.mrb[0].mxu0
        %v2381 = vadd.f32 %v2197, %v2380
        %v2382 = vpop.f32.mrb[0].mxu0
        %2383 = vmatprep.mubr.bf16.mxu0 %v2143
        %2384 = vmatmul.mubr.bf16.gmra.mrb[0].mxu0 %v2142
        %v2385 = vpop.f32.mrb[0].mxu0
        %v2386 = vadd.f32 %v2197, %v2385
        %v2387 = vpop.f32.mrb[0].mxu0
        %v2388 = vpop.f32.mrb[0].mxu0
        %v2389 = vadd.f32 %v2197, %v2388
        %v2390 = vpop.f32.mrb[0].mxu0
        %2391 = vmatprep.mubr.bf16.mxu0 %v2145
        %2392 = vmatmul.mubr.bf16.gmra.mrb[0].mxu0 %v2144
        %v2393 = vpop.f32.mrb[0].mxu0
        %v2394 = vadd.f32 %v2197, %v2393
        %v2395 = vpop.f32.mrb[0].mxu0
        %v2396 = vpop.f32.mrb[0].mxu0
        %v2397 = vadd.f32 %v2197, %v2396
        %v2398 = vpop.f32.mrb[0].mxu0
        %2399 = vmatprep.mubr.bf16.mxu0 %v2147
        %2400 = vmatmul.mubr.bf16.gmra.mrb[0].mxu0 %v2146
        %v2401 = vpop.f32.mrb[0].mxu0
        %v2402 = vadd.f32 %v2197, %v2401
        %v2403 = vpop.f32.mrb[0].mxu0
        %v2404 = vpop.f32.mrb[0].mxu0
        %v2405 = vadd.f32 %v2197, %v2404
        %v2406 = vpop.f32.mrb[0].mxu0
        %2407 = vmatprep.mubr.bf16.mxu0 %v2149
        %2408 = vmatmul.mubr.bf16.gmra.mrb[0].mxu0 %v2148
        %v2409 = vpop.f32.mrb[0].mxu0
        %v2410 = vadd.f32 %v2197, %v2409
        %v2411 = vpop.f32.mrb[0].mxu0
        %v2412 = vpop.f32.mrb[0].mxu0
        %v2413 = vadd.f32 %v2197, %v2412
        %v2414 = vpop.f32.mrb[0].mxu0
        %2415 = vmatprep.mubr.bf16.mxu0 %v2151
        %2416 = vmatmul.mubr.bf16.gmra.mrb[0].mxu0 %v2150
        %v2417 = vpop.f32.mrb[0].mxu0
        %v2418 = vadd.f32 %v2197, %v2417
        %v2419 = vpop.f32.mrb[0].mxu0
        %v2420 = vpop.f32.mrb[0].mxu0
        %v2421 = vadd.f32 %v2197, %v2420
        %v2422 = vpop.f32.mrb[0].mxu0
        %2423 = vmatprep.mubr.bf16.mxu0 %v2153
        %2424 = vmatmul.mubr.bf16.gmra.mrb[0].mxu0 %v2152
        %v2425 = vpop.f32.mrb[0].mxu0
        %v2426 = vadd.f32 %v2197, %v2425
        %v2427 = vpop.f32.mrb[0].mxu0
        %v2428 = vpop.f32.mrb[0].mxu0
        %v2429 = vadd.f32 %v2197, %v2428
        %v2430 = vpop.f32.mrb[0].mxu0
        %2431 = vmatprep.mubr.bf16.mxu0 %v2155
        %2432 = vmatmul.mubr.bf16.gmra.mrb[0].mxu0 %v2154
        %v2433 = vpop.f32.mrb[0].mxu0
        %v2434 = vadd.f32 %v2197, %v2433
        %v2435 = vpop.f32.mrb[0].mxu0
        %v2436 = vpop.f32.mrb[0].mxu0
        %v2437 = vadd.f32 %v2197, %v2436
        %v2438 = vpop.f32.mrb[0].mxu0
        %2439 = vmatprep.mubr.bf16.mxu0 %v2157
        %2440 = vmatmul.mubr.bf16.gmra.mrb[0].mxu0 %v2156
        %v2441 = vpop.f32.mrb[0].mxu0
        %v2442 = vadd.f32 %v2197, %v2441
        %v2443 = vpop.f32.mrb[0].mxu0
        %v2444 = vpop.f32.mrb[0].mxu0
        %v2445 = vadd.f32 %v2197, %v2444
        %v2446 = vpop.f32.mrb[0].mxu0
        %2447 = vmatprep.mubr.bf16.mxu0 %v2159
        %2448 = vmatmul.mubr.bf16.gmra.mrb[0].mxu0 %v2158
        %v2449 = vpop.f32.mrb[0].mxu0
        %v2450 = vadd.f32 %v2197, %v2449
        %v2451 = vpop.f32.mrb[0].mxu0
        %v2452 = vpop.f32.mrb[0].mxu0
        %v2453 = vadd.f32 %v2197, %v2452
        %v2454 = vpop.f32.mrb[0].mxu0
        %2455 = vdwg.mxu0
        %v2456 = vmax.f32 %v2330, 0.0
        %v2457 = vmax.f32 %v2333, 0.0
        %v2458 = vmax.f32 %v2338, 0.0
        %v2459 = vmax.f32 %v2341, 0.0
        %v2460 = vmax.f32 %v2346, 0.0
        %v2461 = vmax.f32 %v2349, 0.0
        %v2462 = vmax.f32 %v2354, 0.0
        %v2463 = vmax.f32 %v2357, 0.0
        %v2464 = vmax.f32 %v2362, 0.0
        %v2465 = vmax.f32 %v2365, 0.0
        %v2466 = vmax.f32 %v2370, 0.0
        %v2467 = vmax.f32 %v2373, 0.0
        %v2468 = vmax.f32 %v2378, 0.0
        %v2469 = vmax.f32 %v2381, 0.0
        %v2470 = vmax.f32 %v2386, 0.0
        %v2471 = vmax.f32 %v2389, 0.0
        %v2472 = vmax.f32 %v2394, 0.0
        %v2473 = vmax.f32 %v2397, 0.0
        %v2474 = vmax.f32 %v2402, 0.0
        %v2475 = vmax.f32 %v2405, 0.0
        %v2476 = vmax.f32 %v2410, 0.0
        %v2477 = vmax.f32 %v2413, 0.0
        %v2478 = vmax.f32 %v2418, 0.0
        %v2479 = vmax.f32 %v2421, 0.0
        %v2480 = vmax.f32 %v2426, 0.0
        %v2481 = vmax.f32 %v2429, 0.0
        %v2482 = vmax.f32 %v2434, 0.0
        %v2483 = vmax.f32 %v2437, 0.0
        %v2484 = vmax.f32 %v2442, 0.0
        %v2485 = vmax.f32 %v2445, 0.0
        %v2486 = vmax.f32 %v2450, 0.0
        %v2487 = vmax.f32 %v2453, 0.0
        %v2488 = vpack.c.bf16 %v2457, %v2456
        %v2489 = vpack.c.bf16 %v2459, %v2458
        %v2490 = vpack.c.bf16 %v2461, %v2460
        %v2491 = vpack.c.bf16 %v2463, %v2462
        %v2492 = vpack.c.bf16 %v2465, %v2464
        %v2493 = vpack.c.bf16 %v2467, %v2466
        %v2494 = vpack.c.bf16 %v2469, %v2468
        %v2495 = vpack.c.bf16 %v2471, %v2470
        %v2496 = vpack.c.bf16 %v2473, %v2472
        %v2497 = vpack.c.bf16 %v2475, %v2474
        %v2498 = vpack.c.bf16 %v2477, %v2476
        %v2499 = vpack.c.bf16 %v2479, %v2478
        %v2500 = vpack.c.bf16 %v2481, %v2480
        %v2501 = vpack.c.bf16 %v2483, %v2482
        %v2502 = vpack.c.bf16 %v2485, %v2484
        %v2503 = vpack.c.bf16 %v2487, %v2486
        %v2504 = vld [vmem:[%s7] sm:$0xf]
        %v2505 = vld [vmem:[%s7 + $0x4] sm:$0xf]
        %v2506 = vld [vmem:[%s7 + $0x8] sm:$0xf]
        %v2507 = vld [vmem:[%s7 + $0xc] sm:$0xf]
        %v2508 = vld [vmem:[%s7 + $0x10] sm:$0xf]
        %v2509 = vld [vmem:[%s7 + $0x14] sm:$0xf]
        %v2510 = vld [vmem:[%s7 + $0x18] sm:$0xf]
        %v2511 = vld [vmem:[%s7 + $0x1c] sm:$0xf]
        %v2512 = vld [vmem:[%s7 + $0x20] sm:$0xf]
        %v2513 = vld [vmem:[%s7 + $0x24] sm:$0xf]
        %v2514 = vld [vmem:[%s7 + $0x28] sm:$0xf]
        %v2515 = vld [vmem:[%s7 + $0x2c] sm:$0xf]
        %v2516 = vld [vmem:[%s7 + $0x30] sm:$0xf]
        %v2517 = vld [vmem:[%s7 + $0x34] sm:$0xf]
        %v2518 = vld [vmem:[%s7 + $0x38] sm:$0xf]
        %v2519 = vld [vmem:[%s7 + $0x3c] sm:$0xf]
        %v2520 = vld [vmem:[%s8] sm:$0x1]
        %v2522 = vlaneseq
        %v2523 = vshrl.u32 %v2522, 7
        %v2524 = vsub.s32 0, %v2523
        %v2525 = vrot.slane %v2520, %v2524
        %v2543 = vunpack.c.l.b16 %v2504
        %v2544 = vunpack.c.l.b16 %v2505
        %v2545 = vunpack.c.l.b16 %v2506
        %v2546 = vunpack.c.l.b16 %v2507
        %v2547 = vunpack.c.l.b16 %v2508
        %v2548 = vunpack.c.l.b16 %v2509
        %v2549 = vunpack.c.l.b16 %v2510
        %v2550 = vunpack.c.l.b16 %v2511
        %v2551 = vunpack.c.l.b16 %v2512
        %v2552 = vunpack.c.l.b16 %v2513
        %v2553 = vunpack.c.l.b16 %v2514
        %v2554 = vunpack.c.l.b16 %v2515
        %v2555 = vunpack.c.l.b16 %v2516
        %v2556 = vunpack.c.l.b16 %v2517
        %v2557 = vunpack.c.l.b16 %v2518
        %v2558 = vunpack.c.l.b16 %v2519
        %v2559 = vpack.c.b16 %v2544, %v2543
        %v2560 = vpack.c.b16 %v2546, %v2545
        %v2561 = vpack.c.b16 %v2548, %v2547
        %v2562 = vpack.c.b16 %v2550, %v2549
        %v2563 = vpack.c.b16 %v2552, %v2551
        %v2564 = vpack.c.b16 %v2554, %v2553
        %v2565 = vpack.c.b16 %v2556, %v2555
        %v2566 = vpack.c.b16 %v2558, %v2557
        %2575 = vmatprep.subr.bf16.mxu0 0
        %2576 = vmatpush1.bf16.msra.mxu0 %v2559
        %2577 = vmatprep.subr.bf16.mxu0 0
        %2578 = vmatpush1.bf16.msra.mxu0 %v2560
        %2579 = vmatprep.subr.bf16.mxu0 0
        %2580 = vmatpush1.bf16.msra.mxu0 %v2561
        %2581 = vmatprep.subr.bf16.mxu0 0
        %2582 = vmatpush1.bf16.msra.mxu0 %v2562
        %2583 = vmatprep.subr.bf16.mxu0 0
        %2584 = vmatpush1.bf16.msra.mxu0 %v2563
        %2585 = vmatprep.subr.bf16.mxu0 0
        %2586 = vmatpush1.bf16.msra.mxu0 %v2564
        %2587 = vmatprep.subr.bf16.mxu0 0
        %2588 = vmatpush1.bf16.msra.mxu0 %v2565
        %2589 = vmatprep.subr.bf16.mxu0 0
        %2590 = vmatpush1.bf16.msra.mxu0 %v2566
        %2591 = vmatprep.subr.bf16.mxu0 0
        %2592 = vmatpush1.bf16.msra.mxu0 0
        %2593 = vmatprep.subr.bf16.mxu0 0
        %2594 = vmatpush1.bf16.msra.mxu0 0
        %2595 = vmatprep.subr.bf16.mxu0 0
        %2596 = vmatpush1.bf16.msra.mxu0 0
        %2597 = vmatprep.subr.bf16.mxu0 0
        %2598 = vmatpush1.bf16.msra.mxu0 0
        %2599 = vmatprep.subr.bf16.mxu0 0
        %2600 = vmatpush1.bf16.msra.mxu0 0
        %2601 = vmatprep.subr.bf16.mxu0 0
        %2602 = vmatpush1.bf16.msra.mxu0 0
        %2603 = vmatprep.subr.bf16.mxu0 0
        %2604 = vmatpush1.bf16.msra.mxu0 0
        %2605 = vmatprep.subr.bf16.mxu0 0
        %2606 = vmatpush1.bf16.msra.mxu0 0
        %2607 = vmatprep.mubr.bf16.mxu0 0
        %2608 = vmatmul.mubr.bf16.gmra.mrb[0].mxu0 %v2488
        %v2609 = vpop.f32.mrb[0].mxu0
        %v2610 = vadd.f32 %v2525, %v2609
        %v2611 = vpop.f32.mrb[0].mxu0
        %v2612 = vpop.f32.mrb[0].mxu0
        %v2613 = vadd.f32 %v2525, %v2612
        %v2614 = vpop.f32.mrb[0].mxu0
        %2615 = vmatprep.mubr.bf16.mxu0 0
        %2616 = vmatmul.mubr.bf16.gmra.mrb[0].mxu0 %v2489
        %v2617 = vpop.f32.mrb[0].mxu0
        %v2618 = vadd.f32 %v2525, %v2617
        %v2619 = vpop.f32.mrb[0].mxu0
        %v2620 = vpop.f32.mrb[0].mxu0
        %v2621 = vadd.f32 %v2525, %v2620
        %v2622 = vpop.f32.mrb[0].mxu0
        %2623 = vmatprep.mubr.bf16.mxu0 0
        %2624 = vmatmul.mubr.bf16.gmra.mrb[0].mxu0 %v2490
        %v2625 = vpop.f32.mrb[0].mxu0
        %v2626 = vadd.f32 %v2525, %v2625
        %v2627 = vpop.f32.mrb[0].mxu0
        %v2628 = vpop.f32.mrb[0].mxu0
        %v2629 = vadd.f32 %v2525, %v2628
        %v2630 = vpop.f32.mrb[0].mxu0
        %2631 = vmatprep.mubr.bf16.mxu0 0
        %2632 = vmatmul.mubr.bf16.gmra.mrb[0].mxu0 %v2491
        %v2633 = vpop.f32.mrb[0].mxu0
        %v2634 = vadd.f32 %v2525, %v2633
        %v2635 = vpop.f32.mrb[0].mxu0
        %v2636 = vpop.f32.mrb[0].mxu0
        %v2637 = vadd.f32 %v2525, %v2636
        %v2638 = vpop.f32.mrb[0].mxu0
        %2639 = vmatprep.mubr.bf16.mxu0 0
        %2640 = vmatmul.mubr.bf16.gmra.mrb[0].mxu0 %v2492
        %v2641 = vpop.f32.mrb[0].mxu0
        %v2642 = vadd.f32 %v2525, %v2641
        %v2643 = vpop.f32.mrb[0].mxu0
        %v2644 = vpop.f32.mrb[0].mxu0
        %v2645 = vadd.f32 %v2525, %v2644
        %v2646 = vpop.f32.mrb[0].mxu0
        %2647 = vmatprep.mubr.bf16.mxu0 0
        %2648 = vmatmul.mubr.bf16.gmra.mrb[0].mxu0 %v2493
        %v2649 = vpop.f32.mrb[0].mxu0
        %v2650 = vadd.f32 %v2525, %v2649
        %v2651 = vpop.f32.mrb[0].mxu0
        %v2652 = vpop.f32.mrb[0].mxu0
        %v2653 = vadd.f32 %v2525, %v2652
        %v2654 = vpop.f32.mrb[0].mxu0
        %2655 = vmatprep.mubr.bf16.mxu0 0
        %2656 = vmatmul.mubr.bf16.gmra.mrb[0].mxu0 %v2494
        %v2657 = vpop.f32.mrb[0].mxu0
        %v2658 = vadd.f32 %v2525, %v2657
        %v2659 = vpop.f32.mrb[0].mxu0
        %v2660 = vpop.f32.mrb[0].mxu0
        %v2661 = vadd.f32 %v2525, %v2660
        %v2662 = vpop.f32.mrb[0].mxu0
        %2663 = vmatprep.mubr.bf16.mxu0 0
        %2664 = vmatmul.mubr.bf16.gmra.mrb[0].mxu0 %v2495
        %v2665 = vpop.f32.mrb[0].mxu0
        %v2666 = vadd.f32 %v2525, %v2665
        %v2667 = vpop.f32.mrb[0].mxu0
        %v2668 = vpop.f32.mrb[0].mxu0
        %v2669 = vadd.f32 %v2525, %v2668
        %v2670 = vpop.f32.mrb[0].mxu0
        %2671 = vmatprep.mubr.bf16.mxu0 0
        %2672 = vmatmul.mubr.bf16.gmra.mrb[0].mxu0 %v2496
        %v2673 = vpop.f32.mrb[0].mxu0
        %v2674 = vadd.f32 %v2525, %v2673
        %v2675 = vpop.f32.mrb[0].mxu0
        %v2676 = vpop.f32.mrb[0].mxu0
        %v2677 = vadd.f32 %v2525, %v2676
        %v2678 = vpop.f32.mrb[0].mxu0
        %2679 = vmatprep.mubr.bf16.mxu0 0
        %2680 = vmatmul.mubr.bf16.gmra.mrb[0].mxu0 %v2497
        %v2681 = vpop.f32.mrb[0].mxu0
        %v2682 = vadd.f32 %v2525, %v2681
        %v2683 = vpop.f32.mrb[0].mxu0
        %v2684 = vpop.f32.mrb[0].mxu0
        %v2685 = vadd.f32 %v2525, %v2684
        %v2686 = vpop.f32.mrb[0].mxu0
        %2687 = vmatprep.mubr.bf16.mxu0 0
        %2688 = vmatmul.mubr.bf16.gmra.mrb[0].mxu0 %v2498
        %v2689 = vpop.f32.mrb[0].mxu0
        %v2690 = vadd.f32 %v2525, %v2689
        %v2691 = vpop.f32.mrb[0].mxu0
        %v2692 = vpop.f32.mrb[0].mxu0
        %v2693 = vadd.f32 %v2525, %v2692
        %v2694 = vpop.f32.mrb[0].mxu0
        %2695 = vmatprep.mubr.bf16.mxu0 0
        %2696 = vmatmul.mubr.bf16.gmra.mrb[0].mxu0 %v2499
        %v2697 = vpop.f32.mrb[0].mxu0
        %v2698 = vadd.f32 %v2525, %v2697
        %v2699 = vpop.f32.mrb[0].mxu0
        %v2700 = vpop.f32.mrb[0].mxu0
        %v2701 = vadd.f32 %v2525, %v2700
        %v2702 = vpop.f32.mrb[0].mxu0
        %2703 = vmatprep.mubr.bf16.mxu0 0
        %2704 = vmatmul.mubr.bf16.gmra.mrb[0].mxu0 %v2500
        %v2705 = vpop.f32.mrb[0].mxu0
        %v2706 = vadd.f32 %v2525, %v2705
        %v2707 = vpop.f32.mrb[0].mxu0
        %v2708 = vpop.f32.mrb[0].mxu0
        %v2709 = vadd.f32 %v2525, %v2708
        %v2710 = vpop.f32.mrb[0].mxu0
        %2711 = vmatprep.mubr.bf16.mxu0 0
        %2712 = vmatmul.mubr.bf16.gmra.mrb[0].mxu0 %v2501
        %v2713 = vpop.f32.mrb[0].mxu0
        %v2714 = vadd.f32 %v2525, %v2713
        %v2715 = vpop.f32.mrb[0].mxu0
        %v2716 = vpop.f32.mrb[0].mxu0
        %v2717 = vadd.f32 %v2525, %v2716
        %v2718 = vpop.f32.mrb[0].mxu0
        %2719 = vmatprep.mubr.bf16.mxu0 0
        %2720 = vmatmul.mubr.bf16.gmra.mrb[0].mxu0 %v2502
        %v2721 = vpop.f32.mrb[0].mxu0
        %v2722 = vadd.f32 %v2525, %v2721
        %v2723 = vpop.f32.mrb[0].mxu0
        %v2724 = vpop.f32.mrb[0].mxu0
        %v2725 = vadd.f32 %v2525, %v2724
        %v2726 = vpop.f32.mrb[0].mxu0
        %2727 = vmatprep.mubr.bf16.mxu0 0
        %2728 = vmatmul.mubr.bf16.gmra.mrb[0].mxu0 %v2503
        %v2729 = vpop.f32.mrb[0].mxu0
        %v2730 = vadd.f32 %v2525, %v2729
        %v2731 = vpop.f32.mrb[0].mxu0
        %v2732 = vpop.f32.mrb[0].mxu0
        %v2733 = vadd.f32 %v2525, %v2732
        %v2734 = vpop.f32.mrb[0].mxu0
        %2735 = vdwg.mxu0
        %v2736 = vmax.f32 %v2610, 0.0
        %v2737 = vmax.f32 %v2613, 0.0
        %v2738 = vmax.f32 %v2618, 0.0
        %v2739 = vmax.f32 %v2621, 0.0
        %v2740 = vmax.f32 %v2626, 0.0
        %v2741 = vmax.f32 %v2629, 0.0
        %v2742 = vmax.f32 %v2634, 0.0
        %v2743 = vmax.f32 %v2637, 0.0
        %v2744 = vmax.f32 %v2642, 0.0
        %v2745 = vmax.f32 %v2645, 0.0
        %v2746 = vmax.f32 %v2650, 0.0
        %v2747 = vmax.f32 %v2653, 0.0
        %v2748 = vmax.f32 %v2658, 0.0
        %v2749 = vmax.f32 %v2661, 0.0
        %v2750 = vmax.f32 %v2666, 0.0
        %v2751 = vmax.f32 %v2669, 0.0
        %v2752 = vmax.f32 %v2674, 0.0
        %v2753 = vmax.f32 %v2677, 0.0
        %v2754 = vmax.f32 %v2682, 0.0
        %v2755 = vmax.f32 %v2685, 0.0
        %v2756 = vmax.f32 %v2690, 0.0
        %v2757 = vmax.f32 %v2693, 0.0
        %v2758 = vmax.f32 %v2698, 0.0
        %v2759 = vmax.f32 %v2701, 0.0
        %v2760 = vmax.f32 %v2706, 0.0
        %v2761 = vmax.f32 %v2709, 0.0
        %v2762 = vmax.f32 %v2714, 0.0
        %v2763 = vmax.f32 %v2717, 0.0
        %v2764 = vmax.f32 %v2722, 0.0
        %v2765 = vmax.f32 %v2725, 0.0
        %v2766 = vmax.f32 %v2730, 0.0
        %v2767 = vmax.f32 %v2733, 0.0
        %v2768 = vpack.c.bf16 %v2737, %v2736
        %v2769 = vpack.c.bf16 %v2739, %v2738
        %v2770 = vpack.c.bf16 %v2741, %v2740
        %v2771 = vpack.c.bf16 %v2743, %v2742
        %v2772 = vpack.c.bf16 %v2745, %v2744
        %v2773 = vpack.c.bf16 %v2747, %v2746
        %v2774 = vpack.c.bf16 %v2749, %v2748
        %v2775 = vpack.c.bf16 %v2751, %v2750
        %v2776 = vpack.c.bf16 %v2753, %v2752
        %v2777 = vpack.c.bf16 %v2755, %v2754
        %v2778 = vpack.c.bf16 %v2757, %v2756
        %v2779 = vpack.c.bf16 %v2759, %v2758
        %v2780 = vpack.c.bf16 %v2761, %v2760
        %v2781 = vpack.c.bf16 %v2763, %v2762
        %v2782 = vpack.c.bf16 %v2765, %v2764
        %v2783 = vpack.c.bf16 %v2767, %v2766
        %v2784 = vld [vmem:[%s9] sm:$0xf]
        %v2785 = vld [vmem:[%s9 + $0x4] sm:$0xf]
        %v2786 = vld [vmem:[%s9 + $0x8] sm:$0xf]
        %v2787 = vld [vmem:[%s9 + $0xc] sm:$0xf]
        %v2788 = vld [vmem:[%s9 + $0x10] sm:$0xf]
        %v2789 = vld [vmem:[%s9 + $0x14] sm:$0xf]
        %v2790 = vld [vmem:[%s9 + $0x18] sm:$0xf]
        %v2791 = vld [vmem:[%s9 + $0x1c] sm:$0xf]
        %v2792 = vld [vmem:[%s9 + $0x20] sm:$0xf]
        %v2793 = vld [vmem:[%s9 + $0x24] sm:$0xf]
        %v2794 = vld [vmem:[%s9 + $0x28] sm:$0xf]
        %v2795 = vld [vmem:[%s9 + $0x2c] sm:$0xf]
        %v2796 = vld [vmem:[%s9 + $0x30] sm:$0xf]
        %v2797 = vld [vmem:[%s9 + $0x34] sm:$0xf]
        %v2798 = vld [vmem:[%s9 + $0x38] sm:$0xf]
        %v2799 = vld [vmem:[%s9 + $0x3c] sm:$0xf]
        %v2800 = vld [vmem:[%s10] sm:$0x1]
        %v2802 = vlaneseq
        %v2803 = vshrl.u32 %v2802, 7
        %v2804 = vsub.s32 0, %v2803
        %v2805 = vrot.slane %v2800, %v2804
        %v2823 = vunpack.c.l.b16 %v2784
        %v2824 = vunpack.c.l.b16 %v2785
        %v2825 = vunpack.c.l.b16 %v2786
        %v2826 = vunpack.c.l.b16 %v2787
        %v2827 = vunpack.c.l.b16 %v2788
        %v2828 = vunpack.c.l.b16 %v2789
        %v2829 = vunpack.c.l.b16 %v2790
        %v2830 = vunpack.c.l.b16 %v2791
        %v2831 = vunpack.c.l.b16 %v2792
        %v2832 = vunpack.c.l.b16 %v2793
        %v2833 = vunpack.c.l.b16 %v2794
        %v2834 = vunpack.c.l.b16 %v2795
        %v2835 = vunpack.c.l.b16 %v2796
        %v2836 = vunpack.c.l.b16 %v2797
        %v2837 = vunpack.c.l.b16 %v2798
        %v2838 = vunpack.c.l.b16 %v2799
        %v2839 = vpack.c.b16 %v2824, %v2823
        %v2840 = vpack.c.b16 %v2826, %v2825
        %v2841 = vpack.c.b16 %v2828, %v2827
        %v2842 = vpack.c.b16 %v2830, %v2829
        %v2843 = vpack.c.b16 %v2832, %v2831
        %v2844 = vpack.c.b16 %v2834, %v2833
        %v2845 = vpack.c.b16 %v2836, %v2835
        %v2846 = vpack.c.b16 %v2838, %v2837
        %2855 = vmatprep.subr.bf16.mxu0 0
        %2856 = vmatpush1.bf16.msra.mxu0 %v2839
        %2857 = vmatprep.subr.bf16.mxu0 0
        %2858 = vmatpush1.bf16.msra.mxu0 %v2840
        %2859 = vmatprep.subr.bf16.mxu0 0
        %2860 = vmatpush1.bf16.msra.mxu0 %v2841
        %2861 = vmatprep.subr.bf16.mxu0 0
        %2862 = vmatpush1.bf16.msra.mxu0 %v2842
        %2863 = vmatprep.subr.bf16.mxu0 0
        %2864 = vmatpush1.bf16.msra.mxu0 %v2843
        %2865 = vmatprep.subr.bf16.mxu0 0
        %2866 = vmatpush1.bf16.msra.mxu0 %v2844
        %2867 = vmatprep.subr.bf16.mxu0 0
        %2868 = vmatpush1.bf16.msra.mxu0 %v2845
        %2869 = vmatprep.subr.bf16.mxu0 0
        %2870 = vmatpush1.bf16.msra.mxu0 %v2846
        %2871 = vmatprep.subr.bf16.mxu0 0
        %2872 = vmatpush1.bf16.msra.mxu0 0
        %2873 = vmatprep.subr.bf16.mxu0 0
        %2874 = vmatpush1.bf16.msra.mxu0 0
        %2875 = vmatprep.subr.bf16.mxu0 0
        %2876 = vmatpush1.bf16.msra.mxu0 0
        %2877 = vmatprep.subr.bf16.mxu0 0
        %2878 = vmatpush1.bf16.msra.mxu0 0
        %2879 = vmatprep.subr.bf16.mxu0 0
        %2880 = vmatpush1.bf16.msra.mxu0 0
        %2881 = vmatprep.subr.bf16.mxu0 0
        %2882 = vmatpush1.bf16.msra.mxu0 0
        %2883 = vmatprep.subr.bf16.mxu0 0
        %2884 = vmatpush1.bf16.msra.mxu0 0
        %2885 = vmatprep.subr.bf16.mxu0 0
        %2886 = vmatpush1.bf16.msra.mxu0 0
        %2887 = vmatprep.mubr.bf16.mxu0 0
        %2888 = vmatmul.mubr.bf16.gmra.mrb[0].mxu0 %v2768
        %v2889 = vpop.f32.mrb[0].mxu0
        %v2890 = vadd.f32 %v2805, %v2889
        %v2891 = vpop.f32.mrb[0].mxu0
        %v2892 = vpop.f32.mrb[0].mxu0
        %v2893 = vadd.f32 %v2805, %v2892
        %v2894 = vpop.f32.mrb[0].mxu0
        %2895 = vmatprep.mubr.bf16.mxu0 0
        %2896 = vmatmul.mubr.bf16.gmra.mrb[0].mxu0 %v2769
        %v2897 = vpop.f32.mrb[0].mxu0
        %v2898 = vadd.f32 %v2805, %v2897
        %v2899 = vpop.f32.mrb[0].mxu0
        %v2900 = vpop.f32.mrb[0].mxu0
        %v2901 = vadd.f32 %v2805, %v2900
        %v2902 = vpop.f32.mrb[0].mxu0
        %2903 = vmatprep.mubr.bf16.mxu0 0
        %2904 = vmatmul.mubr.bf16.gmra.mrb[0].mxu0 %v2770
        %v2905 = vpop.f32.mrb[0].mxu0
        %v2906 = vadd.f32 %v2805, %v2905
        %v2907 = vpop.f32.mrb[0].mxu0
        %v2908 = vpop.f32.mrb[0].mxu0
        %v2909 = vadd.f32 %v2805, %v2908
        %v2910 = vpop.f32.mrb[0].mxu0
        %2911 = vmatprep.mubr.bf16.mxu0 0
        %2912 = vmatmul.mubr.bf16.gmra.mrb[0].mxu0 %v2771
        %v2913 = vpop.f32.mrb[0].mxu0
        %v2914 = vadd.f32 %v2805, %v2913
        %v2915 = vpop.f32.mrb[0].mxu0
        %v2916 = vpop.f32.mrb[0].mxu0
        %v2917 = vadd.f32 %v2805, %v2916
        %v2918 = vpop.f32.mrb[0].mxu0
        %2919 = vmatprep.mubr.bf16.mxu0 0
        %2920 = vmatmul.mubr.bf16.gmra.mrb[0].mxu0 %v2772
        %v2921 = vpop.f32.mrb[0].mxu0
        %v2922 = vadd.f32 %v2805, %v2921
        %v2923 = vpop.f32.mrb[0].mxu0
        %v2924 = vpop.f32.mrb[0].mxu0
        %v2925 = vadd.f32 %v2805, %v2924
        %v2926 = vpop.f32.mrb[0].mxu0
        %2927 = vmatprep.mubr.bf16.mxu0 0
        %2928 = vmatmul.mubr.bf16.gmra.mrb[0].mxu0 %v2773
        %v2929 = vpop.f32.mrb[0].mxu0
        %v2930 = vadd.f32 %v2805, %v2929
        %v2931 = vpop.f32.mrb[0].mxu0
        %v2932 = vpop.f32.mrb[0].mxu0
        %v2933 = vadd.f32 %v2805, %v2932
        %v2934 = vpop.f32.mrb[0].mxu0
        %2935 = vmatprep.mubr.bf16.mxu0 0
        %2936 = vmatmul.mubr.bf16.gmra.mrb[0].mxu0 %v2774
        %v2937 = vpop.f32.mrb[0].mxu0
        %v2938 = vadd.f32 %v2805, %v2937
        %v2939 = vpop.f32.mrb[0].mxu0
        %v2940 = vpop.f32.mrb[0].mxu0
        %v2941 = vadd.f32 %v2805, %v2940
        %v2942 = vpop.f32.mrb[0].mxu0
        %2943 = vmatprep.mubr.bf16.mxu0 0
        %2944 = vmatmul.mubr.bf16.gmra.mrb[0].mxu0 %v2775
        %v2945 = vpop.f32.mrb[0].mxu0
        %v2946 = vadd.f32 %v2805, %v2945
        %v2947 = vpop.f32.mrb[0].mxu0
        %v2948 = vpop.f32.mrb[0].mxu0
        %v2949 = vadd.f32 %v2805, %v2948
        %v2950 = vpop.f32.mrb[0].mxu0
        %2951 = vmatprep.mubr.bf16.mxu0 0
        %2952 = vmatmul.mubr.bf16.gmra.mrb[0].mxu0 %v2776
        %v2953 = vpop.f32.mrb[0].mxu0
        %v2954 = vadd.f32 %v2805, %v2953
        %v2955 = vpop.f32.mrb[0].mxu0
        %v2956 = vpop.f32.mrb[0].mxu0
        %v2957 = vadd.f32 %v2805, %v2956
        %v2958 = vpop.f32.mrb[0].mxu0
        %2959 = vmatprep.mubr.bf16.mxu0 0
        %2960 = vmatmul.mubr.bf16.gmra.mrb[0].mxu0 %v2777
        %v2961 = vpop.f32.mrb[0].mxu0
        %v2962 = vadd.f32 %v2805, %v2961
        %v2963 = vpop.f32.mrb[0].mxu0
        %v2964 = vpop.f32.mrb[0].mxu0
        %v2965 = vadd.f32 %v2805, %v2964
        %v2966 = vpop.f32.mrb[0].mxu0
        %2967 = vmatprep.mubr.bf16.mxu0 0
        %2968 = vmatmul.mubr.bf16.gmra.mrb[0].mxu0 %v2778
        %v2969 = vpop.f32.mrb[0].mxu0
        %v2970 = vadd.f32 %v2805, %v2969
        %v2971 = vpop.f32.mrb[0].mxu0
        %v2972 = vpop.f32.mrb[0].mxu0
        %v2973 = vadd.f32 %v2805, %v2972
        %v2974 = vpop.f32.mrb[0].mxu0
        %2975 = vmatprep.mubr.bf16.mxu0 0
        %2976 = vmatmul.mubr.bf16.gmra.mrb[0].mxu0 %v2779
        %v2977 = vpop.f32.mrb[0].mxu0
        %v2978 = vadd.f32 %v2805, %v2977
        %v2979 = vpop.f32.mrb[0].mxu0
        %v2980 = vpop.f32.mrb[0].mxu0
        %v2981 = vadd.f32 %v2805, %v2980
        %v2982 = vpop.f32.mrb[0].mxu0
        %2983 = vmatprep.mubr.bf16.mxu0 0
        %2984 = vmatmul.mubr.bf16.gmra.mrb[0].mxu0 %v2780
        %v2985 = vpop.f32.mrb[0].mxu0
        %v2986 = vadd.f32 %v2805, %v2985
        %v2987 = vpop.f32.mrb[0].mxu0
        %v2988 = vpop.f32.mrb[0].mxu0
        %v2989 = vadd.f32 %v2805, %v2988
        %v2990 = vpop.f32.mrb[0].mxu0
        %2991 = vmatprep.mubr.bf16.mxu0 0
        %2992 = vmatmul.mubr.bf16.gmra.mrb[0].mxu0 %v2781
        %v2993 = vpop.f32.mrb[0].mxu0
        %v2994 = vadd.f32 %v2805, %v2993
        %v2995 = vpop.f32.mrb[0].mxu0
        %v2996 = vpop.f32.mrb[0].mxu0
        %v2997 = vadd.f32 %v2805, %v2996
        %v2998 = vpop.f32.mrb[0].mxu0
        %2999 = vmatprep.mubr.bf16.mxu0 0
        %3000 = vmatmul.mubr.bf16.gmra.mrb[0].mxu0 %v2782
        %v3001 = vpop.f32.mrb[0].mxu0
        %v3002 = vadd.f32 %v2805, %v3001
        %v3003 = vpop.f32.mrb[0].mxu0
        %v3004 = vpop.f32.mrb[0].mxu0
        %v3005 = vadd.f32 %v2805, %v3004
        %v3006 = vpop.f32.mrb[0].mxu0
        %3007 = vmatprep.mubr.bf16.mxu0 0
        %3008 = vmatmul.mubr.bf16.gmra.mrb[0].mxu0 %v2783
        %v3009 = vpop.f32.mrb[0].mxu0
        %v3010 = vadd.f32 %v2805, %v3009
        %v3011 = vpop.f32.mrb[0].mxu0
        %v3012 = vpop.f32.mrb[0].mxu0
        %v3013 = vadd.f32 %v2805, %v3012
        %v3014 = vpop.f32.mrb[0].mxu0
        %3015 = vdwg.mxu0
        %v3016 = vmax.f32 %v2890, 0.0
        %v3017 = vmax.f32 %v2893, 0.0
        %v3018 = vmax.f32 %v2898, 0.0
        %v3019 = vmax.f32 %v2901, 0.0
        %v3020 = vmax.f32 %v2906, 0.0
        %v3021 = vmax.f32 %v2909, 0.0
        %v3022 = vmax.f32 %v2914, 0.0
        %v3023 = vmax.f32 %v2917, 0.0
        %v3024 = vmax.f32 %v2922, 0.0
        %v3025 = vmax.f32 %v2925, 0.0
        %v3026 = vmax.f32 %v2930, 0.0
        %v3027 = vmax.f32 %v2933, 0.0
        %v3028 = vmax.f32 %v2938, 0.0
        %v3029 = vmax.f32 %v2941, 0.0
        %v3030 = vmax.f32 %v2946, 0.0
        %v3031 = vmax.f32 %v2949, 0.0
        %v3032 = vmax.f32 %v2954, 0.0
        %v3033 = vmax.f32 %v2957, 0.0
        %v3034 = vmax.f32 %v2962, 0.0
        %v3035 = vmax.f32 %v2965, 0.0
        %v3036 = vmax.f32 %v2970, 0.0
        %v3037 = vmax.f32 %v2973, 0.0
        %v3038 = vmax.f32 %v2978, 0.0
        %v3039 = vmax.f32 %v2981, 0.0
        %v3040 = vmax.f32 %v2986, 0.0
        %v3041 = vmax.f32 %v2989, 0.0
        %v3042 = vmax.f32 %v2994, 0.0
        %v3043 = vmax.f32 %v2997, 0.0
        %v3044 = vmax.f32 %v3002, 0.0
        %v3045 = vmax.f32 %v3005, 0.0
        %v3046 = vmax.f32 %v3010, 0.0
        %v3047 = vmax.f32 %v3013, 0.0
        %v3048 = vpack.c.bf16 %v3017, %v3016
        %v3049 = vpack.c.bf16 %v3019, %v3018
        %v3050 = vpack.c.bf16 %v3021, %v3020
        %v3051 = vpack.c.bf16 %v3023, %v3022
        %v3052 = vpack.c.bf16 %v3025, %v3024
        %v3053 = vpack.c.bf16 %v3027, %v3026
        %v3054 = vpack.c.bf16 %v3029, %v3028
        %v3055 = vpack.c.bf16 %v3031, %v3030
        %v3056 = vpack.c.bf16 %v3033, %v3032
        %v3057 = vpack.c.bf16 %v3035, %v3034
        %v3058 = vpack.c.bf16 %v3037, %v3036
        %v3059 = vpack.c.bf16 %v3039, %v3038
        %v3060 = vpack.c.bf16 %v3041, %v3040
        %v3061 = vpack.c.bf16 %v3043, %v3042
        %v3062 = vpack.c.bf16 %v3045, %v3044
        %v3063 = vpack.c.bf16 %v3047, %v3046
        %v3064 = vld [vmem:[#allocation5] sm:$0xf]
        %v3065 = vld [vmem:[#allocation5 + $0x4] sm:$0xf]
        %v3066 = vld [vmem:[#allocation5 + $0x8] sm:$0xf]
        %v3067 = vld [vmem:[#allocation5 + $0xc] sm:$0xf]
        %v3068 = vld [vmem:[#allocation5 + $0x10] sm:$0xf]
        %v3069 = vld [vmem:[#allocation5 + $0x14] sm:$0xf]
        %v3070 = vld [vmem:[#allocation5 + $0x18] sm:$0xf]
        %v3071 = vld [vmem:[#allocation5 + $0x1c] sm:$0xf]
        %v3072 = vld [vmem:[#allocation5 + $0x20] sm:$0xf]
        %v3073 = vld [vmem:[#allocation5 + $0x24] sm:$0xf]
        %v3074 = vld [vmem:[#allocation5 + $0x28] sm:$0xf]
        %v3075 = vld [vmem:[#allocation5 + $0x2c] sm:$0xf]
        %v3076 = vld [vmem:[#allocation5 + $0x30] sm:$0xf]
        %v3077 = vld [vmem:[#allocation5 + $0x34] sm:$0xf]
        %v3078 = vld [vmem:[#allocation5 + $0x38] sm:$0xf]
        %v3079 = vld [vmem:[#allocation5 + $0x3c] sm:$0xf]
        %v3080 = vld [vmem:[%s12] sm:$0x1]
        %v3082 = vlaneseq
        %v3083 = vshrl.u32 %v3082, 7
        %v3084 = vsub.s32 0, %v3083
        %v3085 = vrot.slane %v3080, %v3084
        %v3103 = vunpack.c.l.b16 %v3064
        %v3104 = vunpack.c.l.b16 %v3065
        %v3105 = vunpack.c.l.b16 %v3066
        %v3106 = vunpack.c.l.b16 %v3067
        %v3107 = vunpack.c.l.b16 %v3068
        %v3108 = vunpack.c.l.b16 %v3069
        %v3109 = vunpack.c.l.b16 %v3070
        %v3110 = vunpack.c.l.b16 %v3071
        %v3111 = vunpack.c.l.b16 %v3072
        %v3112 = vunpack.c.l.b16 %v3073
        %v3113 = vunpack.c.l.b16 %v3074
        %v3114 = vunpack.c.l.b16 %v3075
        %v3115 = vunpack.c.l.b16 %v3076
        %v3116 = vunpack.c.l.b16 %v3077
        %v3117 = vunpack.c.l.b16 %v3078
        %v3118 = vunpack.c.l.b16 %v3079
        %v3119 = vpack.c.b16 %v3104, %v3103
        %v3120 = vpack.c.b16 %v3106, %v3105
        %v3121 = vpack.c.b16 %v3108, %v3107
        %v3122 = vpack.c.b16 %v3110, %v3109
        %v3123 = vpack.c.b16 %v3112, %v3111
        %v3124 = vpack.c.b16 %v3114, %v3113
        %v3125 = vpack.c.b16 %v3116, %v3115
        %v3126 = vpack.c.b16 %v3118, %v3117
        %3135 = vmatprep.subr.bf16.mxu0 0
        %3136 = vmatpush1.bf16.msra.mxu0 %v3119
        %3137 = vmatprep.subr.bf16.mxu0 0
        %3138 = vmatpush1.bf16.msra.mxu0 %v3120
        %3139 = vmatprep.subr.bf16.mxu0 0
        %3140 = vmatpush1.bf16.msra.mxu0 %v3121
        %3141 = vmatprep.subr.bf16.mxu0 0
        %3142 = vmatpush1.bf16.msra.mxu0 %v3122
        %3143 = vmatprep.subr.bf16.mxu0 0
        %3144 = vmatpush1.bf16.msra.mxu0 %v3123
        %3145 = vmatprep.subr.bf16.mxu0 0
        %3146 = vmatpush1.bf16.msra.mxu0 %v3124
        %3147 = vmatprep.subr.bf16.mxu0 0
        %3148 = vmatpush1.bf16.msra.mxu0 %v3125
        %3149 = vmatprep.subr.bf16.mxu0 0
        %3150 = vmatpush1.bf16.msra.mxu0 %v3126
        %3151 = vmatprep.subr.bf16.mxu0 0
        %3152 = vmatpush1.bf16.msra.mxu0 0
        %3153 = vmatprep.subr.bf16.mxu0 0
        %3154 = vmatpush1.bf16.msra.mxu0 0
        %3155 = vmatprep.subr.bf16.mxu0 0
        %3156 = vmatpush1.bf16.msra.mxu0 0
        %3157 = vmatprep.subr.bf16.mxu0 0
        %3158 = vmatpush1.bf16.msra.mxu0 0
        %3159 = vmatprep.subr.bf16.mxu0 0
        %3160 = vmatpush1.bf16.msra.mxu0 0
        %3161 = vmatprep.subr.bf16.mxu0 0
        %3162 = vmatpush1.bf16.msra.mxu0 0
        %3163 = vmatprep.subr.bf16.mxu0 0
        %3164 = vmatpush1.bf16.msra.mxu0 0
        %3165 = vmatprep.subr.bf16.mxu0 0
        %3166 = vmatpush1.bf16.msra.mxu0 0
        %3167 = vmatprep.mubr.bf16.mxu0 0
        %3168 = vmatmul.mubr.bf16.gmra.mrb[0].mxu0 %v3048
        %v3169 = vpop.f32.mrb[0].mxu0
        %v3170 = vadd.f32 %v3085, %v3169
        %v3171 = vpop.f32.mrb[0].mxu0
        %v3172 = vpop.f32.mrb[0].mxu0
        %v3173 = vadd.f32 %v3085, %v3172
        %v3174 = vpop.f32.mrb[0].mxu0
        %3175 = vmatprep.mubr.bf16.mxu0 0
        %3176 = vmatmul.mubr.bf16.gmra.mrb[0].mxu0 %v3049
        %v3177 = vpop.f32.mrb[0].mxu0
        %v3178 = vadd.f32 %v3085, %v3177
        %v3179 = vpop.f32.mrb[0].mxu0
        %v3180 = vpop.f32.mrb[0].mxu0
        %v3181 = vadd.f32 %v3085, %v3180
        %v3182 = vpop.f32.mrb[0].mxu0
        %3183 = vmatprep.mubr.bf16.mxu0 0
        %3184 = vmatmul.mubr.bf16.gmra.mrb[0].mxu0 %v3050
        %v3185 = vpop.f32.mrb[0].mxu0
        %v3186 = vadd.f32 %v3085, %v3185
        %v3187 = vpop.f32.mrb[0].mxu0
        %v3188 = vpop.f32.mrb[0].mxu0
        %v3189 = vadd.f32 %v3085, %v3188
        %v3190 = vpop.f32.mrb[0].mxu0
        %3191 = vmatprep.mubr.bf16.mxu0 0
        %3192 = vmatmul.mubr.bf16.gmra.mrb[0].mxu0 %v3051
        %v3193 = vpop.f32.mrb[0].mxu0
        %v3194 = vadd.f32 %v3085, %v3193
        %v3195 = vpop.f32.mrb[0].mxu0
        %v3196 = vpop.f32.mrb[0].mxu0
        %v3197 = vadd.f32 %v3085, %v3196
        %v3198 = vpop.f32.mrb[0].mxu0
        %3199 = vmatprep.mubr.bf16.mxu0 0
        %3200 = vmatmul.mubr.bf16.gmra.mrb[0].mxu0 %v3052
        %v3201 = vpop.f32.mrb[0].mxu0
        %v3202 = vadd.f32 %v3085, %v3201
        %v3203 = vpop.f32.mrb[0].mxu0
        %v3204 = vpop.f32.mrb[0].mxu0
        %v3205 = vadd.f32 %v3085, %v3204
        %v3206 = vpop.f32.mrb[0].mxu0
        %3207 = vmatprep.mubr.bf16.mxu0 0
        %3208 = vmatmul.mubr.bf16.gmra.mrb[0].mxu0 %v3053
        %v3209 = vpop.f32.mrb[0].mxu0
        %v3210 = vadd.f32 %v3085, %v3209
        %v3211 = vpop.f32.mrb[0].mxu0
        %v3212 = vpop.f32.mrb[0].mxu0
        %v3213 = vadd.f32 %v3085, %v3212
        %v3214 = vpop.f32.mrb[0].mxu0
        %3215 = vmatprep.mubr.bf16.mxu0 0
        %3216 = vmatmul.mubr.bf16.gmra.mrb[0].mxu0 %v3054
        %v3217 = vpop.f32.mrb[0].mxu0
        %v3218 = vadd.f32 %v3085, %v3217
        %v3219 = vpop.f32.mrb[0].mxu0
        %v3220 = vpop.f32.mrb[0].mxu0
        %v3221 = vadd.f32 %v3085, %v3220
        %v3222 = vpop.f32.mrb[0].mxu0
        %3223 = vmatprep.mubr.bf16.mxu0 0
        %3224 = vmatmul.mubr.bf16.gmra.mrb[0].mxu0 %v3055
        %v3225 = vpop.f32.mrb[0].mxu0
        %v3226 = vadd.f32 %v3085, %v3225
        %v3227 = vpop.f32.mrb[0].mxu0
        %v3228 = vpop.f32.mrb[0].mxu0
        %v3229 = vadd.f32 %v3085, %v3228
        %v3230 = vpop.f32.mrb[0].mxu0
        %3231 = vmatprep.mubr.bf16.mxu0 0
        %3232 = vmatmul.mubr.bf16.gmra.mrb[0].mxu0 %v3056
        %v3233 = vpop.f32.mrb[0].mxu0
        %v3234 = vadd.f32 %v3085, %v3233
        %v3235 = vpop.f32.mrb[0].mxu0
        %v3236 = vpop.f32.mrb[0].mxu0
        %v3237 = vadd.f32 %v3085, %v3236
        %v3238 = vpop.f32.mrb[0].mxu0
        %3239 = vmatprep.mubr.bf16.mxu0 0
        %3240 = vmatmul.mubr.bf16.gmra.mrb[0].mxu0 %v3057
        %v3241 = vpop.f32.mrb[0].mxu0
        %v3242 = vadd.f32 %v3085, %v3241
        %v3243 = vpop.f32.mrb[0].mxu0
        %v3244 = vpop.f32.mrb[0].mxu0
        %v3245 = vadd.f32 %v3085, %v3244
        %v3246 = vpop.f32.mrb[0].mxu0
        %3247 = vmatprep.mubr.bf16.mxu0 0
        %3248 = vmatmul.mubr.bf16.gmra.mrb[0].mxu0 %v3058
        %v3249 = vpop.f32.mrb[0].mxu0
        %v3250 = vadd.f32 %v3085, %v3249
        %v3251 = vpop.f32.mrb[0].mxu0
        %v3252 = vpop.f32.mrb[0].mxu0
        %v3253 = vadd.f32 %v3085, %v3252
        %v3254 = vpop.f32.mrb[0].mxu0
        %3255 = vmatprep.mubr.bf16.mxu0 0
        %3256 = vmatmul.mubr.bf16.gmra.mrb[0].mxu0 %v3059
        %v3257 = vpop.f32.mrb[0].mxu0
        %v3258 = vadd.f32 %v3085, %v3257
        %v3259 = vpop.f32.mrb[0].mxu0
        %v3260 = vpop.f32.mrb[0].mxu0
        %v3261 = vadd.f32 %v3085, %v3260
        %v3262 = vpop.f32.mrb[0].mxu0
        %3263 = vmatprep.mubr.bf16.mxu0 0
        %3264 = vmatmul.mubr.bf16.gmra.mrb[0].mxu0 %v3060
        %v3265 = vpop.f32.mrb[0].mxu0
        %v3266 = vadd.f32 %v3085, %v3265
        %v3267 = vpop.f32.mrb[0].mxu0
        %v3268 = vpop.f32.mrb[0].mxu0
        %v3269 = vadd.f32 %v3085, %v3268
        %v3270 = vpop.f32.mrb[0].mxu0
        %3271 = vmatprep.mubr.bf16.mxu0 0
        %3272 = vmatmul.mubr.bf16.gmra.mrb[0].mxu0 %v3061
        %v3273 = vpop.f32.mrb[0].mxu0
        %v3274 = vadd.f32 %v3085, %v3273
        %v3275 = vpop.f32.mrb[0].mxu0
        %v3276 = vpop.f32.mrb[0].mxu0
        %v3277 = vadd.f32 %v3085, %v3276
        %v3278 = vpop.f32.mrb[0].mxu0
        %3279 = vmatprep.mubr.bf16.mxu0 0
        %3280 = vmatmul.mubr.bf16.gmra.mrb[0].mxu0 %v3062
        %v3281 = vpop.f32.mrb[0].mxu0
        %v3282 = vadd.f32 %v3085, %v3281
        %v3283 = vpop.f32.mrb[0].mxu0
        %v3284 = vpop.f32.mrb[0].mxu0
        %v3285 = vadd.f32 %v3085, %v3284
        %v3286 = vpop.f32.mrb[0].mxu0
        %3287 = vmatprep.mubr.bf16.mxu0 0
        %3288 = vmatmul.mubr.bf16.gmra.mrb[0].mxu0 %v3063
        %v3289 = vpop.f32.mrb[0].mxu0
        %v3290 = vadd.f32 %v3085, %v3289
        %v3291 = vpop.f32.mrb[0].mxu0
        %v3292 = vpop.f32.mrb[0].mxu0
        %v3293 = vadd.f32 %v3085, %v3292
        %v3294 = vpop.f32.mrb[0].mxu0
        %3295 = vdwg.mxu0
        %v3296 = vxor.u32 %v3170, 2147483648
        %v3297 = vxor.u32 %v3173, 2147483648
        %v3298 = vxor.u32 %v3178, 2147483648
        %v3299 = vxor.u32 %v3181, 2147483648
        %v3300 = vxor.u32 %v3186, 2147483648
        %v3301 = vxor.u32 %v3189, 2147483648
        %v3302 = vxor.u32 %v3194, 2147483648
        %v3303 = vxor.u32 %v3197, 2147483648
        %v3304 = vxor.u32 %v3202, 2147483648
        %v3305 = vxor.u32 %v3205, 2147483648
        %v3306 = vxor.u32 %v3210, 2147483648
        %v3307 = vxor.u32 %v3213, 2147483648
        %v3308 = vxor.u32 %v3218, 2147483648
        %v3309 = vxor.u32 %v3221, 2147483648
        %v3310 = vxor.u32 %v3226, 2147483648
        %v3311 = vxor.u32 %v3229, 2147483648
        %v3312 = vxor.u32 %v3234, 2147483648
        %v3313 = vxor.u32 %v3237, 2147483648
        %v3314 = vxor.u32 %v3242, 2147483648
        %v3315 = vxor.u32 %v3245, 2147483648
        %v3316 = vxor.u32 %v3250, 2147483648
        %v3317 = vxor.u32 %v3253, 2147483648
        %v3318 = vxor.u32 %v3258, 2147483648
        %v3319 = vxor.u32 %v3261, 2147483648
        %v3320 = vxor.u32 %v3266, 2147483648
        %v3321 = vxor.u32 %v3269, 2147483648
        %v3322 = vxor.u32 %v3274, 2147483648
        %v3323 = vxor.u32 %v3277, 2147483648
        %v3324 = vxor.u32 %v3282, 2147483648
        %v3325 = vxor.u32 %v3285, 2147483648
        %v3326 = vxor.u32 %v3290, 2147483648
        %v3327 = vxor.u32 %v3293, 2147483648
        %v3328 = vmul.f32 %v3296, 1.442695
        %v3329 = vpow.pop %v3328
        %v3330 = vmul.f32 %v3297, 1.442695
        %v3331 = vpow.pop %v3330
        %v3332 = vmul.f32 %v3298, 1.442695
        %v3333 = vpow.pop %v3332
        %v3334 = vmul.f32 %v3299, 1.442695
        %v3335 = vpow.pop %v3334
        %v3336 = vmul.f32 %v3300, 1.442695
        %v3337 = vpow.pop %v3336
        %v3338 = vmul.f32 %v3301, 1.442695
        %v3339 = vpow.pop %v3338
        %v3340 = vmul.f32 %v3302, 1.442695
        %v3341 = vpow.pop %v3340
        %v3342 = vmul.f32 %v3303, 1.442695
        %v3343 = vpow.pop %v3342
        %v3344 = vmul.f32 %v3304, 1.442695
        %v3345 = vpow.pop %v3344
        %v3346 = vmul.f32 %v3305, 1.442695
        %v3347 = vpow.pop %v3346
        %v3348 = vmul.f32 %v3306, 1.442695
        %v3349 = vpow.pop %v3348
        %v3350 = vmul.f32 %v3307, 1.442695
        %v3351 = vpow.pop %v3350
        %v3352 = vmul.f32 %v3308, 1.442695
        %v3353 = vpow.pop %v3352
        %v3354 = vmul.f32 %v3309, 1.442695
        %v3355 = vpow.pop %v3354
        %v3356 = vmul.f32 %v3310, 1.442695
        %v3357 = vpow.pop %v3356
        %v3358 = vmul.f32 %v3311, 1.442695
        %v3359 = vpow.pop %v3358
        %v3360 = vmul.f32 %v3312, 1.442695
        %v3361 = vpow.pop %v3360
        %v3362 = vmul.f32 %v3313, 1.442695
        %v3363 = vpow.pop %v3362
        %v3364 = vmul.f32 %v3314, 1.442695
        %v3365 = vpow.pop %v3364
        %v3366 = vmul.f32 %v3315, 1.442695
        %v3367 = vpow.pop %v3366
        %v3368 = vmul.f32 %v3316, 1.442695
        %v3369 = vpow.pop %v3368
        %v3370 = vmul.f32 %v3317, 1.442695
        %v3371 = vpow.pop %v3370
        %v3372 = vmul.f32 %v3318, 1.442695
        %v3373 = vpow.pop %v3372
        %v3374 = vmul.f32 %v3319, 1.442695
        %v3375 = vpow.pop %v3374
        %v3376 = vmul.f32 %v3320, 1.442695
        %v3377 = vpow.pop %v3376
        %v3378 = vmul.f32 %v3321, 1.442695
        %v3379 = vpow.pop %v3378
        %v3380 = vmul.f32 %v3322, 1.442695
        %v3381 = vpow.pop %v3380
        %v3382 = vmul.f32 %v3323, 1.442695
        %v3383 = vpow.pop %v3382
        %v3384 = vmul.f32 %v3324, 1.442695
        %v3385 = vpow.pop %v3384
        %v3386 = vmul.f32 %v3325, 1.442695
        %v3387 = vpow.pop %v3386
        %v3388 = vmul.f32 %v3326, 1.442695
        %v3389 = vpow.pop %v3388
        %v3390 = vmul.f32 %v3327, 1.442695
        %v3391 = vpow.pop %v3390
        %v3392 = vadd.f32 %v3329, 1.0
        %v3393 = vadd.f32 %v3331, 1.0
        %v3394 = vadd.f32 %v3333, 1.0
        %v3395 = vadd.f32 %v3335, 1.0
        %v3396 = vadd.f32 %v3337, 1.0
        %v3397 = vadd.f32 %v3339, 1.0
        %v3398 = vadd.f32 %v3341, 1.0
        %v3399 = vadd.f32 %v3343, 1.0
        %v3400 = vadd.f32 %v3345, 1.0
        %v3401 = vadd.f32 %v3347, 1.0
        %v3402 = vadd.f32 %v3349, 1.0
        %v3403 = vadd.f32 %v3351, 1.0
        %v3404 = vadd.f32 %v3353, 1.0
        %v3405 = vadd.f32 %v3355, 1.0
        %v3406 = vadd.f32 %v3357, 1.0
        %v3407 = vadd.f32 %v3359, 1.0
        %v3408 = vadd.f32 %v3361, 1.0
        %v3409 = vadd.f32 %v3363, 1.0
        %v3410 = vadd.f32 %v3365, 1.0
        %v3411 = vadd.f32 %v3367, 1.0
        %v3412 = vadd.f32 %v3369, 1.0
        %v3413 = vadd.f32 %v3371, 1.0
        %v3414 = vadd.f32 %v3373, 1.0
        %v3415 = vadd.f32 %v3375, 1.0
        %v3416 = vadd.f32 %v3377, 1.0
        %v3417 = vadd.f32 %v3379, 1.0
        %v3418 = vadd.f32 %v3381, 1.0
        %v3419 = vadd.f32 %v3383, 1.0
        %v3420 = vadd.f32 %v3385, 1.0
        %v3421 = vadd.f32 %v3387, 1.0
        %v3422 = vadd.f32 %v3389, 1.0
        %v3423 = vadd.f32 %v3391, 1.0
        %v3424 = vrcp.pop %v3392
        %v3425 = vmul.f32 1.0, %v3424
        %v3426 = vrcp.pop %v3393
        %v3427 = vmul.f32 1.0, %v3426
        %v3428 = vrcp.pop %v3394
        %v3429 = vmul.f32 1.0, %v3428
        %v3430 = vrcp.pop %v3395
        %v3431 = vmul.f32 1.0, %v3430
        %v3432 = vrcp.pop %v3396
        %v3433 = vmul.f32 1.0, %v3432
        %v3434 = vrcp.pop %v3397
        %v3435 = vmul.f32 1.0, %v3434
        %v3436 = vrcp.pop %v3398
        %v3437 = vmul.f32 1.0, %v3436
        %v3438 = vrcp.pop %v3399
        %v3439 = vmul.f32 1.0, %v3438
        %v3440 = vrcp.pop %v3400
        %v3441 = vmul.f32 1.0, %v3440
        %v3442 = vrcp.pop %v3401
        %v3443 = vmul.f32 1.0, %v3442
        %v3444 = vrcp.pop %v3402
        %v3445 = vmul.f32 1.0, %v3444
        %v3446 = vrcp.pop %v3403
        %v3447 = vmul.f32 1.0, %v3446
        %v3448 = vrcp.pop %v3404
        %v3449 = vmul.f32 1.0, %v3448
        %v3450 = vrcp.pop %v3405
        %v3451 = vmul.f32 1.0, %v3450
        %v3452 = vrcp.pop %v3406
        %v3453 = vmul.f32 1.0, %v3452
        %v3454 = vrcp.pop %v3407
        %v3455 = vmul.f32 1.0, %v3454
        %v3456 = vrcp.pop %v3408
        %v3457 = vmul.f32 1.0, %v3456
        %v3458 = vrcp.pop %v3409
        %v3459 = vmul.f32 1.0, %v3458
        %v3460 = vrcp.pop %v3410
        %v3461 = vmul.f32 1.0, %v3460
        %v3462 = vrcp.pop %v3411
        %v3463 = vmul.f32 1.0, %v3462
        %v3464 = vrcp.pop %v3412
        %v3465 = vmul.f32 1.0, %v3464
        %v3466 = vrcp.pop %v3413
        %v3467 = vmul.f32 1.0, %v3466
        %v3468 = vrcp.pop %v3414
        %v3469 = vmul.f32 1.0, %v3468
        %v3470 = vrcp.pop %v3415
        %v3471 = vmul.f32 1.0, %v3470
        %v3472 = vrcp.pop %v3416
        %v3473 = vmul.f32 1.0, %v3472
        %v3474 = vrcp.pop %v3417
        %v3475 = vmul.f32 1.0, %v3474
        %v3476 = vrcp.pop %v3418
        %v3477 = vmul.f32 1.0, %v3476
        %v3478 = vrcp.pop %v3419
        %v3479 = vmul.f32 1.0, %v3478
        %v3480 = vrcp.pop %v3420
        %v3481 = vmul.f32 1.0, %v3480
        %v3482 = vrcp.pop %v3421
        %v3483 = vmul.f32 1.0, %v3482
        %v3484 = vrcp.pop %v3422
        %v3485 = vmul.f32 1.0, %v3484
        %v3486 = vrcp.pop %v3423
        %v3487 = vmul.f32 1.0, %v3486
        %v3488 = vpack.c.bf16 %v3427, %v3425
        %v3489 = vpack.c.bf16 %v3431, %v3429
        %v3490 = vpack.c.bf16 %v3435, %v3433
        %v3491 = vpack.c.bf16 %v3439, %v3437
        %v3492 = vpack.c.bf16 %v3443, %v3441
        %v3493 = vpack.c.bf16 %v3447, %v3445
        %v3494 = vpack.c.bf16 %v3451, %v3449
        %v3495 = vpack.c.bf16 %v3455, %v3453
        %v3496 = vpack.c.bf16 %v3459, %v3457
        %v3497 = vpack.c.bf16 %v3463, %v3461
        %v3498 = vpack.c.bf16 %v3467, %v3465
        %v3499 = vpack.c.bf16 %v3471, %v3469
        %v3500 = vpack.c.bf16 %v3475, %v3473
        %v3501 = vpack.c.bf16 %v3479, %v3477
        %v3502 = vpack.c.bf16 %v3483, %v3481
        %v3503 = vpack.c.bf16 %v3487, %v3485
        %v3520 = vunpack.c.l.b16 %v3488
        %v3521 = vunpack.c.h.b16 %v3488
        %v3522 = vunpack.c.l.b16 %v3489
        %v3523 = vunpack.c.h.b16 %v3489
        %v3524 = vunpack.c.l.b16 %v3490
        %v3525 = vunpack.c.h.b16 %v3490
        %v3526 = vunpack.c.l.b16 %v3491
        %v3527 = vunpack.c.h.b16 %v3491
        %v3528 = vunpack.c.l.b16 %v3492
        %v3529 = vunpack.c.h.b16 %v3492
        %v3530 = vunpack.c.l.b16 %v3493
        %v3531 = vunpack.c.h.b16 %v3493
        %v3532 = vunpack.c.l.b16 %v3494
        %v3533 = vunpack.c.h.b16 %v3494
        %v3534 = vunpack.c.l.b16 %v3495
        %v3535 = vunpack.c.h.b16 %v3495
        %v3536 = vunpack.c.l.b16 %v3496
        %v3537 = vunpack.c.h.b16 %v3496
        %v3538 = vunpack.c.l.b16 %v3497
        %v3539 = vunpack.c.h.b16 %v3497
        %v3540 = vunpack.c.l.b16 %v3498
        %v3541 = vunpack.c.h.b16 %v3498
        %v3542 = vunpack.c.l.b16 %v3499
        %v3543 = vunpack.c.h.b16 %v3499
        %v3544 = vunpack.c.l.b16 %v3500
        %v3545 = vunpack.c.h.b16 %v3500
        %v3546 = vunpack.c.l.b16 %v3501
        %v3547 = vunpack.c.h.b16 %v3501
        %v3548 = vunpack.c.l.b16 %v3502
        %v3549 = vunpack.c.h.b16 %v3502
        %v3550 = vunpack.c.l.b16 %v3503
        %v3551 = vunpack.c.h.b16 %v3503
        %v3552 = vpack.c.b16 %v3520, %v3520
        %v3553 = vpack.c.b16 %v3521, %v3521
        %v3554 = vpack.c.b16 %v3522, %v3522
        %v3555 = vpack.c.b16 %v3523, %v3523
        %v3556 = vpack.c.b16 %v3524, %v3524
        %v3557 = vpack.c.b16 %v3525, %v3525
        %v3558 = vpack.c.b16 %v3526, %v3526
        %v3559 = vpack.c.b16 %v3527, %v3527
        %v3560 = vpack.c.b16 %v3528, %v3528
        %v3561 = vpack.c.b16 %v3529, %v3529
        %v3562 = vpack.c.b16 %v3530, %v3530
        %v3563 = vpack.c.b16 %v3531, %v3531
        %v3564 = vpack.c.b16 %v3532, %v3532
        %v3565 = vpack.c.b16 %v3533, %v3533
        %v3566 = vpack.c.b16 %v3534, %v3534
        %v3567 = vpack.c.b16 %v3535, %v3535
        %v3568 = vpack.c.b16 %v3536, %v3536
        %v3569 = vpack.c.b16 %v3537, %v3537
        %v3570 = vpack.c.b16 %v3538, %v3538
        %v3571 = vpack.c.b16 %v3539, %v3539
        %v3572 = vpack.c.b16 %v3540, %v3540
        %v3573 = vpack.c.b16 %v3541, %v3541
        %v3574 = vpack.c.b16 %v3542, %v3542
        %v3575 = vpack.c.b16 %v3543, %v3543
        %v3576 = vpack.c.b16 %v3544, %v3544
        %v3577 = vpack.c.b16 %v3545, %v3545
        %v3578 = vpack.c.b16 %v3546, %v3546
        %v3579 = vpack.c.b16 %v3547, %v3547
        %v3580 = vpack.c.b16 %v3548, %v3548
        %v3581 = vpack.c.b16 %v3549, %v3549
        %v3582 = vpack.c.b16 %v3550, %v3550
        %v3583 = vpack.c.b16 %v3551, %v3551
        %3616 = vst [vmem:[%s464] sm:$0xf] %v3552
        %3617 = vst [vmem:[%s464 + $0x4] sm:$0xf] %v3553
        %3618 = vst [vmem:[%s464 + $0x8] sm:$0xf] %v3554
        %3619 = vst [vmem:[%s464 + $0xc] sm:$0xf] %v3555
        %3620 = vst [vmem:[%s464 + $0x10] sm:$0xf] %v3556
        %3621 = vst [vmem:[%s464 + $0x14] sm:$0xf] %v3557
        %3622 = vst [vmem:[%s464 + $0x18] sm:$0xf] %v3558
        %3623 = vst [vmem:[%s464 + $0x1c] sm:$0xf] %v3559
        %3624 = vst [vmem:[%s464 + $0x20] sm:$0xf] %v3560
        %3625 = vst [vmem:[%s464 + $0x24] sm:$0xf] %v3561
        %3626 = vst [vmem:[%s464 + $0x28] sm:$0xf] %v3562
        %3627 = vst [vmem:[%s464 + $0x2c] sm:$0xf] %v3563
        %3628 = vst [vmem:[%s464 + $0x30] sm:$0xf] %v3564
        %3629 = vst [vmem:[%s464 + $0x34] sm:$0xf] %v3565
        %3630 = vst [vmem:[%s464 + $0x38] sm:$0xf] %v3566
        %3631 = vst [vmem:[%s464 + $0x3c] sm:$0xf] %v3567
        %3632 = vst [vmem:[%s464 + $0x40] sm:$0xf] %v3568
        %3633 = vst [vmem:[%s464 + $0x44] sm:$0xf] %v3569
        %3634 = vst [vmem:[%s464 + $0x48] sm:$0xf] %v3570
        %3635 = vst [vmem:[%s464 + $0x4c] sm:$0xf] %v3571
        %3636 = vst [vmem:[%s464 + $0x50] sm:$0xf] %v3572
        %3637 = vst [vmem:[%s464 + $0x54] sm:$0xf] %v3573
        %3638 = vst [vmem:[%s464 + $0x58] sm:$0xf] %v3574
        %3639 = vst [vmem:[%s464 + $0x5c] sm:$0xf] %v3575
        %3640 = vst [vmem:[%s464 + $0x60] sm:$0xf] %v3576
        %3641 = vst [vmem:[%s464 + $0x64] sm:$0xf] %v3577
        %3642 = vst [vmem:[%s464 + $0x68] sm:$0xf] %v3578
        %3643 = vst [vmem:[%s464 + $0x6c] sm:$0xf] %v3579
        %3644 = vst [vmem:[%s464 + $0x70] sm:$0xf] %v3580
        %3645 = vst [vmem:[%s464 + $0x74] sm:$0xf] %v3581
        %3646 = vst [vmem:[%s464 + $0x78] sm:$0xf] %v3582
        %3647 = vst [vmem:[%s464 + $0x7c] sm:$0xf] %v3583
        %s3648 = sand.u32 %s315, 1
        %s3649 = scalar_lea.sflag [#allocation4], %s3648
        %s3650 = sand.u32 %s315, 1
        %s3651 = smul.addr %s3650, 128
        %s3652 = scalar_lea.vmem [#allocation7], %s3651
        // Predicated region
        $region81: #{tpu_custom_call.1} parent=71 // pred_check
          %p3653 = pneg %p325
        $region82: #{tpu_custom_call.1} parent=71 // pred_check_branch
          %3655 = sbr.rel (%p3653) target = $region84
        $region83: #{tpu_custom_call.1} parent=71 // pred_region
          %s3656 = smul.u32 32, %s29
          %s3658 = ssub.s32 2048, 2048
          %3659 = vsyncadd %s3649, %s3658
          %s3660 = smul.addr %s3656, 64
          %s3661 = scalar_lea.hbm %s13, %s3660
          %s3662 = sshll.u32 %s3652, 4
          %s3663 = int_to_ptr.vmem [resolvable:$true] %s3662
          %3668 = dma.vmem_to_hbm [thread:$0]  %s3663, 2048, %s3661, %s3649, 64, 64, 4
        $region84: #{tpu_custom_call.1} parent=71 // pred_fallthru
          _
      $region72: #{tpu_custom_call.1} parent=5 // pred_fallthru
        _
      %p3669 = scmp.le.s32.totalorder 2, %s24
      // Predicated region
      $region85: #{tpu_custom_call.1} parent=5 // pred_check
        %p3670 = pneg %p3669
      $region86: #{tpu_custom_call.1} parent=5 // pred_check_branch
        %3672 = sbr.rel (%p3670) target = $region88
      $region87: #{tpu_custom_call.1} parent=5 // pred_region
        %s3673 = ssub.s32 %s24, 2
        // Predicated region
        $region89: #{tpu_custom_call.1} parent=87 // pred_check
          %p3674 = pneg %p331
        $region90: #{tpu_custom_call.1} parent=87 // pred_check_branch
          %3676 = sbr.rel (%p3674) target = $region92
        $region91: #{tpu_custom_call.1} parent=87 // pred_region
          %s3677 = sand.u32 %s316, 1
          %s3678 = scalar_lea.sflag [#allocation4], %s3677
          %s3679 = sand.u32 %s316, 1
          %s3680 = smul.addr %s3679, 128
          %s3681 = scalar_lea.vmem [#allocation7], %s3680
          %3682 = dma.done %s3678, 2048
        $region92: #{tpu_custom_call.1} parent=87 // pred_fallthru
          _
      $region88: #{tpu_custom_call.1} parent=5 // pred_fallthru
        _
    $region6: #{tpu_custom_call.1} parent=1 // loop_footer
      %s28 = sadd.s32 1, %s24
    $region7: #{tpu_custom_call.1} parent=1 // loop_footer_branch
      %23 = sbr.rel target = $region3
    $region8: #{tpu_custom_call.1} parent=1 // loop_exit
      _
    %3683 = vsyncpa [#allocation3], 1
    %s3684 = scalar_lea.sflag [#allocation3], 1
    %3685 = vsyncpa %s3684, 1
    %3686 = vsyncpa [#allocation6], 1
    %3687 = vsyncpa [#allocation4], 1
    %s3688 = scalar_lea.sflag [#allocation4], 1
    %3689 = vsyncpa %s3688, 1

</llo_original>
